<compile_context>
chip_gen: v5e
topology: v5e:2x2
jax: 0.10.0
libtpu: 0.0.40
codegen_flags: <defaults>
</compile_context>

<pallas_src>
import functools

import jax
import jax.numpy as jnp
from jax.experimental import pallas as pl
from jax.experimental.pallas import tpu as pltpu

_MIB = 1 << 20


def _round_up(x, m):
    return ((x + m - 1) // m) * m


def _cdiv(a, b):
    return -(-a // b)


def _leaky_relu(x, slope=0.02):
    # max-form: identical to where(x > 0, x, s*x) for 0 < s < 1.
    return jnp.maximum(x, slope * x)


def _device_kind():
    try:
        return jax.devices()[0].device_kind.lower()
    except Exception:
        return ""


def _default_bf16_elementwise():
    # bf16 VPU exists on v6e / v7x; keep f32 elementwise on v5e / older / unknown.
    kind = _device_kind()
    return ("v6" in kind) or ("v7" in kind) or ("7x" in kind)


def _num_tensorcores():
    kind = _device_kind()
    return 2 if (("v7" in kind) or ("7x" in kind)) else 1


# ----------------------------------------------------------------------------- kernel


def _generator_kernel(pts_ref, zb_ref,
                      w1, w2, w3, w4, w5, w6, w7,
                      b2, b3, b4, b5, b6, b7,
                      o_ref, *, sdf, bf16_elementwise):
    """Fused transposed 7-layer MLP on one (batch, row-tile) grid step."""
    act_dtype = jnp.bfloat16 if bf16_elementwise else jnp.float32

    def lin_act(h, w_ref, b_ref):
        # bf16 MXU operands; accumulation in f32 inside the MXU, popped in
        # act_dtype so bias add + leaky-relu stay in act_dtype (no extra cast).
        y = jnp.dot(w_ref[...], h.astype(w_ref.dtype),
                    preferred_element_type=act_dtype)
        return _leaky_relu(y + b_ref[...])

    # ---- layer 1: f32 points (K = 8) + per-batch fused z bias ---------------
    pts = pts_ref[0]                                        # (8, tm) f32
    y1 = jnp.dot(w1[...], pts, preferred_element_type=jnp.float32)  # (8g, tm)
    h = _leaky_relu(y1 + zb_ref[0]).astype(act_dtype)       # zb: (8g, 1) f32

    # ---- layers 2-6: MXU ----------------------------------------------------
    h = lin_act(h, w2, b2)      # (8g, tm)
    h = lin_act(h, w3, b3)      # (8g, tm)
    h = lin_act(h, w4, b4)      # (4g, tm)
    h = lin_act(h, w5, b5)      # (2g, tm)
    h = lin_act(h, w6, b6)      # (g,  tm)

    # ---- layer 7: 1-wide projection as VPU multiply + sublane reduce --------
    l7 = jnp.sum(h * w7[...], axis=0, keepdims=True) + b7[...]      # f32 (1, tm)

    if not sdf:
        # torch.max(torch.min(l7, 0.01*l7 + 0.99), 0.01*l7)
        l7 = jnp.maximum(jnp.minimum(l7, l7 * 0.01 + 0.99), l7 * 0.01)

    o_ref[...] = l7[None, None].astype(o_ref.dtype)          # (1,1,1,tm) lane-dense


# ----------------------------------------------------------------------------- glue


def _vmem_bytes_estimate(tm, gf_dim, pd_pad, bf16_elem):
    """Conservative per-step VMEM estimate (double-buffered constants)."""
    g8, g4, g2, g1 = 8 * gf_dim, 4 * gf_dim, 2 * gf_dim, gf_dim
    act_b = 2 if bf16_elem else 4
    lane = 128
    # streamed, double-buffered tiles
    est = 2 * (pd_pad * tm * 4)                 # points tile (f32)
    est += 2 * (max(g8, 8) * lane * 4)          # fused layer-1 bias column
    est += 2 * (8 * tm * 4)                     # output tile
    # resident weights / biases (count x2: conservative double-buffer)
    wbytes = g8 * lane * 4                      # w1p f32 (lane-padded)
    wbytes += (g8 * g8 * 2) * 2 + g4 * g8 * 2 + g2 * g4 * 2 + g1 * g2 * 2
    wbytes += max(g1, 8) * lane * 4             # w7 f32 column
    bbytes = (g8 + g8 + g4 + g2 + max(g1, 8)) * lane * act_b
    bbytes += 8 * lane * 4                      # b7
    est += 2 * (wbytes + bbytes)
    # live activations inside the body (compiler-managed)
    est += g8 * tm * 4 + 2 * g8 * tm * act_b
    return est


def _choose_tile(N, gf_dim, pd_pad, bf16_elem, tm_req=None):
    budget = 40 * _MIB
    tm = tm_req if tm_req is not None else (2048 if gf_dim < 64 else 1024)
    tm = max(128, _round_up(tm, 128))
    tm = min(tm, _round_up(N, 128))
    while tm > 128 and _vmem_bytes_estimate(tm, gf_dim, pd_pad, bf16_elem) > budget:
        tm = max(128, _round_up(tm // 2, 128))
    est = _vmem_bytes_estimate(tm, gf_dim, pd_pad, bf16_elem)
    vmem_limit = int(min(max(est + 8 * _MIB, 16 * _MIB), 56 * _MIB))
    return tm, vmem_limit


def _const_spec(shape, single_buffer):
    """Constant-index BlockSpec; single-buffered when pipeline_mode exists."""
    ndim = len(shape)
    idx = lambda b, i: (0,) * ndim
    if single_buffer and hasattr(pl, "Buffered"):
        return pl.BlockSpec(shape, idx, pipeline_mode=pl.Buffered(1))
    return pl.BlockSpec(shape, idx)


def init_generator_params(key, z_dim, point_dim, gf_dim):
    """Parameters in PyTorch nn.Linear layout: W (out, in), b (out,)."""
    in_dim = z_dim + point_dim
    dims = [in_dim, gf_dim * 8, gf_dim * 8, gf_dim * 8,
            gf_dim * 4, gf_dim * 2, gf_dim * 1, 1]
    means = [0.0] * 6 + [1e-5]
    weights, biases = [], []
    for li in range(7):
        key, sub = jax.random.split(key)
        d_in, d_out = dims[li], dims[li + 1]
        w = means[li] + 0.02 * jax.random.normal(sub, (d_out, d_in), jnp.float32)
        b = jnp.zeros((d_out,), jnp.float32)
        weights.append(w)
        biases.append(b)
    return weights, biases


def generator_forward(points, z, weights, biases, *, sdf=False, tm=None):
    """points: (B, N, point_dim), z: (B, z_dim) -> (B, N) float32."""
    B, N, point_dim = points.shape
    gf_dim = int(weights[5].shape[0])            # layer-6 output width = gf_dim
    g8 = 8 * gf_dim
    pd_pad = _round_up(point_dim, 8)

    bf16_elem = _default_bf16_elementwise()
    act_dtype = jnp.bfloat16 if bf16_elem else jnp.float32
    n_tc = _num_tensorcores()

    # --- tile / VMEM sizing (generation-aware) --------------------------------
    tm_eff, vmem_limit = _choose_tile(N, gf_dim, pd_pad, bf16_elem, tm)
    # v7x only (2 TCs): if the whole workload is a single grid step, split it
    # so both TensorCores get work.  On 1-TC chips this is pure overhead.
    if n_tc >= 2 and B * _cdiv(N, tm_eff) < n_tc and tm_eff >= 256:
        tm_eff = max(128, _round_up(_cdiv(N, n_tc), 128))
    N_pad = _round_up(N, tm_eff)
    n_tiles = N_pad // tm_eff

    # --- glue: points as (B, pd_pad, N_pad) f32 (only ~12 B/row of relayout) --
    pts_t = jnp.transpose(points.astype(jnp.float32), (0, 2, 1))      # (B, pd, N)
    pts_t = jnp.pad(pts_t, ((0, 0), (0, pd_pad - point_dim), (0, N_pad - N)))

    # --- z-fold: per-batch layer-1 bias  zb = W1_z @ z + b1 -------------------
    w1f = weights[0].astype(jnp.float32)                              # (8g, pd+zd)
    w1p = jnp.pad(w1f[:, :point_dim], ((0, 0), (0, pd_pad - point_dim)))
    zb = z.astype(jnp.float32) @ w1f[:, point_dim:].T + biases[0].astype(jnp.float32)
    zb = zb[:, :, None]                                               # (B, 8g, 1)

    # --- constant operands -----------------------------------------------------
    ws = [w1p] + [w.astype(jnp.bfloat16) for w in weights[1:6]]
    w7 = weights[6].T.astype(jnp.float32)                             # (g, 1)
    bs = [b.reshape(-1, 1).astype(act_dtype) for b in biases[1:6]]
    b7 = biases[6].reshape(1, 1).astype(jnp.float32)

    # --- specs -----------------------------------------------------------------
    pts_spec = pl.BlockSpec((1, pd_pad, tm_eff), lambda b, i: (b, 0, i))
    zb_spec = pl.BlockSpec((1, g8, 1), lambda b, i: (b, 0, 0))
    out_spec = pl.BlockSpec((1, 1, 1, tm_eff), lambda b, i: (b, i, 0, 0))

    kernel = functools.partial(_generator_kernel, sdf=sdf,
                               bf16_elementwise=bf16_elem)

    def _call(single_buffer):
        w_specs = ([_const_spec(w.shape, single_buffer) for w in ws]
                   + [_const_spec(w7.shape, single_buffer)])
        b_specs = ([_const_spec(b.shape, single_buffer) for b in bs]
                   + [_const_spec(b7.shape, single_buffer)])
        return pl.pallas_call(
            kernel,
            out_shape=jax.ShapeDtypeStruct((B, n_tiles, 1, tm_eff), jnp.float32),
            grid_spec=pltpu.PrefetchScalarGridSpec(
                num_scalar_prefetch=0,
                grid=(B, n_tiles),
                in_specs=[pts_spec, zb_spec] + w_specs + b_specs,
                out_specs=out_spec,
            ),
            compiler_params=pltpu.CompilerParams(
                dimension_semantics=("parallel", "parallel"),
                vmem_limit_bytes=vmem_limit,
            ),
        )(pts_t, zb, *ws, w7, *bs, b7)

    if hasattr(pl, "Buffered"):
        try:
            out = _call(True)
        except Exception:
            # Fallback for environments where pipeline_mode=Buffered(1) is not
            # supported; any genuine kernel error re-raises from the retry.
            out = _call(False)
    else:
        out = _call(False)

    return out.reshape(B, N_pad)[:, :N]          # == l7.squeeze(2) in torch


def generator_reference(points, z, weights, biases, *, sdf=False):
    """Pure-JAX f32 reference mirroring the PyTorch forward."""
    B, N, _ = points.shape
    zs = jnp.broadcast_to(z[:, None, :], (B, N, z.shape[-1]))
    h = jnp.concatenate([points, zs], axis=2).astype(jnp.float32)
    for li in range(6):
        h = h @ weights[li].T + biases[li]
        h = jnp.where(h > 0, h, 0.02 * h)
    l7 = h @ weights[6].T + biases[6]
    if not sdf:
        l7 = jnp.maximum(jnp.minimum(l7, l7 * 0.01 + 0.99), l7 * 0.01)
    return l7[..., 0]


if __name__ == "__main__":
    key = jax.random.PRNGKey(0)

    # Small shapes consistent with the module: z_dim=32, point_dim=3, gf_dim=16
    B, N = 2, 64
    z_dim, point_dim, gf_dim = 32, 3, 16

    kp, kz, kw = jax.random.split(key, 3)
    points = jax.random.uniform(kp, (B, N, point_dim), jnp.float32,
                                minval=-0.5, maxval=0.5)
    z = jax.random.normal(kz, (B, z_dim), jnp.float32)

    weights, biases = init_generator_params(kw, z_dim, point_dim, gf_dim)

    out = generator_forward(points, z, weights, biases, sdf=False)
    out = jax.block_until_ready(out)

    ref = generator_reference(points, z, weights, biases, sdf=False)
    assert out.shape == (B, N), out.shape
    # bf16 MXU operands (and bf16 elementwise on v6e/v7x): loosened tolerance.
    assert jnp.allclose(out, ref, atol=2e-3, rtol=3e-2), \
        float(jnp.max(jnp.abs(out - ref)))

    print("KERNEL_OK")
</pallas_src>

<mosaic_0001>
module attributes {stable_mosaic.version = 11 : i64} {
  func.func @_generator_kernel(%arg0: i32, %arg1: i32, %arg2: memref<1x8x128xf32, #tpu.memory_space<vmem>>, %arg3: memref<1x128x1xf32, #tpu.memory_space<vmem>>, %arg4: memref<128x8xf32, #tpu.memory_space<vmem>>, %arg5: memref<128x128xbf16, #tpu.memory_space<vmem>>, %arg6: memref<128x128xbf16, #tpu.memory_space<vmem>>, %arg7: memref<64x128xbf16, #tpu.memory_space<vmem>>, %arg8: memref<32x64xbf16, #tpu.memory_space<vmem>>, %arg9: memref<16x32xbf16, #tpu.memory_space<vmem>>, %arg10: memref<16x1xf32, #tpu.memory_space<vmem>>, %arg11: memref<128x1xf32, #tpu.memory_space<vmem>>, %arg12: memref<128x1xf32, #tpu.memory_space<vmem>>, %arg13: memref<64x1xf32, #tpu.memory_space<vmem>>, %arg14: memref<32x1xf32, #tpu.memory_space<vmem>>, %arg15: memref<16x1xf32, #tpu.memory_space<vmem>>, %arg16: memref<1x1xf32, #tpu.memory_space<vmem>>, %arg17: memref<1x1x1x128xf32, #tpu.memory_space<vmem>>) attributes {dimension_semantics = [#tpu.dimension_semantics<parallel>, #tpu.dimension_semantics<parallel>], iteration_bounds = array<i64: 2, 1>, scalar_prefetch = 0 : i64, scratch_operands = 0 : i64, tpu.core_type = #tpu.core_type<tc>, window_params = [{transform_indices = @transform_0, window_bounds = array<i64: 1, 8, 128>}, {transform_indices = @transform_1, window_bounds = array<i64: 1, 128, 1>}, {pipeline_mode = #tpu.pipeline_mode<synchronous>, transform_indices = @transform_2, window_bounds = array<i64: 128, 8>}, {pipeline_mode = #tpu.pipeline_mode<synchronous>, transform_indices = @transform_3, window_bounds = array<i64: 128, 128>}, {pipeline_mode = #tpu.pipeline_mode<synchronous>, transform_indices = @transform_4, window_bounds = array<i64: 128, 128>}, {pipeline_mode = #tpu.pipeline_mode<synchronous>, transform_indices = @transform_5, window_bounds = array<i64: 64, 128>}, {pipeline_mode = #tpu.pipeline_mode<synchronous>, transform_indices = @transform_6, window_bounds = array<i64: 32, 64>}, {pipeline_mode = #tpu.pipeline_mode<synchronous>, transform_indices = @transform_7, window_bounds = array<i64: 16, 32>}, {pipeline_mode = #tpu.pipeline_mode<synchronous>, transform_indices = @transform_8, window_bounds = array<i64: 16, 1>}, {pipeline_mode = #tpu.pipeline_mode<synchronous>, transform_indices = @transform_9, window_bounds = array<i64: 128, 1>}, {pipeline_mode = #tpu.pipeline_mode<synchronous>, transform_indices = @transform_10, window_bounds = array<i64: 128, 1>}, {pipeline_mode = #tpu.pipeline_mode<synchronous>, transform_indices = @transform_11, window_bounds = array<i64: 64, 1>}, {pipeline_mode = #tpu.pipeline_mode<synchronous>, transform_indices = @transform_12, window_bounds = array<i64: 32, 1>}, {pipeline_mode = #tpu.pipeline_mode<synchronous>, transform_indices = @transform_13, window_bounds = array<i64: 16, 1>}, {pipeline_mode = #tpu.pipeline_mode<synchronous>, transform_indices = @transform_14, window_bounds = array<i64: 1, 1>}, {transform_indices = @transform_15, window_bounds = array<i64: 1, 1, 1, 128>}]} {
    %c0 = arith.constant 0 : index
    %c0_0 = arith.constant 0 : index
    %c0_1 = arith.constant 0 : index
    %0 = vector.load %arg2[%c0, %c0_0, %c0_1] : memref<1x8x128xf32, #tpu.memory_space<vmem>>, vector<1x8x128xf32>
    %1 = vector.shape_cast %0 : vector<1x8x128xf32> to vector<8x128xf32>
    %c0_2 = arith.constant 0 : index
    %c0_3 = arith.constant 0 : index
    %2 = vector.load %arg4[%c0_2, %c0_3] : memref<128x8xf32, #tpu.memory_space<vmem>>, vector<128x8xf32>
    %cst = arith.constant dense<0.000000e+00> : vector<128x128xf32>
    %3 = tpu.matmul %2, %1, %cst {dimension_numbers = #tpu.dot_dimension_numbers<[1], [0], [0], [1], [0, 0, 1, 1], [], []>} : vector<128x8xf32>, vector<8x128xf32>, vector<128x128xf32> -> vector<128x128xf32>
    %c0_4 = arith.constant 0 : index
    %c0_5 = arith.constant 0 : index
    %c0_6 = arith.constant 0 : index
    %4 = vector.load %arg3[%c0_4, %c0_5, %c0_6] : memref<1x128x1xf32, #tpu.memory_space<vmem>>, vector<1x128x1xf32>
    %5 = vector.shape_cast %4 : vector<1x128x1xf32> to vector<128x1xf32>
    %6 = vector.broadcast %5 : vector<128x1xf32> to vector<128x128xf32>
    %7 = arith.addf %3, %6 : vector<128x128xf32>
    %cst_7 = arith.constant 2.000000e-02 : f32
    %8 = vector.broadcast %cst_7 : f32 to vector<128x128xf32>
    %9 = arith.mulf %8, %7 : vector<128x128xf32>
    %10 = arith.maximumf %7, %9 : vector<128x128xf32>
    %c0_8 = arith.constant 0 : index
    %c0_9 = arith.constant 0 : index
    %11 = vector.load %arg5[%c0_8, %c0_9] : memref<128x128xbf16, #tpu.memory_space<vmem>>, vector<128x128xbf16>
    %12 = arith.truncf %10 : vector<128x128xf32> to vector<128x128xbf16>
    %cst_10 = arith.constant dense<0.000000e+00> : vector<128x128xf32>
    %13 = tpu.matmul %11, %12, %cst_10 {dimension_numbers = #tpu.dot_dimension_numbers<[1], [0], [0], [1], [0, 0, 1, 1], [], []>} : vector<128x128xbf16>, vector<128x128xbf16>, vector<128x128xf32> -> vector<128x128xf32>
    %c0_11 = arith.constant 0 : index
    %c0_12 = arith.constant 0 : index
    %14 = vector.load %arg11[%c0_11, %c0_12] : memref<128x1xf32, #tpu.memory_space<vmem>>, vector<128x1xf32>
    %15 = vector.broadcast %14 : vector<128x1xf32> to vector<128x128xf32>
    %16 = arith.addf %13, %15 : vector<128x128xf32>
    %cst_13 = arith.constant 2.000000e-02 : f32
    %17 = vector.broadcast %cst_13 : f32 to vector<128x128xf32>
    %18 = arith.mulf %17, %16 : vector<128x128xf32>
    %19 = arith.maximumf %16, %18 : vector<128x128xf32>
    %c0_14 = arith.constant 0 : index
    %c0_15 = arith.constant 0 : index
    %20 = vector.load %arg6[%c0_14, %c0_15] : memref<128x128xbf16, #tpu.memory_space<vmem>>, vector<128x128xbf16>
    %21 = arith.truncf %19 : vector<128x128xf32> to vector<128x128xbf16>
    %cst_16 = arith.constant dense<0.000000e+00> : vector<128x128xf32>
    %22 = tpu.matmul %20, %21, %cst_16 {dimension_numbers = #tpu.dot_dimension_numbers<[1], [0], [0], [1], [0, 0, 1, 1], [], []>} : vector<128x128xbf16>, vector<128x128xbf16>, vector<128x128xf32> -> vector<128x128xf32>
    %c0_17 = arith.constant 0 : index
    %c0_18 = arith.constant 0 : index
    %23 = vector.load %arg12[%c0_17, %c0_18] : memref<128x1xf32, #tpu.memory_space<vmem>>, vector<128x1xf32>
    %24 = vector.broadcast %23 : vector<128x1xf32> to vector<128x128xf32>
    %25 = arith.addf %22, %24 : vector<128x128xf32>
    %cst_19 = arith.constant 2.000000e-02 : f32
    %26 = vector.broadcast %cst_19 : f32 to vector<128x128xf32>
    %27 = arith.mulf %26, %25 : vector<128x128xf32>
    %28 = arith.maximumf %25, %27 : vector<128x128xf32>
    %c0_20 = arith.constant 0 : index
    %c0_21 = arith.constant 0 : index
    %29 = vector.load %arg7[%c0_20, %c0_21] : memref<64x128xbf16, #tpu.memory_space<vmem>>, vector<64x128xbf16>
    %30 = arith.truncf %28 : vector<128x128xf32> to vector<128x128xbf16>
    %cst_22 = arith.constant dense<0.000000e+00> : vector<64x128xf32>
    %31 = tpu.matmul %29, %30, %cst_22 {dimension_numbers = #tpu.dot_dimension_numbers<[1], [0], [0], [1], [0, 0, 1, 1], [], []>} : vector<64x128xbf16>, vector<128x128xbf16>, vector<64x128xf32> -> vector<64x128xf32>
    %c0_23 = arith.constant 0 : index
    %c0_24 = arith.constant 0 : index
    %32 = vector.load %arg13[%c0_23, %c0_24] : memref<64x1xf32, #tpu.memory_space<vmem>>, vector<64x1xf32>
    %33 = vector.broadcast %32 : vector<64x1xf32> to vector<64x128xf32>
    %34 = arith.addf %31, %33 : vector<64x128xf32>
    %cst_25 = arith.constant 2.000000e-02 : f32
    %35 = vector.broadcast %cst_25 : f32 to vector<64x128xf32>
    %36 = arith.mulf %35, %34 : vector<64x128xf32>
    %37 = arith.maximumf %34, %36 : vector<64x128xf32>
    %c0_26 = arith.constant 0 : index
    %c0_27 = arith.constant 0 : index
    %38 = vector.load %arg8[%c0_26, %c0_27] : memref<32x64xbf16, #tpu.memory_space<vmem>>, vector<32x64xbf16>
    %39 = arith.truncf %37 : vector<64x128xf32> to vector<64x128xbf16>
    %cst_28 = arith.constant dense<0.000000e+00> : vector<32x128xf32>
    %40 = tpu.matmul %38, %39, %cst_28 {dimension_numbers = #tpu.dot_dimension_numbers<[1], [0], [0], [1], [0, 0, 1, 1], [], []>} : vector<32x64xbf16>, vector<64x128xbf16>, vector<32x128xf32> -> vector<32x128xf32>
    %c0_29 = arith.constant 0 : index
    %c0_30 = arith.constant 0 : index
    %41 = vector.load %arg14[%c0_29, %c0_30] : memref<32x1xf32, #tpu.memory_space<vmem>>, vector<32x1xf32>
    %42 = vector.broadcast %41 : vector<32x1xf32> to vector<32x128xf32>
    %43 = arith.addf %40, %42 : vector<32x128xf32>
    %cst_31 = arith.constant 2.000000e-02 : f32
    %44 = vector.broadcast %cst_31 : f32 to vector<32x128xf32>
    %45 = arith.mulf %44, %43 : vector<32x128xf32>
    %46 = arith.maximumf %43, %45 : vector<32x128xf32>
    %c0_32 = arith.constant 0 : index
    %c0_33 = arith.constant 0 : index
    %47 = vector.load %arg9[%c0_32, %c0_33] : memref<16x32xbf16, #tpu.memory_space<vmem>>, vector<16x32xbf16>
    %48 = arith.truncf %46 : vector<32x128xf32> to vector<32x128xbf16>
    %cst_34 = arith.constant dense<0.000000e+00> : vector<16x128xf32>
    %49 = tpu.matmul %47, %48, %cst_34 {dimension_numbers = #tpu.dot_dimension_numbers<[1], [0], [0], [1], [0, 0, 1, 1], [], []>} : vector<16x32xbf16>, vector<32x128xbf16>, vector<16x128xf32> -> vector<16x128xf32>
    %c0_35 = arith.constant 0 : index
    %c0_36 = arith.constant 0 : index
    %50 = vector.load %arg15[%c0_35, %c0_36] : memref<16x1xf32, #tpu.memory_space<vmem>>, vector<16x1xf32>
    %51 = vector.broadcast %50 : vector<16x1xf32> to vector<16x128xf32>
    %52 = arith.addf %49, %51 : vector<16x128xf32>
    %cst_37 = arith.constant 2.000000e-02 : f32
    %53 = vector.broadcast %cst_37 : f32 to vector<16x128xf32>
    %54 = arith.mulf %53, %52 : vector<16x128xf32>
    %55 = arith.maximumf %52, %54 : vector<16x128xf32>
    %c0_38 = arith.constant 0 : index
    %c0_39 = arith.constant 0 : index
    %56 = vector.load %arg10[%c0_38, %c0_39] : memref<16x1xf32, #tpu.memory_space<vmem>>, vector<16x1xf32>
    %57 = vector.broadcast %56 : vector<16x1xf32> to vector<16x128xf32>
    %58 = arith.mulf %55, %57 : vector<16x128xf32>
    %cst_40 = arith.constant dense<0.000000e+00> : vector<128xf32>
    %59 = vector.multi_reduction <add>, %58, %cst_40 [0] : vector<16x128xf32> to vector<128xf32>
    %60 = vector.shape_cast %59 : vector<128xf32> to vector<1x128xf32>
    %c0_41 = arith.constant 0 : index
    %c0_42 = arith.constant 0 : index
    %61 = vector.load %arg16[%c0_41, %c0_42] : memref<1x1xf32, #tpu.memory_space<vmem>>, vector<1x1xf32>
    %62 = vector.broadcast %61 : vector<1x1xf32> to vector<1x128xf32>
    %63 = arith.addf %60, %62 : vector<1x128xf32>
    %cst_43 = arith.constant 0.00999999977 : f32
    %64 = vector.broadcast %cst_43 : f32 to vector<1x128xf32>
    %65 = arith.mulf %63, %64 : vector<1x128xf32>
    %cst_44 = arith.constant 9.900000e-01 : f32
    %66 = vector.broadcast %cst_44 : f32 to vector<1x128xf32>
    %67 = arith.addf %65, %66 : vector<1x128xf32>
    %68 = arith.minimumf %63, %67 : vector<1x128xf32>
    %cst_45 = arith.constant 0.00999999977 : f32
    %69 = vector.broadcast %cst_45 : f32 to vector<1x128xf32>
    %70 = arith.mulf %63, %69 : vector<1x128xf32>
    %71 = arith.maximumf %68, %70 : vector<1x128xf32>
    %72 = vector.shape_cast %71 : vector<1x128xf32> to vector<1x1x1x128xf32>
    %c0_46 = arith.constant 0 : index
    %c0_47 = arith.constant 0 : index
    %c0_48 = arith.constant 0 : index
    %c0_49 = arith.constant 0 : index
    %73 = vector.load %arg17[%c0_46, %c0_47, %c0_48, %c0_49] : memref<1x1x1x128xf32, #tpu.memory_space<vmem>>, vector<1x1x1x128xf32>
    tpu.vector_store %arg17[%c0_46, %c0_47, %c0_48, %c0_49], %72 {strides = array<i32>} : memref<1x1x1x128xf32, #tpu.memory_space<vmem>>, vector<1x1x1x128xf32>,
    return
  }
  func.func @transform_0(%arg0: i32, %arg1: i32) -> (i32, i32, i32) {
    %c0_i32 = arith.constant 0 : i32
    %c0_i32_0 = arith.constant 0 : i32
    return %arg0, %c0_i32, %arg1 : i32, i32, i32
  }
  func.func @transform_1(%arg0: i32, %arg1: i32) -> (i32, i32, i32) {
    %c0_i32 = arith.constant 0 : i32
    %c0_i32_0 = arith.constant 0 : i32
    %c0_i32_1 = arith.constant 0 : i32
    return %arg0, %c0_i32, %c0_i32_0 : i32, i32, i32
  }
  func.func @transform_2(%arg0: i32, %arg1: i32) -> (i32, i32) {
    %c0_i32 = arith.constant 0 : i32
    %c0_i32_0 = arith.constant 0 : i32
    %c0_i32_1 = arith.constant 0 : i32
    return %c0_i32, %c0_i32_0 : i32, i32
  }
  func.func @transform_3(%arg0: i32, %arg1: i32) -> (i32, i32) {
    %c0_i32 = arith.constant 0 : i32
    %c0_i32_0 = arith.constant 0 : i32
    %c0_i32_1 = arith.constant 0 : i32
    return %c0_i32, %c0_i32_0 : i32, i32
  }
  func.func @transform_4(%arg0: i32, %arg1: i32) -> (i32, i32) {
    %c0_i32 = arith.constant 0 : i32
    %c0_i32_0 = arith.constant 0 : i32
    %c0_i32_1 = arith.constant 0 : i32
    return %c0_i32, %c0_i32_0 : i32, i32
  }
  func.func @transform_5(%arg0: i32, %arg1: i32) -> (i32, i32) {
    %c0_i32 = arith.constant 0 : i32
    %c0_i32_0 = arith.constant 0 : i32
    %c0_i32_1 = arith.constant 0 : i32
    return %c0_i32, %c0_i32_0 : i32, i32
  }
  func.func @transform_6(%arg0: i32, %arg1: i32) -> (i32, i32) {
    %c0_i32 = arith.constant 0 : i32
    %c0_i32_0 = arith.constant 0 : i32
    %c0_i32_1 = arith.constant 0 : i32
    return %c0_i32, %c0_i32_0 : i32, i32
  }
  func.func @transform_7(%arg0: i32, %arg1: i32) -> (i32, i32) {
    %c0_i32 = arith.constant 0 : i32
    %c0_i32_0 = arith.constant 0 : i32
    %c0_i32_1 = arith.constant 0 : i32
    return %c0_i32, %c0_i32_0 : i32, i32
  }
  func.func @transform_8(%arg0: i32, %arg1: i32) -> (i32, i32) {
    %c0_i32 = arith.constant 0 : i32
    %c0_i32_0 = arith.constant 0 : i32
    %c0_i32_1 = arith.constant 0 : i32
    return %c0_i32, %c0_i32_0 : i32, i32
  }
  func.func @transform_9(%arg0: i32, %arg1: i32) -> (i32, i32) {
    %c0_i32 = arith.constant 0 : i32
    %c0_i32_0 = arith.constant 0 : i32
    %c0_i32_1 = arith.constant 0 : i32
    return %c0_i32, %c0_i32_0 : i32, i32
  }
  func.func @transform_10(%arg0: i32, %arg1: i32) -> (i32, i32) {
    %c0_i32 = arith.constant 0 : i32
    %c0_i32_0 = arith.constant 0 : i32
    %c0_i32_1 = arith.constant 0 : i32
    return %c0_i32, %c0_i32_0 : i32, i32
  }
  func.func @transform_11(%arg0: i32, %arg1: i32) -> (i32, i32) {
    %c0_i32 = arith.constant 0 : i32
    %c0_i32_0 = arith.constant 0 : i32
    %c0_i32_1 = arith.constant 0 : i32
    return %c0_i32, %c0_i32_0 : i32, i32
  }
  func.func @transform_12(%arg0: i32, %arg1: i32) -> (i32, i32) {
    %c0_i32 = arith.constant 0 : i32
    %c0_i32_0 = arith.constant 0 : i32
    %c0_i32_1 = arith.constant 0 : i32
    return %c0_i32, %c0_i32_0 : i32, i32
  }
  func.func @transform_13(%arg0: i32, %arg1: i32) -> (i32, i32) {
    %c0_i32 = arith.constant 0 : i32
    %c0_i32_0 = arith.constant 0 : i32
    %c0_i32_1 = arith.constant 0 : i32
    return %c0_i32, %c0_i32_0 : i32, i32
  }
  func.func @transform_14(%arg0: i32, %arg1: i32) -> (i32, i32) {
    %c0_i32 = arith.constant 0 : i32
    %c0_i32_0 = arith.constant 0 : i32
    %c0_i32_1 = arith.constant 0 : i32
    return %c0_i32, %c0_i32_0 : i32, i32
  }
  func.func @transform_15(%arg0: i32, %arg1: i32) -> (i32, i32, i32, i32) {
    %c0_i32 = arith.constant 0 : i32
    %c0_i32_0 = arith.constant 0 : i32
    %c0_i32_1 = arith.constant 0 : i32
    return %arg0, %arg1, %c0_i32, %c0_i32_0 : i32, i32, i32, i32
  }
}

module attributes {stable_mosaic.version = 11 : i64} {
  func.func @_generator_kernel(%arg0: i32, %arg1: i32, %arg2: memref<1x8x128xf32, #tpu.memory_space<vmem>>, %arg3: memref<1x128x1xf32, #tpu.memory_space<vmem>>, %arg4: memref<128x8xf32, #tpu.memory_space<vmem>>, %arg5: memref<128x128xbf16, #tpu.memory_space<vmem>>, %arg6: memref<128x128xbf16, #tpu.memory_space<vmem>>, %arg7: memref<64x128xbf16, #tpu.memory_space<vmem>>, %arg8: memref<32x64xbf16, #tpu.memory_space<vmem>>, %arg9: memref<16x32xbf16, #tpu.memory_space<vmem>>, %arg10: memref<16x1xf32, #tpu.memory_space<vmem>>, %arg11: memref<128x1xf32, #tpu.memory_space<vmem>>, %arg12: memref<128x1xf32, #tpu.memory_space<vmem>>, %arg13: memref<64x1xf32, #tpu.memory_space<vmem>>, %arg14: memref<32x1xf32, #tpu.memory_space<vmem>>, %arg15: memref<16x1xf32, #tpu.memory_space<vmem>>, %arg16: memref<1x1xf32, #tpu.memory_space<vmem>>, %arg17: memref<1x1x1x128xf32, #tpu.memory_space<vmem>>) attributes {dimension_semantics = [#tpu.dimension_semantics<parallel>, #tpu.dimension_semantics<parallel>], iteration_bounds = array<i64: 2, 1>, scalar_prefetch = 0 : i64, scratch_operands = 0 : i64, tpu.core_type = #tpu.core_type<tc>, window_params = [{transform_indices = @transform_0, window_bounds = array<i64: 1, 8, 128>}, {transform_indices = @transform_1, window_bounds = array<i64: 1, 128, 1>}, {pipeline_mode = #tpu.pipeline_mode<synchronous>, transform_indices = @transform_2, window_bounds = array<i64: 128, 8>}, {pipeline_mode = #tpu.pipeline_mode<synchronous>, transform_indices = @transform_3, window_bounds = array<i64: 128, 128>}, {pipeline_mode = #tpu.pipeline_mode<synchronous>, transform_indices = @transform_4, window_bounds = array<i64: 128, 128>}, {pipeline_mode = #tpu.pipeline_mode<synchronous>, transform_indices = @transform_5, window_bounds = array<i64: 64, 128>}, {pipeline_mode = #tpu.pipeline_mode<synchronous>, transform_indices = @transform_6, window_bounds = array<i64: 32, 64>}, {pipeline_mode = #tpu.pipeline_mode<synchronous>, transform_indices = @transform_7, window_bounds = array<i64: 16, 32>}, {pipeline_mode = #tpu.pipeline_mode<synchronous>, transform_indices = @transform_8, window_bounds = array<i64: 16, 1>}, {pipeline_mode = #tpu.pipeline_mode<synchronous>, transform_indices = @transform_9, window_bounds = array<i64: 128, 1>}, {pipeline_mode = #tpu.pipeline_mode<synchronous>, transform_indices = @transform_10, window_bounds = array<i64: 128, 1>}, {pipeline_mode = #tpu.pipeline_mode<synchronous>, transform_indices = @transform_11, window_bounds = array<i64: 64, 1>}, {pipeline_mode = #tpu.pipeline_mode<synchronous>, transform_indices = @transform_12, window_bounds = array<i64: 32, 1>}, {pipeline_mode = #tpu.pipeline_mode<synchronous>, transform_indices = @transform_13, window_bounds = array<i64: 16, 1>}, {pipeline_mode = #tpu.pipeline_mode<synchronous>, transform_indices = @transform_14, window_bounds = array<i64: 1, 1>}, {transform_indices = @transform_15, window_bounds = array<i64: 1, 1, 1, 128>}]} {
    %c0 = arith.constant 0 : index
    %c0_0 = arith.constant 0 : index
    %c0_1 = arith.constant 0 : index
    %0 = vector.load %arg2[%c0, %c0_0, %c0_1] : memref<1x8x128xf32, #tpu.memory_space<vmem>>, vector<1x8x128xf32>
    %1 = vector.shape_cast %0 : vector<1x8x128xf32> to vector<8x128xf32>
    %c0_2 = arith.constant 0 : index
    %c0_3 = arith.constant 0 : index
    %2 = vector.load %arg4[%c0_2, %c0_3] : memref<128x8xf32, #tpu.memory_space<vmem>>, vector<128x8xf32>
    %cst = arith.constant dense<0.000000e+00> : vector<128x128xf32>
    %3 = tpu.matmul %2, %1, %cst {dimension_numbers = #tpu.dot_dimension_numbers<[1], [0], [0], [1], [0, 0, 1, 1], [], []>} : vector<128x8xf32>, vector<8x128xf32>, vector<128x128xf32> -> vector<128x128xf32>
    %c0_4 = arith.constant 0 : index
    %c0_5 = arith.constant 0 : index
    %c0_6 = arith.constant 0 : index
    %4 = vector.load %arg3[%c0_4, %c0_5, %c0_6] : memref<1x128x1xf32, #tpu.memory_space<vmem>>, vector<1x128x1xf32>
    %5 = vector.shape_cast %4 : vector<1x128x1xf32> to vector<128x1xf32>
    %6 = vector.broadcast %5 : vector<128x1xf32> to vector<128x128xf32>
    %7 = arith.addf %3, %6 : vector<128x128xf32>
    %cst_7 = arith.constant 2.000000e-02 : f32
    %8 = vector.broadcast %cst_7 : f32 to vector<128x128xf32>
    %9 = arith.mulf %8, %7 : vector<128x128xf32>
    %10 = arith.maximumf %7, %9 : vector<128x128xf32>
    %c0_8 = arith.constant 0 : index
    %c0_9 = arith.constant 0 : index
    %11 = vector.load %arg5[%c0_8, %c0_9] : memref<128x128xbf16, #tpu.memory_space<vmem>>, vector<128x128xbf16>
    %12 = arith.truncf %10 : vector<128x128xf32> to vector<128x128xbf16>
    %cst_10 = arith.constant dense<0.000000e+00> : vector<128x128xf32>
    %13 = tpu.matmul %11, %12, %cst_10 {dimension_numbers = #tpu.dot_dimension_numbers<[1], [0], [0], [1], [0, 0, 1, 1], [], []>} : vector<128x128xbf16>, vector<128x128xbf16>, vector<128x128xf32> -> vector<128x128xf32>
    %c0_11 = arith.constant 0 : index
    %c0_12 = arith.constant 0 : index
    %14 = vector.load %arg11[%c0_11, %c0_12] : memref<128x1xf32, #tpu.memory_space<vmem>>, vector<128x1xf32>
    %15 = vector.broadcast %14 : vector<128x1xf32> to vector<128x128xf32>
    %16 = arith.addf %13, %15 : vector<128x128xf32>
    %cst_13 = arith.constant 2.000000e-02 : f32
    %17 = vector.broadcast %cst_13 : f32 to vector<128x128xf32>
    %18 = arith.mulf %17, %16 : vector<128x128xf32>
    %19 = arith.maximumf %16, %18 : vector<128x128xf32>
    %c0_14 = arith.constant 0 : index
    %c0_15 = arith.constant 0 : index
    %20 = vector.load %arg6[%c0_14, %c0_15] : memref<128x128xbf16, #tpu.memory_space<vmem>>, vector<128x128xbf16>
    %21 = arith.truncf %19 : vector<128x128xf32> to vector<128x128xbf16>
    %cst_16 = arith.constant dense<0.000000e+00> : vector<128x128xf32>
    %22 = tpu.matmul %20, %21, %cst_16 {dimension_numbers = #tpu.dot_dimension_numbers<[1], [0], [0], [1], [0, 0, 1, 1], [], []>} : vector<128x128xbf16>, vector<128x128xbf16>, vector<128x128xf32> -> vector<128x128xf32>
    %c0_17 = arith.constant 0 : index
    %c0_18 = arith.constant 0 : index
    %23 = vector.load %arg12[%c0_17, %c0_18] : memref<128x1xf32, #tpu.memory_space<vmem>>, vector<128x1xf32>
    %24 = vector.broadcast %23 : vector<128x1xf32> to vector<128x128xf32>
    %25 = arith.addf %22, %24 : vector<128x128xf32>
    %cst_19 = arith.constant 2.000000e-02 : f32
    %26 = vector.broadcast %cst_19 : f32 to vector<128x128xf32>
    %27 = arith.mulf %26, %25 : vector<128x128xf32>
    %28 = arith.maximumf %25, %27 : vector<128x128xf32>
    %c0_20 = arith.constant 0 : index
    %c0_21 = arith.constant 0 : index
    %29 = vector.load %arg7[%c0_20, %c0_21] : memref<64x128xbf16, #tpu.memory_space<vmem>>, vector<64x128xbf16>
    %30 = arith.truncf %28 : vector<128x128xf32> to vector<128x128xbf16>
    %cst_22 = arith.constant dense<0.000000e+00> : vector<64x128xf32>
    %31 = tpu.matmul %29, %30, %cst_22 {dimension_numbers = #tpu.dot_dimension_numbers<[1], [0], [0], [1], [0, 0, 1, 1], [], []>} : vector<64x128xbf16>, vector<128x128xbf16>, vector<64x128xf32> -> vector<64x128xf32>
    %c0_23 = arith.constant 0 : index
    %c0_24 = arith.constant 0 : index
    %32 = vector.load %arg13[%c0_23, %c0_24] : memref<64x1xf32, #tpu.memory_space<vmem>>, vector<64x1xf32>
    %33 = vector.broadcast %32 : vector<64x1xf32> to vector<64x128xf32>
    %34 = arith.addf %31, %33 : vector<64x128xf32>
    %cst_25 = arith.constant 2.000000e-02 : f32
    %35 = vector.broadcast %cst_25 : f32 to vector<64x128xf32>
    %36 = arith.mulf %35, %34 : vector<64x128xf32>
    %37 = arith.maximumf %34, %36 : vector<64x128xf32>
    %c0_26 = arith.constant 0 : index
    %c0_27 = arith.constant 0 : index
    %38 = vector.load %arg8[%c0_26, %c0_27] : memref<32x64xbf16, #tpu.memory_space<vmem>>, vector<32x64xbf16>
    %39 = arith.truncf %37 : vector<64x128xf32> to vector<64x128xbf16>
    %cst_28 = arith.constant dense<0.000000e+00> : vector<32x128xf32>
    %40 = tpu.matmul %38, %39, %cst_28 {dimension_numbers = #tpu.dot_dimension_numbers<[1], [0], [0], [1], [0, 0, 1, 1], [], []>} : vector<32x64xbf16>, vector<64x128xbf16>, vector<32x128xf32> -> vector<32x128xf32>
    %c0_29 = arith.constant 0 : index
    %c0_30 = arith.constant 0 : index
    %41 = vector.load %arg14[%c0_29, %c0_30] : memref<32x1xf32, #tpu.memory_space<vmem>>, vector<32x1xf32>
    %42 = vector.broadcast %41 : vector<32x1xf32> to vector<32x128xf32>
    %43 = arith.addf %40, %42 : vector<32x128xf32>
    %cst_31 = arith.constant 2.000000e-02 : f32
    %44 = vector.broadcast %cst_31 : f32 to vector<32x128xf32>
    %45 = arith.mulf %44, %43 : vector<32x128xf32>
    %46 = arith.maximumf %43, %45 : vector<32x128xf32>
    %c0_32 = arith.constant 0 : index
    %c0_33 = arith.constant 0 : index
    %47 = vector.load %arg9[%c0_32, %c0_33] : memref<16x32xbf16, #tpu.memory_space<vmem>>, vector<16x32xbf16>
    %48 = arith.truncf %46 : vector<32x128xf32> to vector<32x128xbf16>
    %cst_34 = arith.constant dense<0.000000e+00> : vector<16x128xf32>
    %49 = tpu.matmul %47, %48, %cst_34 {dimension_numbers = #tpu.dot_dimension_numbers<[1], [0], [0], [1], [0, 0, 1, 1], [], []>} : vector<16x32xbf16>, vector<32x128xbf16>, vector<16x128xf32> -> vector<16x128xf32>
    %c0_35 = arith.constant 0 : index
    %c0_36 = arith.constant 0 : index
    %50 = vector.load %arg15[%c0_35, %c0_36] : memref<16x1xf32, #tpu.memory_space<vmem>>, vector<16x1xf32>
    %51 = vector.broadcast %50 : vector<16x1xf32> to vector<16x128xf32>
    %52 = arith.addf %49, %51 : vector<16x128xf32>
    %cst_37 = arith.constant 2.000000e-02 : f32
    %53 = vector.broadcast %cst_37 : f32 to vector<16x128xf32>
    %54 = arith.mulf %53, %52 : vector<16x128xf32>
    %55 = arith.maximumf %52, %54 : vector<16x128xf32>
    %c0_38 = arith.constant 0 : index
    %c0_39 = arith.constant 0 : index
    %56 = vector.load %arg10[%c0_38, %c0_39] : memref<16x1xf32, #tpu.memory_space<vmem>>, vector<16x1xf32>
    %57 = vector.broadcast %56 : vector<16x1xf32> to vector<16x128xf32>
    %58 = arith.mulf %55, %57 : vector<16x128xf32>
    %cst_40 = arith.constant dense<0.000000e+00> : vector<128xf32>
    %59 = vector.multi_reduction <add>, %58, %cst_40 [0] : vector<16x128xf32> to vector<128xf32>
    %60 = vector.shape_cast %59 : vector<128xf32> to vector<1x128xf32>
    %c0_41 = arith.constant 0 : index
    %c0_42 = arith.constant 0 : index
    %61 = vector.load %arg16[%c0_41, %c0_42] : memref<1x1xf32, #tpu.memory_space<vmem>>, vector<1x1xf32>
    %62 = vector.broadcast %61 : vector<1x1xf32> to vector<1x128xf32>
    %63 = arith.addf %60, %62 : vector<1x128xf32>
    %cst_43 = arith.constant 0.00999999977 : f32
    %64 = vector.broadcast %cst_43 : f32 to vector<1x128xf32>
    %65 = arith.mulf %63, %64 : vector<1x128xf32>
    %cst_44 = arith.constant 9.900000e-01 : f32
    %66 = vector.broadcast %cst_44 : f32 to vector<1x128xf32>
    %67 = arith.addf %65, %66 : vector<1x128xf32>
    %68 = arith.minimumf %63, %67 : vector<1x128xf32>
    %cst_45 = arith.constant 0.00999999977 : f32
    %69 = vector.broadcast %cst_45 : f32 to vector<1x128xf32>
    %70 = arith.mulf %63, %69 : vector<1x128xf32>
    %71 = arith.maximumf %68, %70 : vector<1x128xf32>
    %72 = vector.shape_cast %71 : vector<1x128xf32> to vector<1x1x1x128xf32>
    %c0_46 = arith.constant 0 : index
    %c0_47 = arith.constant 0 : index
    %c0_48 = arith.constant 0 : index
    %c0_49 = arith.constant 0 : index
    %73 = vector.load %arg17[%c0_46, %c0_47, %c0_48, %c0_49] : memref<1x1x1x128xf32, #tpu.memory_space<vmem>>, vector<1x1x1x128xf32>
    tpu.vector_store %arg17[%c0_46, %c0_47, %c0_48, %c0_49], %72 {strides = array<i32>} : memref<1x1x1x128xf32, #tpu.memory_space<vmem>>, vector<1x1x1x128xf32>,
    return
  }
  func.func @transform_0(%arg0: i32, %arg1: i32) -> (i32, i32, i32) {
    %c0_i32 = arith.constant 0 : i32
    %c0_i32_0 = arith.constant 0 : i32
    return %arg0, %c0_i32, %arg1 : i32, i32, i32
  }
  func.func @transform_1(%arg0: i32, %arg1: i32) -> (i32, i32, i32) {
    %c0_i32 = arith.constant 0 : i32
    %c0_i32_0 = arith.constant 0 : i32
    %c0_i32_1 = arith.constant 0 : i32
    return %arg0, %c0_i32, %c0_i32_0 : i32, i32, i32
  }
  func.func @transform_2(%arg0: i32, %arg1: i32) -> (i32, i32) {
    %c0_i32 = arith.constant 0 : i32
    %c0_i32_0 = arith.constant 0 : i32
    %c0_i32_1 = arith.constant 0 : i32
    return %c0_i32, %c0_i32_0 : i32, i32
  }
  func.func @transform_3(%arg0: i32, %arg1: i32) -> (i32, i32) {
    %c0_i32 = arith.constant 0 : i32
    %c0_i32_0 = arith.constant 0 : i32
    %c0_i32_1 = arith.constant 0 : i32
    return %c0_i32, %c0_i32_0 : i32, i32
  }
  func.func @transform_4(%arg0: i32, %arg1: i32) -> (i32, i32) {
    %c0_i32 = arith.constant 0 : i32
    %c0_i32_0 = arith.constant 0 : i32
    %c0_i32_1 = arith.constant 0 : i32
    return %c0_i32, %c0_i32_0 : i32, i32
  }
  func.func @transform_5(%arg0: i32, %arg1: i32) -> (i32, i32) {
    %c0_i32 = arith.constant 0 : i32
    %c0_i32_0 = arith.constant 0 : i32
    %c0_i32_1 = arith.constant 0 : i32
    return %c0_i32, %c0_i32_0 : i32, i32
  }
  func.func @transform_6(%arg0: i32, %arg1: i32) -> (i32, i32) {
    %c0_i32 = arith.constant 0 : i32
    %c0_i32_0 = arith.constant 0 : i32
    %c0_i32_1 = arith.constant 0 : i32
    return %c0_i32, %c0_i32_0 : i32, i32
  }
  func.func @transform_7(%arg0: i32, %arg1: i32) -> (i32, i32) {
    %c0_i32 = arith.constant 0 : i32
    %c0_i32_0 = arith.constant 0 : i32
    %c0_i32_1 = arith.constant 0 : i32
    return %c0_i32, %c0_i32_0 : i32, i32
  }
  func.func @transform_8(%arg0: i32, %arg1: i32) -> (i32, i32) {
    %c0_i32 = arith.constant 0 : i32
    %c0_i32_0 = arith.constant 0 : i32
    %c0_i32_1 = arith.constant 0 : i32
    return %c0_i32, %c0_i32_0 : i32, i32
  }
  func.func @transform_9(%arg0: i32, %arg1: i32) -> (i32, i32) {
    %c0_i32 = arith.constant 0 : i32
    %c0_i32_0 = arith.constant 0 : i32
    %c0_i32_1 = arith.constant 0 : i32
    return %c0_i32, %c0_i32_0 : i32, i32
  }
  func.func @transform_10(%arg0: i32, %arg1: i32) -> (i32, i32) {
    %c0_i32 = arith.constant 0 : i32
    %c0_i32_0 = arith.constant 0 : i32
    %c0_i32_1 = arith.constant 0 : i32
    return %c0_i32, %c0_i32_0 : i32, i32
  }
  func.func @transform_11(%arg0: i32, %arg1: i32) -> (i32, i32) {
    %c0_i32 = arith.constant 0 : i32
    %c0_i32_0 = arith.constant 0 : i32
    %c0_i32_1 = arith.constant 0 : i32
    return %c0_i32, %c0_i32_0 : i32, i32
  }
  func.func @transform_12(%arg0: i32, %arg1: i32) -> (i32, i32) {
    %c0_i32 = arith.constant 0 : i32
    %c0_i32_0 = arith.constant 0 : i32
    %c0_i32_1 = arith.constant 0 : i32
    return %c0_i32, %c0_i32_0 : i32, i32
  }
  func.func @transform_13(%arg0: i32, %arg1: i32) -> (i32, i32) {
    %c0_i32 = arith.constant 0 : i32
    %c0_i32_0 = arith.constant 0 : i32
    %c0_i32_1 = arith.constant 0 : i32
    return %c0_i32, %c0_i32_0 : i32, i32
  }
  func.func @transform_14(%arg0: i32, %arg1: i32) -> (i32, i32) {
    %c0_i32 = arith.constant 0 : i32
    %c0_i32_0 = arith.constant 0 : i32
    %c0_i32_1 = arith.constant 0 : i32
    return %c0_i32, %c0_i32_0 : i32, i32
  }
  func.func @transform_15(%arg0: i32, %arg1: i32) -> (i32, i32, i32, i32) {
    %c0_i32 = arith.constant 0 : i32
    %c0_i32_0 = arith.constant 0 : i32
    %c0_i32_1 = arith.constant 0 : i32
    return %arg0, %arg1, %c0_i32, %c0_i32_0 : i32, i32, i32, i32
  }
}

</mosaic_0001>

<llo_original>
// kernel: tpu_custom_call.1
$region0: #{tpu_custom_call.1}
  #allocation0 [shape = 'u32[]', space=smem, size = 0x4, offset = 0x4, fixed_abs, tag = 'smem constant byte address 0x4 - core index']
  #allocation1 [shape = 'u32[72,128]{1,0:T(1,128)}', space=vmem, size = 0x9000, scoped, tag = 'internal scratch']
  #allocation2 [shape = 'f32[1,1]{1,0:T(1,128)S(1)}', space=vmem, size = 0x200, scoped, tag = 'scoped memory for tpu_custom_call.1']
  %s0 = inlined_call_operand.vmem [shape: f32[2,8,128], index: 0, kind: input, shape index: {}]
  %s1 = inlined_call_operand.vmem [shape: f32[2,128,1], index: 1, kind: input, shape index: {}]
  %s2 = inlined_call_operand.vmem [shape: f32[128,8], index: 2, kind: input, shape index: {}]
  %s3 = inlined_call_operand.vmem [shape: bf16[128,128], index: 3, kind: input, shape index: {}]
  %s4 = inlined_call_operand.vmem [shape: bf16[128,128], index: 4, kind: input, shape index: {}]
  %s5 = inlined_call_operand.vmem [shape: bf16[64,128], index: 5, kind: input, shape index: {}]
  %s6 = inlined_call_operand.vmem [shape: bf16[32,64], index: 6, kind: input, shape index: {}]
  %s7 = inlined_call_operand.vmem [shape: bf16[16,32], index: 7, kind: input, shape index: {}]
  %s8 = inlined_call_operand.vmem [shape: f32[16,1], index: 8, kind: input, shape index: {}]
  %s9 = inlined_call_operand.vmem [shape: f32[128,1], index: 9, kind: input, shape index: {}]
  %s10 = inlined_call_operand.vmem [shape: f32[128,1], index: 10, kind: input, shape index: {}]
  %s11 = inlined_call_operand.vmem [shape: f32[64,1], index: 11, kind: input, shape index: {}]
  %s12 = inlined_call_operand.vmem [shape: f32[32,1], index: 12, kind: input, shape index: {}]
  %s13 = inlined_call_operand.vmem [shape: f32[16,1], index: 13, kind: input, shape index: {}]
  %s14 = inlined_call_operand.<no memory space> [shape: f32[1,1], index: 14, kind: input, shape index: {}]
  %s15 = inlined_call_operand.hbm [shape: f32[2,1,1,128], index: 15, kind: output, shape index: {}]
  %s16 = sld [smem:[#allocation0]]
  $region93: #{tpu_custom_call.1} parent=0
    _
  %s18 = ssub.s32 1, %s16
  %s19 = scalar_select 0, %s18, %s16
  %v20 = vstv %s14
  %21 = vst [vmem:[#allocation2] sm:$0x1] %v20
  $region1: #{tpu_custom_call.1} parent=0
    #allocation3 [shape = 'u8[1024]{0}', space=vmem, size = 0x400, scoped, tag = 'output window, operand 0']
    #allocation4 [shape = 's32[2]{0}', space=sflag, size = 0x8, scoped, tag = 'scoped memory for tpu_custom_call.1']
    %22 = vsyncpa [#allocation4], 0
    %s23 = scalar_lea.sflag [#allocation4], 1
    %24 = vsyncpa %s23, 0
    loop: start=0, step=1, limit=4
    $region2: #{tpu_custom_call.1} parent=1 // loop_pre_header
      _
    $region3: #{tpu_custom_call.1} parent=1 // loop_header
      %s26 = sphi 0, %s30
      %p27 = scmp.ge.s32.totalorder %s26, 4
      %s33 = sphi 0, %s45
      %s34 = sphi 0, %s41
      %s35 = sphi 0, %s33
      %s36 = sphi 0, %s34
      %s37 = sphi 0, %s35
      %s38 = sphi 0, %s36
      %s50 = sphi 0, %s52
      %s53 = sphi 0, %s50
      %s54 = sphi 0, %s53
      %s70 = sphi 0, %s54
      %s76 = sphi 0, %s78
      %s79 = sphi 0, %s76
      %s80 = sphi 0, %s79
      %s96 = sphi 0, %s80
      %s100 = sphi 0, %s100
      %s102 = sphi 0, %s100
      %s103 = sphi 0, %s102
      %s117 = sphi 0, %s103
      %s121 = sphi 0, %s121
      %s123 = sphi 0, %s121
      %s124 = sphi 0, %s123
      %s138 = sphi 0, %s124
      %s142 = sphi 0, %s142
      %s144 = sphi 0, %s142
      %s145 = sphi 0, %s144
      %s159 = sphi 0, %s145
      %s163 = sphi 0, %s163
      %s165 = sphi 0, %s163
      %s166 = sphi 0, %s165
      %s180 = sphi 0, %s166
      %s184 = sphi 0, %s184
      %s186 = sphi 0, %s184
      %s187 = sphi 0, %s186
      %s201 = sphi 0, %s187
      %s205 = sphi 0, %s205
      %s207 = sphi 0, %s205
      %s208 = sphi 0, %s207
      %s222 = sphi 0, %s208
      %s226 = sphi 0, %s226
      %s228 = sphi 0, %s226
      %s229 = sphi 0, %s228
      %s243 = sphi 0, %s229
      %s247 = sphi 0, %s247
      %s249 = sphi 0, %s247
      %s250 = sphi 0, %s249
      %s264 = sphi 0, %s250
      %s268 = sphi 0, %s268
      %s270 = sphi 0, %s268
      %s271 = sphi 0, %s270
      %s285 = sphi 0, %s271
      %s289 = sphi 0, %s289
      %s291 = sphi 0, %s289
      %s292 = sphi 0, %s291
      %s306 = sphi 0, %s292
      %s310 = sphi 0, %s310
      %s312 = sphi 0, %s310
      %s313 = sphi 0, %s312
      %s327 = sphi 0, %s313
      %s331 = sphi 0, %s331
      %s333 = sphi 0, %s331
      %s334 = sphi 0, %s333
      %s348 = sphi 0, %s334
      %s352 = sphi 0, %s352
      %s354 = sphi 0, %s352
      %s355 = sphi 0, %s354
      %s369 = sphi 0, %s355
      %s377 = sphi 0, %s379
      %s380 = sphi 0, %s377
      %s381 = sphi 0, %s380
      %s397 = sphi 0, %s381
    $region4: #{tpu_custom_call.1} parent=1 // loop_header_branch
      %29 = sbr.rel (%p27) target = $region8
    $region5: #{tpu_custom_call.1} parent=1 // loop_body
      %s31 = ssub.s32 %s26, 1
      %s32 = ssub.s32 %s26, 2
      %s39 = sadd.s32 1, %s34
      %p40 = scmp.ge.s32.totalorder %s39, 1
      %s41 = scalar_select %p40, 0, %s39
      %s42 = sadd.s32 1, %s33
      %s43 = scalar_select %p40, %s42, %s33
      %p44 = scmp.ge.s32.totalorder %s43, 2
      %s45 = scalar_select %p44, 0, %s43
      %s46 = ssub.s32 %s33, %s45
      %s47 = ssub.s32 %s34, %s41
      %s48 = sor.u32 %s46, %s47
      %p49 = scmp.eq.s32.totalorder %s48, 0
      %s51 = sadd.s32 %s50, 1
      %s52 = scalar_select %p49, %s50, %s51
      %p55 = pneg %p49
      %p56 = scmp.eq.s32.totalorder %s26, 1
      %p57 = por %p55, %p56
      %p58 = scmp.ne.s32.totalorder %s50, %s53
      %p59 = scmp.eq.s32.totalorder %s26, 0
      %p60 = por %p58, %p59
      %p61 = scmp.ne.s32.totalorder %s50, %s53
      %p62 = scmp.eq.s32.totalorder %s31, 1
      %p63 = por %p61, %p62
      %p64 = scmp.ne.s32.totalorder %s53, %s54
      %p65 = scmp.eq.s32.totalorder %s31, 0
      %p66 = por %p64, %p65
      %p67 = scmp.ne.s32.totalorder %s53, %s54
      %p68 = scmp.eq.s32.totalorder %s32, 1
      %p69 = por %p67, %p68
      %p71 = scmp.ne.s32.totalorder %s54, %s70
      %p72 = scmp.eq.s32.totalorder %s32, 0
      %p73 = por %p71, %p72
      %s74 = ssub.s32 %s33, %s45
      %p75 = scmp.eq.s32.totalorder %s74, 0
      %s77 = sadd.s32 %s76, 1
      %s78 = scalar_select %p75, %s76, %s77
      %p81 = pneg %p75
      %p82 = scmp.eq.s32.totalorder %s26, 1
      %p83 = por %p81, %p82
      %p84 = scmp.ne.s32.totalorder %s76, %s79
      %p85 = scmp.eq.s32.totalorder %s26, 0
      %p86 = por %p84, %p85
      %p87 = scmp.ne.s32.totalorder %s76, %s79
      %p88 = scmp.eq.s32.totalorder %s31, 1
      %p89 = por %p87, %p88
      %p90 = scmp.ne.s32.totalorder %s79, %s80
      %p91 = scmp.eq.s32.totalorder %s31, 0
      %p92 = por %p90, %p91
      %p93 = scmp.ne.s32.totalorder %s79, %s80
      %p94 = scmp.eq.s32.totalorder %s32, 1
      %p95 = por %p93, %p94
      %p97 = scmp.ne.s32.totalorder %s80, %s96
      %p98 = scmp.eq.s32.totalorder %s32, 0
      %p99 = por %p97, %p98
      %s101 = sadd.s32 %s100, 1
      %p104 = scmp.eq.s32.totalorder %s26, 1
      %p105 = scmp.ne.s32.totalorder %s100, %s102
      %p106 = scmp.eq.s32.totalorder %s26, 0
      %p107 = por %p105, %p106
      %p108 = scmp.ne.s32.totalorder %s100, %s102
      %p109 = scmp.eq.s32.totalorder %s31, 1
      %p110 = por %p108, %p109
      %p111 = scmp.ne.s32.totalorder %s102, %s103
      %p112 = scmp.eq.s32.totalorder %s31, 0
      %p113 = por %p111, %p112
      %p114 = scmp.ne.s32.totalorder %s102, %s103
      %p115 = scmp.eq.s32.totalorder %s32, 1
      %p116 = por %p114, %p115
      %p118 = scmp.ne.s32.totalorder %s103, %s117
      %p119 = scmp.eq.s32.totalorder %s32, 0
      %p120 = por %p118, %p119
      %s122 = sadd.s32 %s121, 1
      %p125 = scmp.eq.s32.totalorder %s26, 1
      %p126 = scmp.ne.s32.totalorder %s121, %s123
      %p127 = scmp.eq.s32.totalorder %s26, 0
      %p128 = por %p126, %p127
      %p129 = scmp.ne.s32.totalorder %s121, %s123
      %p130 = scmp.eq.s32.totalorder %s31, 1
      %p131 = por %p129, %p130
      %p132 = scmp.ne.s32.totalorder %s123, %s124
      %p133 = scmp.eq.s32.totalorder %s31, 0
      %p134 = por %p132, %p133
      %p135 = scmp.ne.s32.totalorder %s123, %s124
      %p136 = scmp.eq.s32.totalorder %s32, 1
      %p137 = por %p135, %p136
      %p139 = scmp.ne.s32.totalorder %s124, %s138
      %p140 = scmp.eq.s32.totalorder %s32, 0
      %p141 = por %p139, %p140
      %s143 = sadd.s32 %s142, 1
      %p146 = scmp.eq.s32.totalorder %s26, 1
      %p147 = scmp.ne.s32.totalorder %s142, %s144
      %p148 = scmp.eq.s32.totalorder %s26, 0
      %p149 = por %p147, %p148
      %p150 = scmp.ne.s32.totalorder %s142, %s144
      %p151 = scmp.eq.s32.totalorder %s31, 1
      %p152 = por %p150, %p151
      %p153 = scmp.ne.s32.totalorder %s144, %s145
      %p154 = scmp.eq.s32.totalorder %s31, 0
      %p155 = por %p153, %p154
      %p156 = scmp.ne.s32.totalorder %s144, %s145
      %p157 = scmp.eq.s32.totalorder %s32, 1
      %p158 = por %p156, %p157
      %p160 = scmp.ne.s32.totalorder %s145, %s159
      %p161 = scmp.eq.s32.totalorder %s32, 0
      %p162 = por %p160, %p161
      %s164 = sadd.s32 %s163, 1
      %p167 = scmp.eq.s32.totalorder %s26, 1
      %p168 = scmp.ne.s32.totalorder %s163, %s165
      %p169 = scmp.eq.s32.totalorder %s26, 0
      %p170 = por %p168, %p169
      %p171 = scmp.ne.s32.totalorder %s163, %s165
      %p172 = scmp.eq.s32.totalorder %s31, 1
      %p173 = por %p171, %p172
      %p174 = scmp.ne.s32.totalorder %s165, %s166
      %p175 = scmp.eq.s32.totalorder %s31, 0
      %p176 = por %p174, %p175
      %p177 = scmp.ne.s32.totalorder %s165, %s166
      %p178 = scmp.eq.s32.totalorder %s32, 1
      %p179 = por %p177, %p178
      %p181 = scmp.ne.s32.totalorder %s166, %s180
      %p182 = scmp.eq.s32.totalorder %s32, 0
      %p183 = por %p181, %p182
      %s185 = sadd.s32 %s184, 1
      %p188 = scmp.eq.s32.totalorder %s26, 1
      %p189 = scmp.ne.s32.totalorder %s184, %s186
      %p190 = scmp.eq.s32.totalorder %s26, 0
      %p191 = por %p189, %p190
      %p192 = scmp.ne.s32.totalorder %s184, %s186
      %p193 = scmp.eq.s32.totalorder %s31, 1
      %p194 = por %p192, %p193
      %p195 = scmp.ne.s32.totalorder %s186, %s187
      %p196 = scmp.eq.s32.totalorder %s31, 0
      %p197 = por %p195, %p196
      %p198 = scmp.ne.s32.totalorder %s186, %s187
      %p199 = scmp.eq.s32.totalorder %s32, 1
      %p200 = por %p198, %p199
      %p202 = scmp.ne.s32.totalorder %s187, %s201
      %p203 = scmp.eq.s32.totalorder %s32, 0
      %p204 = por %p202, %p203
      %s206 = sadd.s32 %s205, 1
      %p209 = scmp.eq.s32.totalorder %s26, 1
      %p210 = scmp.ne.s32.totalorder %s205, %s207
      %p211 = scmp.eq.s32.totalorder %s26, 0
      %p212 = por %p210, %p211
      %p213 = scmp.ne.s32.totalorder %s205, %s207
      %p214 = scmp.eq.s32.totalorder %s31, 1
      %p215 = por %p213, %p214
      %p216 = scmp.ne.s32.totalorder %s207, %s208
      %p217 = scmp.eq.s32.totalorder %s31, 0
      %p218 = por %p216, %p217
      %p219 = scmp.ne.s32.totalorder %s207, %s208
      %p220 = scmp.eq.s32.totalorder %s32, 1
      %p221 = por %p219, %p220
      %p223 = scmp.ne.s32.totalorder %s208, %s222
      %p224 = scmp.eq.s32.totalorder %s32, 0
      %p225 = por %p223, %p224
      %s227 = sadd.s32 %s226, 1
      %p230 = scmp.eq.s32.totalorder %s26, 1
      %p231 = scmp.ne.s32.totalorder %s226, %s228
      %p232 = scmp.eq.s32.totalorder %s26, 0
      %p233 = por %p231, %p232
      %p234 = scmp.ne.s32.totalorder %s226, %s228
      %p235 = scmp.eq.s32.totalorder %s31, 1
      %p236 = por %p234, %p235
      %p237 = scmp.ne.s32.totalorder %s228, %s229
      %p238 = scmp.eq.s32.totalorder %s31, 0
      %p239 = por %p237, %p238
      %p240 = scmp.ne.s32.totalorder %s228, %s229
      %p241 = scmp.eq.s32.totalorder %s32, 1
      %p242 = por %p240, %p241
      %p244 = scmp.ne.s32.totalorder %s229, %s243
      %p245 = scmp.eq.s32.totalorder %s32, 0
      %p246 = por %p244, %p245
      %s248 = sadd.s32 %s247, 1
      %p251 = scmp.eq.s32.totalorder %s26, 1
      %p252 = scmp.ne.s32.totalorder %s247, %s249
      %p253 = scmp.eq.s32.totalorder %s26, 0
      %p254 = por %p252, %p253
      %p255 = scmp.ne.s32.totalorder %s247, %s249
      %p256 = scmp.eq.s32.totalorder %s31, 1
      %p257 = por %p255, %p256
      %p258 = scmp.ne.s32.totalorder %s249, %s250
      %p259 = scmp.eq.s32.totalorder %s31, 0
      %p260 = por %p258, %p259
      %p261 = scmp.ne.s32.totalorder %s249, %s250
      %p262 = scmp.eq.s32.totalorder %s32, 1
      %p263 = por %p261, %p262
      %p265 = scmp.ne.s32.totalorder %s250, %s264
      %p266 = scmp.eq.s32.totalorder %s32, 0
      %p267 = por %p265, %p266
      %s269 = sadd.s32 %s268, 1
      %p272 = scmp.eq.s32.totalorder %s26, 1
      %p273 = scmp.ne.s32.totalorder %s268, %s270
      %p274 = scmp.eq.s32.totalorder %s26, 0
      %p275 = por %p273, %p274
      %p276 = scmp.ne.s32.totalorder %s268, %s270
      %p277 = scmp.eq.s32.totalorder %s31, 1
      %p278 = por %p276, %p277
      %p279 = scmp.ne.s32.totalorder %s270, %s271
      %p280 = scmp.eq.s32.totalorder %s31, 0
      %p281 = por %p279, %p280
      %p282 = scmp.ne.s32.totalorder %s270, %s271
      %p283 = scmp.eq.s32.totalorder %s32, 1
      %p284 = por %p282, %p283
      %p286 = scmp.ne.s32.totalorder %s271, %s285
      %p287 = scmp.eq.s32.totalorder %s32, 0
      %p288 = por %p286, %p287
      %s290 = sadd.s32 %s289, 1
      %p293 = scmp.eq.s32.totalorder %s26, 1
      %p294 = scmp.ne.s32.totalorder %s289, %s291
      %p295 = scmp.eq.s32.totalorder %s26, 0
      %p296 = por %p294, %p295
      %p297 = scmp.ne.s32.totalorder %s289, %s291
      %p298 = scmp.eq.s32.totalorder %s31, 1
      %p299 = por %p297, %p298
      %p300 = scmp.ne.s32.totalorder %s291, %s292
      %p301 = scmp.eq.s32.totalorder %s31, 0
      %p302 = por %p300, %p301
      %p303 = scmp.ne.s32.totalorder %s291, %s292
      %p304 = scmp.eq.s32.totalorder %s32, 1
      %p305 = por %p303, %p304
      %p307 = scmp.ne.s32.totalorder %s292, %s306
      %p308 = scmp.eq.s32.totalorder %s32, 0
      %p309 = por %p307, %p308
      %s311 = sadd.s32 %s310, 1
      %p314 = scmp.eq.s32.totalorder %s26, 1
      %p315 = scmp.ne.s32.totalorder %s310, %s312
      %p316 = scmp.eq.s32.totalorder %s26, 0
      %p317 = por %p315, %p316
      %p318 = scmp.ne.s32.totalorder %s310, %s312
      %p319 = scmp.eq.s32.totalorder %s31, 1
      %p320 = por %p318, %p319
      %p321 = scmp.ne.s32.totalorder %s312, %s313
      %p322 = scmp.eq.s32.totalorder %s31, 0
      %p323 = por %p321, %p322
      %p324 = scmp.ne.s32.totalorder %s312, %s313
      %p325 = scmp.eq.s32.totalorder %s32, 1
      %p326 = por %p324, %p325
      %p328 = scmp.ne.s32.totalorder %s313, %s327
      %p329 = scmp.eq.s32.totalorder %s32, 0
      %p330 = por %p328, %p329
      %s332 = sadd.s32 %s331, 1
      %p335 = scmp.eq.s32.totalorder %s26, 1
      %p336 = scmp.ne.s32.totalorder %s331, %s333
      %p337 = scmp.eq.s32.totalorder %s26, 0
      %p338 = por %p336, %p337
      %p339 = scmp.ne.s32.totalorder %s331, %s333
      %p340 = scmp.eq.s32.totalorder %s31, 1
      %p341 = por %p339, %p340
      %p342 = scmp.ne.s32.totalorder %s333, %s334
      %p343 = scmp.eq.s32.totalorder %s31, 0
      %p344 = por %p342, %p343
      %p345 = scmp.ne.s32.totalorder %s333, %s334
      %p346 = scmp.eq.s32.totalorder %s32, 1
      %p347 = por %p345, %p346
      %p349 = scmp.ne.s32.totalorder %s334, %s348
      %p350 = scmp.eq.s32.totalorder %s32, 0
      %p351 = por %p349, %p350
      %s353 = sadd.s32 %s352, 1
      %p356 = scmp.eq.s32.totalorder %s26, 1
      %p357 = scmp.ne.s32.totalorder %s352, %s354
      %p358 = scmp.eq.s32.totalorder %s26, 0
      %p359 = por %p357, %p358
      %p360 = scmp.ne.s32.totalorder %s352, %s354
      %p361 = scmp.eq.s32.totalorder %s31, 1
      %p362 = por %p360, %p361
      %p363 = scmp.ne.s32.totalorder %s354, %s355
      %p364 = scmp.eq.s32.totalorder %s31, 0
      %p365 = por %p363, %p364
      %p366 = scmp.ne.s32.totalorder %s354, %s355
      %p367 = scmp.eq.s32.totalorder %s32, 1
      %p368 = por %p366, %p367
      %p370 = scmp.ne.s32.totalorder %s355, %s369
      %p371 = scmp.eq.s32.totalorder %s32, 0
      %p372 = por %p370, %p371
      %s373 = ssub.s32 %s33, %s45
      %s374 = ssub.s32 %s34, %s41
      %s375 = sor.u32 %s373, %s374
      %p376 = scmp.eq.s32.totalorder %s375, 0
      %s378 = sadd.s32 %s377, 1
      %s379 = scalar_select %p376, %s377, %s378
      %p382 = pneg %p376
      %p383 = scmp.eq.s32.totalorder %s26, 1
      %p384 = por %p382, %p383
      %p385 = scmp.ne.s32.totalorder %s377, %s380
      %p386 = scmp.eq.s32.totalorder %s26, 0
      %p387 = por %p385, %p386
      %p388 = scmp.ne.s32.totalorder %s377, %s380
      %p389 = scmp.eq.s32.totalorder %s31, 1
      %p390 = por %p388, %p389
      %p391 = scmp.ne.s32.totalorder %s380, %s381
      %p392 = scmp.eq.s32.totalorder %s31, 0
      %p393 = por %p391, %p392
      %p394 = scmp.ne.s32.totalorder %s380, %s381
      %p395 = scmp.eq.s32.totalorder %s32, 1
      %p396 = por %p394, %p395
      %p398 = scmp.ne.s32.totalorder %s381, %s397
      %p399 = scmp.eq.s32.totalorder %s32, 0
      %p400 = por %p398, %p399
      %p401 = scmp.le.s32.totalorder 1, %s26
      %p402 = scmp.lt.s32.totalorder %s26, 3
      %p403 = pnand %p401, %p402
      %p404 = pneg %p403
      // Predicated region
      $region9: #{tpu_custom_call.1} parent=5 // pred_check
        _
      $region10: #{tpu_custom_call.1} parent=5 // pred_check_branch
        %406 = sbr.rel (%p403) target = $region12
      $region11: #{tpu_custom_call.1} parent=5 // pred_region
        %s407 = ssub.s32 %s26, 1
        // Predicated region
        $region13: #{tpu_custom_call.1} parent=11 // pred_check
          %p408 = pneg %p113
        $region14: #{tpu_custom_call.1} parent=11 // pred_check_branch
          %410 = sbr.rel (%p408) target = $region16
        $region15: #{tpu_custom_call.1} parent=11 // pred_region
          _
        $region16: #{tpu_custom_call.1} parent=11 // pred_fallthru
          _
        // Predicated region
        $region17: #{tpu_custom_call.1} parent=11 // pred_check
          %p411 = pneg %p134
        $region18: #{tpu_custom_call.1} parent=11 // pred_check_branch
          %413 = sbr.rel (%p411) target = $region20
        $region19: #{tpu_custom_call.1} parent=11 // pred_region
          _
        $region20: #{tpu_custom_call.1} parent=11 // pred_fallthru
          _
        // Predicated region
        $region21: #{tpu_custom_call.1} parent=11 // pred_check
          %p414 = pneg %p155
        $region22: #{tpu_custom_call.1} parent=11 // pred_check_branch
          %416 = sbr.rel (%p414) target = $region24
        $region23: #{tpu_custom_call.1} parent=11 // pred_region
          _
        $region24: #{tpu_custom_call.1} parent=11 // pred_fallthru
          _
        // Predicated region
        $region25: #{tpu_custom_call.1} parent=11 // pred_check
          %p417 = pneg %p176
        $region26: #{tpu_custom_call.1} parent=11 // pred_check_branch
          %419 = sbr.rel (%p417) target = $region28
        $region27: #{tpu_custom_call.1} parent=11 // pred_region
          _
        $region28: #{tpu_custom_call.1} parent=11 // pred_fallthru
          _
        // Predicated region
        $region29: #{tpu_custom_call.1} parent=11 // pred_check
          %p420 = pneg %p197
        $region30: #{tpu_custom_call.1} parent=11 // pred_check_branch
          %422 = sbr.rel (%p420) target = $region32
        $region31: #{tpu_custom_call.1} parent=11 // pred_region
          _
        $region32: #{tpu_custom_call.1} parent=11 // pred_fallthru
          _
        // Predicated region
        $region33: #{tpu_custom_call.1} parent=11 // pred_check
          %p423 = pneg %p218
        $region34: #{tpu_custom_call.1} parent=11 // pred_check_branch
          %425 = sbr.rel (%p423) target = $region36
        $region35: #{tpu_custom_call.1} parent=11 // pred_region
          _
        $region36: #{tpu_custom_call.1} parent=11 // pred_fallthru
          _
        // Predicated region
        $region37: #{tpu_custom_call.1} parent=11 // pred_check
          %p426 = pneg %p239
        $region38: #{tpu_custom_call.1} parent=11 // pred_check_branch
          %428 = sbr.rel (%p426) target = $region40
        $region39: #{tpu_custom_call.1} parent=11 // pred_region
          _
        $region40: #{tpu_custom_call.1} parent=11 // pred_fallthru
          _
        // Predicated region
        $region41: #{tpu_custom_call.1} parent=11 // pred_check
          %p429 = pneg %p260
        $region42: #{tpu_custom_call.1} parent=11 // pred_check_branch
          %431 = sbr.rel (%p429) target = $region44
        $region43: #{tpu_custom_call.1} parent=11 // pred_region
          _
        $region44: #{tpu_custom_call.1} parent=11 // pred_fallthru
          _
        // Predicated region
        $region45: #{tpu_custom_call.1} parent=11 // pred_check
          %p432 = pneg %p281
        $region46: #{tpu_custom_call.1} parent=11 // pred_check_branch
          %434 = sbr.rel (%p432) target = $region48
        $region47: #{tpu_custom_call.1} parent=11 // pred_region
          _
        $region48: #{tpu_custom_call.1} parent=11 // pred_fallthru
          _
        // Predicated region
        $region49: #{tpu_custom_call.1} parent=11 // pred_check
          %p435 = pneg %p302
        $region50: #{tpu_custom_call.1} parent=11 // pred_check_branch
          %437 = sbr.rel (%p435) target = $region52
        $region51: #{tpu_custom_call.1} parent=11 // pred_region
          _
        $region52: #{tpu_custom_call.1} parent=11 // pred_fallthru
          _
        // Predicated region
        $region53: #{tpu_custom_call.1} parent=11 // pred_check
          %p438 = pneg %p323
        $region54: #{tpu_custom_call.1} parent=11 // pred_check_branch
          %440 = sbr.rel (%p438) target = $region56
        $region55: #{tpu_custom_call.1} parent=11 // pred_region
          _
        $region56: #{tpu_custom_call.1} parent=11 // pred_fallthru
          _
        // Predicated region
        $region57: #{tpu_custom_call.1} parent=11 // pred_check
          %p441 = pneg %p344
        $region58: #{tpu_custom_call.1} parent=11 // pred_check_branch
          %443 = sbr.rel (%p441) target = $region60
        $region59: #{tpu_custom_call.1} parent=11 // pred_region
          _
        $region60: #{tpu_custom_call.1} parent=11 // pred_fallthru
          _
        // Predicated region
        $region61: #{tpu_custom_call.1} parent=11 // pred_check
          %p444 = pneg %p365
        $region62: #{tpu_custom_call.1} parent=11 // pred_check_branch
          %446 = sbr.rel (%p444) target = $region64
        $region63: #{tpu_custom_call.1} parent=11 // pred_region
          _
        $region64: #{tpu_custom_call.1} parent=11 // pred_fallthru
          _
      $region12: #{tpu_custom_call.1} parent=5 // pred_fallthru
        _
      %p447 = scmp.lt.s32.totalorder %s26, 2
      // Predicated region
      $region65: #{tpu_custom_call.1} parent=5 // pred_check
        %p448 = pneg %p447
      $region66: #{tpu_custom_call.1} parent=5 // pred_check_branch
        %450 = sbr.rel (%p448) target = $region68
      $region67: #{tpu_custom_call.1} parent=5 // pred_region
        // Predicated region
        $region69: #{tpu_custom_call.1} parent=67 // pred_check
          %p451 = pneg %p60
        $region70: #{tpu_custom_call.1} parent=67 // pred_check_branch
          %453 = sbr.rel (%p451) target = $region72
        $region71: #{tpu_custom_call.1} parent=67 // pred_region
          %p454 = scmp.lt.s32.totalorder %s33, 1
          %s455 = scalar_select %p454, %s33, 1
          %p456 = scmp.lt.s32.totalorder %s34, 0
          %s457 = scalar_select %p456, %s34, 0
          %s458 = sadd.s32 %s457, %s455
          %s459 = smul.addr %s458, 8
          %s460 = scalar_lea.vmem %s0, %s459
        $region72: #{tpu_custom_call.1} parent=67 // pred_fallthru
          _
        // Predicated region
        $region73: #{tpu_custom_call.1} parent=67 // pred_check
          %p461 = pneg %p86
        $region74: #{tpu_custom_call.1} parent=67 // pred_check_branch
          %463 = sbr.rel (%p461) target = $region76
        $region75: #{tpu_custom_call.1} parent=67 // pred_region
          %p464 = scmp.lt.s32.totalorder %s33, 1
          %s465 = scalar_select %p464, %s33, 1
          %s466 = smul.addr %s465, 16
          %s467 = smul.addr %s466, 8
          %s468 = scalar_lea.vmem %s1, %s467
        $region76: #{tpu_custom_call.1} parent=67 // pred_fallthru
          _
      $region68: #{tpu_custom_call.1} parent=5 // pred_fallthru
        _
      %p469 = scmp.le.s32.totalorder 1, %s26
      %p470 = scmp.lt.s32.totalorder %s26, 3
      %p471 = pnand %p469, %p470
      %p472 = pneg %p471
      // Predicated region
      $region77: #{tpu_custom_call.1} parent=5 // pred_check
        _
      $region78: #{tpu_custom_call.1} parent=5 // pred_check_branch
        %474 = sbr.rel (%p471) target = $region80
      $region79: #{tpu_custom_call.1} parent=5 // pred_region
        %s475 = ssub.s32 %s26, 1
        %p476 = scmp.lt.s32.totalorder %s35, 1
        %s477 = scalar_select %p476, %s35, 1
        %p478 = scmp.lt.s32.totalorder %s36, 0
        %s479 = scalar_select %p478, %s36, 0
        %s480 = sadd.s32 %s479, %s477
        %s481 = smul.addr %s480, 8
        %s482 = scalar_lea.vmem %s0, %s481
        %p483 = pneg %p66
        %p484 = pneg %p63
        %p485 = scmp.lt.s32.totalorder %s35, 1
        %s486 = scalar_select %p485, %s35, 1
        %s487 = smul.addr %s486, 16
        %s488 = smul.addr %s487, 8
        %s489 = scalar_lea.vmem %s1, %s488
        %p490 = pneg %p92
        %p491 = pneg %p89
        %p492 = pneg %p113
        %p493 = pneg %p110
        %p494 = pneg %p134
        %p495 = pneg %p131
        %p496 = pneg %p155
        %p497 = pneg %p152
        %p498 = pneg %p176
        %p499 = pneg %p173
        %p500 = pneg %p197
        %p501 = pneg %p194
        %p502 = pneg %p218
        %p503 = pneg %p215
        %p504 = pneg %p239
        %p505 = pneg %p236
        %p506 = pneg %p260
        %p507 = pneg %p257
        %p508 = pneg %p281
        %p509 = pneg %p278
        %p510 = pneg %p302
        %p511 = pneg %p299
        %p512 = pneg %p323
        %p513 = pneg %p320
        %p514 = pneg %p344
        %p515 = pneg %p341
        %p516 = pneg %p365
        %p517 = pneg %p362
        %p518 = pneg %p393
        %p519 = pneg %p390
        %s520 = sand.u32 %s380, 1
        %s521 = scalar_lea.sflag [#allocation4], %s520
        %s522 = sand.u32 %s380, 1
        %s523 = scalar_lea.vmem [#allocation3], %s522
        %p524 = scmp.lt.s32.totalorder %s35, 1
        %s525 = scalar_select %p524, %s35, 1
        %p526 = scmp.lt.s32.totalorder %s36, 0
        %s527 = scalar_select %p526, %s36, 0
        %s528 = sadd.s32 %s527, %s525
        %s529 = smul.addr %s528, 8
        %s530 = scalar_lea.vmem %s0, %s529
        %p531 = scmp.lt.s32.totalorder %s35, 1
        %s532 = scalar_select %p531, %s35, 1
        %s533 = smul.addr %s532, 16
        %s534 = smul.addr %s533, 8
        %s535 = scalar_lea.vmem %s1, %s534
        %v537 = vld [vmem:[%s530] sm:$0xff]
        %v538 = vld [vmem:[%s2] sm:$0xff]
        %v539 = vld [vmem:[%s2 + $0x8] sm:$0xff]
        %v540 = vld [vmem:[%s2 + $0x10] sm:$0xff]
        %v541 = vld [vmem:[%s2 + $0x18] sm:$0xff]
        %v542 = vld [vmem:[%s2 + $0x20] sm:$0xff]
        %v543 = vld [vmem:[%s2 + $0x28] sm:$0xff]
        %v544 = vld [vmem:[%s2 + $0x30] sm:$0xff]
        %v545 = vld [vmem:[%s2 + $0x38] sm:$0xff]
        %v546 = vld [vmem:[%s2 + $0x40] sm:$0xff]
        %v547 = vld [vmem:[%s2 + $0x48] sm:$0xff]
        %v548 = vld [vmem:[%s2 + $0x50] sm:$0xff]
        %v549 = vld [vmem:[%s2 + $0x58] sm:$0xff]
        %v550 = vld [vmem:[%s2 + $0x60] sm:$0xff]
        %v551 = vld [vmem:[%s2 + $0x68] sm:$0xff]
        %v552 = vld [vmem:[%s2 + $0x70] sm:$0xff]
        %v553 = vld [vmem:[%s2 + $0x78] sm:$0xff]
        %v554 = vld [vmem:[%s535] sm:$0xff]
        %v555 = vld [vmem:[%s535 + $0x8] sm:$0xff]
        %v556 = vld [vmem:[%s535 + $0x10] sm:$0xff]
        %v557 = vld [vmem:[%s535 + $0x18] sm:$0xff]
        %v558 = vld [vmem:[%s535 + $0x20] sm:$0xff]
        %v559 = vld [vmem:[%s535 + $0x28] sm:$0xff]
        %v560 = vld [vmem:[%s535 + $0x30] sm:$0xff]
        %v561 = vld [vmem:[%s535 + $0x38] sm:$0xff]
        %v562 = vld [vmem:[%s535 + $0x40] sm:$0xff]
        %v563 = vld [vmem:[%s535 + $0x48] sm:$0xff]
        %v564 = vld [vmem:[%s535 + $0x50] sm:$0xff]
        %v565 = vld [vmem:[%s535 + $0x58] sm:$0xff]
        %v566 = vld [vmem:[%s535 + $0x60] sm:$0xff]
        %v567 = vld [vmem:[%s535 + $0x68] sm:$0xff]
        %v568 = vld [vmem:[%s535 + $0x70] sm:$0xff]
        %v569 = vld [vmem:[%s535 + $0x78] sm:$0xff]
        %571 = vset.pattern.permute.xlu0 0
        %572 = vperm.xlu0 %571, %v554
        %v573 = vpop.permute.xlu0 %572
        %576 = vset.pattern.permute.xlu0 0
        %577 = vperm.xlu0 %576, %v555
        %v578 = vpop.permute.xlu0 %577
        %581 = vset.pattern.permute.xlu0 0
        %582 = vperm.xlu0 %581, %v556
        %v583 = vpop.permute.xlu0 %582
        %586 = vset.pattern.permute.xlu0 0
        %587 = vperm.xlu0 %586, %v557
        %v588 = vpop.permute.xlu0 %587
        %591 = vset.pattern.permute.xlu0 0
        %592 = vperm.xlu0 %591, %v558
        %v593 = vpop.permute.xlu0 %592
        %596 = vset.pattern.permute.xlu0 0
        %597 = vperm.xlu0 %596, %v559
        %v598 = vpop.permute.xlu0 %597
        %601 = vset.pattern.permute.xlu0 0
        %602 = vperm.xlu0 %601, %v560
        %v603 = vpop.permute.xlu0 %602
        %606 = vset.pattern.permute.xlu0 0
        %607 = vperm.xlu0 %606, %v561
        %v608 = vpop.permute.xlu0 %607
        %611 = vset.pattern.permute.xlu0 0
        %612 = vperm.xlu0 %611, %v562
        %v613 = vpop.permute.xlu0 %612
        %616 = vset.pattern.permute.xlu0 0
        %617 = vperm.xlu0 %616, %v563
        %v618 = vpop.permute.xlu0 %617
        %621 = vset.pattern.permute.xlu0 0
        %622 = vperm.xlu0 %621, %v564
        %v623 = vpop.permute.xlu0 %622
        %626 = vset.pattern.permute.xlu0 0
        %627 = vperm.xlu0 %626, %v565
        %v628 = vpop.permute.xlu0 %627
        %631 = vset.pattern.permute.xlu0 0
        %632 = vperm.xlu0 %631, %v566
        %v633 = vpop.permute.xlu0 %632
        %636 = vset.pattern.permute.xlu0 0
        %637 = vperm.xlu0 %636, %v567
        %v638 = vpop.permute.xlu0 %637
        %641 = vset.pattern.permute.xlu0 0
        %642 = vperm.xlu0 %641, %v568
        %v643 = vpop.permute.xlu0 %642
        %646 = vset.pattern.permute.xlu0 0
        %647 = vperm.xlu0 %646, %v569
        %v648 = vpop.permute.xlu0 %647
        %vm650 = vcmask 64512
        %v652 = vsel %vm650, %v538, 0
        %v655 = vsel %vm650, %v539, 0
        %v658 = vsel %vm650, %v540, 0
        %v661 = vsel %vm650, %v541, 0
        %v664 = vsel %vm650, %v542, 0
        %v667 = vsel %vm650, %v543, 0
        %v670 = vsel %vm650, %v544, 0
        %v673 = vsel %vm650, %v545, 0
        %v676 = vsel %vm650, %v546, 0
        %v679 = vsel %vm650, %v547, 0
        %v682 = vsel %vm650, %v548, 0
        %v685 = vsel %vm650, %v549, 0
        %v688 = vsel %vm650, %v550, 0
        %v691 = vsel %vm650, %v551, 0
        %v694 = vsel %vm650, %v552, 0
        %v697 = vsel %vm650, %v553, 0
        %699 = vmatpush.msra.mxu0 0.0
        %700 = vmatpush.msra.mxu0 0.0
        %701 = vmatpush.msra.mxu0 0.0
        %702 = vmatpush.msra.mxu0 0.0
        %703 = vmatpush.msra.mxu0 0.0
        %704 = vmatpush.msra.mxu0 0.0
        %705 = vmatpush.msra.mxu0 0.0
        %706 = vmatpush.msra.mxu0 0.0
        %707 = vmatpush.msra.mxu0 0.0
        %708 = vmatpush.msra.mxu0 0.0
        %709 = vmatpush.msra.mxu0 0.0
        %710 = vmatpush.msra.mxu0 0.0
        %711 = vmatpush.msra.mxu0 0.0
        %712 = vmatpush.msra.mxu0 0.0
        %713 = vmatpush.msra.mxu0 0.0
        %714 = vmatpush.msra.mxu0 %v537
        %715 = vmatmul.f32.gmra.mxu0 %v652
        %v716 = vpop.f32.mrf.mxu0
        %v717 = vadd.f32 %v573, %v716
        %718 = vmatmul.f32.gmra.mxu0 %v655
        %v719 = vpop.f32.mrf.mxu0
        %v720 = vadd.f32 %v578, %v719
        %721 = vmatmul.f32.gmra.mxu0 %v658
        %v722 = vpop.f32.mrf.mxu0
        %v723 = vadd.f32 %v583, %v722
        %724 = vmatmul.f32.gmra.mxu0 %v661
        %v725 = vpop.f32.mrf.mxu0
        %v726 = vadd.f32 %v588, %v725
        %727 = vmatmul.f32.gmra.mxu0 %v664
        %v728 = vpop.f32.mrf.mxu0
        %v729 = vadd.f32 %v593, %v728
        %730 = vmatmul.f32.gmra.mxu0 %v667
        %v731 = vpop.f32.mrf.mxu0
        %v732 = vadd.f32 %v598, %v731
        %733 = vmatmul.f32.gmra.mxu0 %v670
        %v734 = vpop.f32.mrf.mxu0
        %v735 = vadd.f32 %v603, %v734
        %736 = vmatmul.f32.gmra.mxu0 %v673
        %v737 = vpop.f32.mrf.mxu0
        %v738 = vadd.f32 %v608, %v737
        %739 = vmatmul.f32.gmra.mxu0 %v676
        %v740 = vpop.f32.mrf.mxu0
        %v741 = vadd.f32 %v613, %v740
        %742 = vmatmul.f32.gmra.mxu0 %v679
        %v743 = vpop.f32.mrf.mxu0
        %v744 = vadd.f32 %v618, %v743
        %745 = vmatmul.f32.gmra.mxu0 %v682
        %v746 = vpop.f32.mrf.mxu0
        %v747 = vadd.f32 %v623, %v746
        %748 = vmatmul.f32.gmra.mxu0 %v685
        %v749 = vpop.f32.mrf.mxu0
        %v750 = vadd.f32 %v628, %v749
        %751 = vmatmul.f32.gmra.mxu0 %v688
        %v752 = vpop.f32.mrf.mxu0
        %v753 = vadd.f32 %v633, %v752
        %754 = vmatmul.f32.gmra.mxu0 %v691
        %v755 = vpop.f32.mrf.mxu0
        %v756 = vadd.f32 %v638, %v755
        %757 = vmatmul.f32.gmra.mxu0 %v694
        %v758 = vpop.f32.mrf.mxu0
        %v759 = vadd.f32 %v643, %v758
        %760 = vmatmul.f32.gmra.mxu0 %v697
        %v761 = vpop.f32.mrf.mxu0
        %v762 = vadd.f32 %v648, %v761
        %763 = vdwg.mxu0
        %v764 = vmul.f32 %v717, 0.02
        %v765 = vmul.f32 %v720, 0.02
        %v766 = vmul.f32 %v723, 0.02
        %v767 = vmul.f32 %v726, 0.02
        %v768 = vmul.f32 %v729, 0.02
        %v769 = vmul.f32 %v732, 0.02
        %v770 = vmul.f32 %v735, 0.02
        %v771 = vmul.f32 %v738, 0.02
        %v772 = vmul.f32 %v741, 0.02
        %v773 = vmul.f32 %v744, 0.02
        %v774 = vmul.f32 %v747, 0.02
        %v775 = vmul.f32 %v750, 0.02
        %v776 = vmul.f32 %v753, 0.02
        %v777 = vmul.f32 %v756, 0.02
        %v778 = vmul.f32 %v759, 0.02
        %v779 = vmul.f32 %v762, 0.02
        %v780 = vmax.f32 %v717, %v764
        %v781 = vmax.f32 %v720, %v765
        %v782 = vmax.f32 %v723, %v766
        %v783 = vmax.f32 %v726, %v767
        %v784 = vmax.f32 %v729, %v768
        %v785 = vmax.f32 %v732, %v769
        %v786 = vmax.f32 %v735, %v770
        %v787 = vmax.f32 %v738, %v771
        %v788 = vmax.f32 %v741, %v772
        %v789 = vmax.f32 %v744, %v773
        %v790 = vmax.f32 %v747, %v774
        %v791 = vmax.f32 %v750, %v775
        %v792 = vmax.f32 %v753, %v776
        %v793 = vmax.f32 %v756, %v777
        %v794 = vmax.f32 %v759, %v778
        %v795 = vmax.f32 %v762, %v779
        %v796 = vld [vmem:[%s3] sm:$0xf]
        %v797 = vld [vmem:[%s3 + $0x4] sm:$0xf]
        %v798 = vld [vmem:[%s3 + $0x8] sm:$0xf]
        %v799 = vld [vmem:[%s3 + $0xc] sm:$0xf]
        %v800 = vld [vmem:[%s3 + $0x10] sm:$0xf]
        %v801 = vld [vmem:[%s3 + $0x14] sm:$0xf]
        %v802 = vld [vmem:[%s3 + $0x18] sm:$0xf]
        %v803 = vld [vmem:[%s3 + $0x1c] sm:$0xf]
        %v804 = vld [vmem:[%s3 + $0x20] sm:$0xf]
        %v805 = vld [vmem:[%s3 + $0x24] sm:$0xf]
        %v806 = vld [vmem:[%s3 + $0x28] sm:$0xf]
        %v807 = vld [vmem:[%s3 + $0x2c] sm:$0xf]
        %v808 = vld [vmem:[%s3 + $0x30] sm:$0xf]
        %v809 = vld [vmem:[%s3 + $0x34] sm:$0xf]
        %v810 = vld [vmem:[%s3 + $0x38] sm:$0xf]
        %v811 = vld [vmem:[%s3 + $0x3c] sm:$0xf]
        %v812 = vpack.c.bf16 %v781, %v780
        %v813 = vpack.c.bf16 %v783, %v782
        %v814 = vpack.c.bf16 %v785, %v784
        %v815 = vpack.c.bf16 %v787, %v786
        %v816 = vpack.c.bf16 %v789, %v788
        %v817 = vpack.c.bf16 %v791, %v790
        %v818 = vpack.c.bf16 %v793, %v792
        %v819 = vpack.c.bf16 %v795, %v794
        %v820 = vld [vmem:[%s9] sm:$0xff]
        %v821 = vld [vmem:[%s9 + $0x8] sm:$0xff]
        %v822 = vld [vmem:[%s9 + $0x10] sm:$0xff]
        %v823 = vld [vmem:[%s9 + $0x18] sm:$0xff]
        %v824 = vld [vmem:[%s9 + $0x20] sm:$0xff]
        %v825 = vld [vmem:[%s9 + $0x28] sm:$0xff]
        %v826 = vld [vmem:[%s9 + $0x30] sm:$0xff]
        %v827 = vld [vmem:[%s9 + $0x38] sm:$0xff]
        %v828 = vld [vmem:[%s9 + $0x40] sm:$0xff]
        %v829 = vld [vmem:[%s9 + $0x48] sm:$0xff]
        %v830 = vld [vmem:[%s9 + $0x50] sm:$0xff]
        %v831 = vld [vmem:[%s9 + $0x58] sm:$0xff]
        %v832 = vld [vmem:[%s9 + $0x60] sm:$0xff]
        %v833 = vld [vmem:[%s9 + $0x68] sm:$0xff]
        %v834 = vld [vmem:[%s9 + $0x70] sm:$0xff]
        %v835 = vld [vmem:[%s9 + $0x78] sm:$0xff]
        %837 = vset.pattern.permute.xlu0 0
        %838 = vperm.xlu0 %837, %v820
        %v839 = vpop.permute.xlu0 %838
        %842 = vset.pattern.permute.xlu0 0
        %843 = vperm.xlu0 %842, %v821
        %v844 = vpop.permute.xlu0 %843
        %847 = vset.pattern.permute.xlu0 0
        %848 = vperm.xlu0 %847, %v822
        %v849 = vpop.permute.xlu0 %848
        %852 = vset.pattern.permute.xlu0 0
        %853 = vperm.xlu0 %852, %v823
        %v854 = vpop.permute.xlu0 %853
        %857 = vset.pattern.permute.xlu0 0
        %858 = vperm.xlu0 %857, %v824
        %v859 = vpop.permute.xlu0 %858
        %862 = vset.pattern.permute.xlu0 0
        %863 = vperm.xlu0 %862, %v825
        %v864 = vpop.permute.xlu0 %863
        %867 = vset.pattern.permute.xlu0 0
        %868 = vperm.xlu0 %867, %v826
        %v869 = vpop.permute.xlu0 %868
        %872 = vset.pattern.permute.xlu0 0
        %873 = vperm.xlu0 %872, %v827
        %v874 = vpop.permute.xlu0 %873
        %877 = vset.pattern.permute.xlu0 0
        %878 = vperm.xlu0 %877, %v828
        %v879 = vpop.permute.xlu0 %878
        %882 = vset.pattern.permute.xlu0 0
        %883 = vperm.xlu0 %882, %v829
        %v884 = vpop.permute.xlu0 %883
        %887 = vset.pattern.permute.xlu0 0
        %888 = vperm.xlu0 %887, %v830
        %v889 = vpop.permute.xlu0 %888
        %892 = vset.pattern.permute.xlu0 0
        %893 = vperm.xlu0 %892, %v831
        %v894 = vpop.permute.xlu0 %893
        %897 = vset.pattern.permute.xlu0 0
        %898 = vperm.xlu0 %897, %v832
        %v899 = vpop.permute.xlu0 %898
        %902 = vset.pattern.permute.xlu0 0
        %903 = vperm.xlu0 %902, %v833
        %v904 = vpop.permute.xlu0 %903
        %907 = vset.pattern.permute.xlu0 0
        %908 = vperm.xlu0 %907, %v834
        %v909 = vpop.permute.xlu0 %908
        %912 = vset.pattern.permute.xlu0 0
        %913 = vperm.xlu0 %912, %v835
        %v914 = vpop.permute.xlu0 %913
        %v932 = vunpack.c.l.b16 %v796
        %v933 = vunpack.c.l.b16 %v797
        %v934 = vunpack.c.l.b16 %v798
        %v935 = vunpack.c.l.b16 %v799
        %v936 = vunpack.c.l.b16 %v800
        %v937 = vunpack.c.l.b16 %v801
        %v938 = vunpack.c.l.b16 %v802
        %v939 = vunpack.c.l.b16 %v803
        %v940 = vunpack.c.l.b16 %v804
        %v941 = vunpack.c.l.b16 %v805
        %v942 = vunpack.c.l.b16 %v806
        %v943 = vunpack.c.l.b16 %v807
        %v944 = vunpack.c.l.b16 %v808
        %v945 = vunpack.c.l.b16 %v809
        %v946 = vunpack.c.l.b16 %v810
        %v947 = vunpack.c.l.b16 %v811
        %v948 = vpack.c.b16 %v933, %v932
        %v949 = vpack.c.b16 %v935, %v934
        %v950 = vpack.c.b16 %v937, %v936
        %v951 = vpack.c.b16 %v939, %v938
        %v952 = vpack.c.b16 %v941, %v940
        %v953 = vpack.c.b16 %v943, %v942
        %v954 = vpack.c.b16 %v945, %v944
        %v955 = vpack.c.b16 %v947, %v946
        %964 = vmatpush.bf16.msra.mxu0 %v819
        %965 = vmatpush.bf16.msra.mxu0 %v818
        %966 = vmatpush.bf16.msra.mxu0 %v817
        %967 = vmatpush.bf16.msra.mxu0 %v816
        %968 = vmatpush.bf16.msra.mxu0 %v815
        %969 = vmatpush.bf16.msra.mxu0 %v814
        %970 = vmatpush.bf16.msra.mxu0 %v813
        %971 = vmatpush.bf16.msra.mxu0 %v812
        %972 = vmatmul.bf16.gmra.mxu0 %v948
        %v973 = vpop.f32.mrf.mxu0
        %v974 = vadd.f32 %v839, %v973
        %v975 = vpop.f32.mrf.mxu0
        %v976 = vadd.f32 %v844, %v975
        %977 = vmatmul.bf16.gmra.mxu0 %v949
        %v978 = vpop.f32.mrf.mxu0
        %v979 = vadd.f32 %v849, %v978
        %v980 = vpop.f32.mrf.mxu0
        %v981 = vadd.f32 %v854, %v980
        %982 = vmatmul.bf16.gmra.mxu0 %v950
        %v983 = vpop.f32.mrf.mxu0
        %v984 = vadd.f32 %v859, %v983
        %v985 = vpop.f32.mrf.mxu0
        %v986 = vadd.f32 %v864, %v985
        %987 = vmatmul.bf16.gmra.mxu0 %v951
        %v988 = vpop.f32.mrf.mxu0
        %v989 = vadd.f32 %v869, %v988
        %v990 = vpop.f32.mrf.mxu0
        %v991 = vadd.f32 %v874, %v990
        %992 = vmatmul.bf16.gmra.mxu0 %v952
        %v993 = vpop.f32.mrf.mxu0
        %v994 = vadd.f32 %v879, %v993
        %v995 = vpop.f32.mrf.mxu0
        %v996 = vadd.f32 %v884, %v995
        %997 = vmatmul.bf16.gmra.mxu0 %v953
        %v998 = vpop.f32.mrf.mxu0
        %v999 = vadd.f32 %v889, %v998
        %v1000 = vpop.f32.mrf.mxu0
        %v1001 = vadd.f32 %v894, %v1000
        %1002 = vmatmul.bf16.gmra.mxu0 %v954
        %v1003 = vpop.f32.mrf.mxu0
        %v1004 = vadd.f32 %v899, %v1003
        %v1005 = vpop.f32.mrf.mxu0
        %v1006 = vadd.f32 %v904, %v1005
        %1007 = vmatmul.bf16.gmra.mxu0 %v955
        %v1008 = vpop.f32.mrf.mxu0
        %v1009 = vadd.f32 %v909, %v1008
        %v1010 = vpop.f32.mrf.mxu0
        %v1011 = vadd.f32 %v914, %v1010
        %1012 = vdwg.mxu0
        %v1013 = vmul.f32 %v974, 0.02
        %v1014 = vmul.f32 %v976, 0.02
        %v1015 = vmul.f32 %v979, 0.02
        %v1016 = vmul.f32 %v981, 0.02
        %v1017 = vmul.f32 %v984, 0.02
        %v1018 = vmul.f32 %v986, 0.02
        %v1019 = vmul.f32 %v989, 0.02
        %v1020 = vmul.f32 %v991, 0.02
        %v1021 = vmul.f32 %v994, 0.02
        %v1022 = vmul.f32 %v996, 0.02
        %v1023 = vmul.f32 %v999, 0.02
        %v1024 = vmul.f32 %v1001, 0.02
        %v1025 = vmul.f32 %v1004, 0.02
        %v1026 = vmul.f32 %v1006, 0.02
        %v1027 = vmul.f32 %v1009, 0.02
        %v1028 = vmul.f32 %v1011, 0.02
        %v1029 = vmax.f32 %v974, %v1013
        %v1030 = vmax.f32 %v976, %v1014
        %v1031 = vmax.f32 %v979, %v1015
        %v1032 = vmax.f32 %v981, %v1016
        %v1033 = vmax.f32 %v984, %v1017
        %v1034 = vmax.f32 %v986, %v1018
        %v1035 = vmax.f32 %v989, %v1019
        %v1036 = vmax.f32 %v991, %v1020
        %v1037 = vmax.f32 %v994, %v1021
        %v1038 = vmax.f32 %v996, %v1022
        %v1039 = vmax.f32 %v999, %v1023
        %v1040 = vmax.f32 %v1001, %v1024
        %v1041 = vmax.f32 %v1004, %v1025
        %v1042 = vmax.f32 %v1006, %v1026
        %v1043 = vmax.f32 %v1009, %v1027
        %v1044 = vmax.f32 %v1011, %v1028
        %v1045 = vld [vmem:[%s4] sm:$0xf]
        %v1046 = vld [vmem:[%s4 + $0x4] sm:$0xf]
        %v1047 = vld [vmem:[%s4 + $0x8] sm:$0xf]
        %v1048 = vld [vmem:[%s4 + $0xc] sm:$0xf]
        %v1049 = vld [vmem:[%s4 + $0x10] sm:$0xf]
        %v1050 = vld [vmem:[%s4 + $0x14] sm:$0xf]
        %v1051 = vld [vmem:[%s4 + $0x18] sm:$0xf]
        %v1052 = vld [vmem:[%s4 + $0x1c] sm:$0xf]
        %v1053 = vld [vmem:[%s4 + $0x20] sm:$0xf]
        %v1054 = vld [vmem:[%s4 + $0x24] sm:$0xf]
        %v1055 = vld [vmem:[%s4 + $0x28] sm:$0xf]
        %v1056 = vld [vmem:[%s4 + $0x2c] sm:$0xf]
        %v1057 = vld [vmem:[%s4 + $0x30] sm:$0xf]
        %v1058 = vld [vmem:[%s4 + $0x34] sm:$0xf]
        %v1059 = vld [vmem:[%s4 + $0x38] sm:$0xf]
        %v1060 = vld [vmem:[%s4 + $0x3c] sm:$0xf]
        %v1061 = vpack.c.bf16 %v1030, %v1029
        %v1062 = vpack.c.bf16 %v1032, %v1031
        %v1063 = vpack.c.bf16 %v1034, %v1033
        %v1064 = vpack.c.bf16 %v1036, %v1035
        %v1065 = vpack.c.bf16 %v1038, %v1037
        %v1066 = vpack.c.bf16 %v1040, %v1039
        %v1067 = vpack.c.bf16 %v1042, %v1041
        %v1068 = vpack.c.bf16 %v1044, %v1043
        %v1069 = vld [vmem:[%s10] sm:$0xff]
        %v1070 = vld [vmem:[%s10 + $0x8] sm:$0xff]
        %v1071 = vld [vmem:[%s10 + $0x10] sm:$0xff]
        %v1072 = vld [vmem:[%s10 + $0x18] sm:$0xff]
        %v1073 = vld [vmem:[%s10 + $0x20] sm:$0xff]
        %v1074 = vld [vmem:[%s10 + $0x28] sm:$0xff]
        %v1075 = vld [vmem:[%s10 + $0x30] sm:$0xff]
        %v1076 = vld [vmem:[%s10 + $0x38] sm:$0xff]
        %v1077 = vld [vmem:[%s10 + $0x40] sm:$0xff]
        %v1078 = vld [vmem:[%s10 + $0x48] sm:$0xff]
        %v1079 = vld [vmem:[%s10 + $0x50] sm:$0xff]
        %v1080 = vld [vmem:[%s10 + $0x58] sm:$0xff]
        %v1081 = vld [vmem:[%s10 + $0x60] sm:$0xff]
        %v1082 = vld [vmem:[%s10 + $0x68] sm:$0xff]
        %v1083 = vld [vmem:[%s10 + $0x70] sm:$0xff]
        %v1084 = vld [vmem:[%s10 + $0x78] sm:$0xff]
        %1086 = vset.pattern.permute.xlu0 0
        %1087 = vperm.xlu0 %1086, %v1069
        %v1088 = vpop.permute.xlu0 %1087
        %1091 = vset.pattern.permute.xlu0 0
        %1092 = vperm.xlu0 %1091, %v1070
        %v1093 = vpop.permute.xlu0 %1092
        %1096 = vset.pattern.permute.xlu0 0
        %1097 = vperm.xlu0 %1096, %v1071
        %v1098 = vpop.permute.xlu0 %1097
        %1101 = vset.pattern.permute.xlu0 0
        %1102 = vperm.xlu0 %1101, %v1072
        %v1103 = vpop.permute.xlu0 %1102
        %1106 = vset.pattern.permute.xlu0 0
        %1107 = vperm.xlu0 %1106, %v1073
        %v1108 = vpop.permute.xlu0 %1107
        %1111 = vset.pattern.permute.xlu0 0
        %1112 = vperm.xlu0 %1111, %v1074
        %v1113 = vpop.permute.xlu0 %1112
        %1116 = vset.pattern.permute.xlu0 0
        %1117 = vperm.xlu0 %1116, %v1075
        %v1118 = vpop.permute.xlu0 %1117
        %1121 = vset.pattern.permute.xlu0 0
        %1122 = vperm.xlu0 %1121, %v1076
        %v1123 = vpop.permute.xlu0 %1122
        %1126 = vset.pattern.permute.xlu0 0
        %1127 = vperm.xlu0 %1126, %v1077
        %v1128 = vpop.permute.xlu0 %1127
        %1131 = vset.pattern.permute.xlu0 0
        %1132 = vperm.xlu0 %1131, %v1078
        %v1133 = vpop.permute.xlu0 %1132
        %1136 = vset.pattern.permute.xlu0 0
        %1137 = vperm.xlu0 %1136, %v1079
        %v1138 = vpop.permute.xlu0 %1137
        %1141 = vset.pattern.permute.xlu0 0
        %1142 = vperm.xlu0 %1141, %v1080
        %v1143 = vpop.permute.xlu0 %1142
        %1146 = vset.pattern.permute.xlu0 0
        %1147 = vperm.xlu0 %1146, %v1081
        %v1148 = vpop.permute.xlu0 %1147
        %1151 = vset.pattern.permute.xlu0 0
        %1152 = vperm.xlu0 %1151, %v1082
        %v1153 = vpop.permute.xlu0 %1152
        %1156 = vset.pattern.permute.xlu0 0
        %1157 = vperm.xlu0 %1156, %v1083
        %v1158 = vpop.permute.xlu0 %1157
        %1161 = vset.pattern.permute.xlu0 0
        %1162 = vperm.xlu0 %1161, %v1084
        %v1163 = vpop.permute.xlu0 %1162
        %v1181 = vunpack.c.l.b16 %v1045
        %v1182 = vunpack.c.l.b16 %v1046
        %v1183 = vunpack.c.l.b16 %v1047
        %v1184 = vunpack.c.l.b16 %v1048
        %v1185 = vunpack.c.l.b16 %v1049
        %v1186 = vunpack.c.l.b16 %v1050
        %v1187 = vunpack.c.l.b16 %v1051
        %v1188 = vunpack.c.l.b16 %v1052
        %v1189 = vunpack.c.l.b16 %v1053
        %v1190 = vunpack.c.l.b16 %v1054
        %v1191 = vunpack.c.l.b16 %v1055
        %v1192 = vunpack.c.l.b16 %v1056
        %v1193 = vunpack.c.l.b16 %v1057
        %v1194 = vunpack.c.l.b16 %v1058
        %v1195 = vunpack.c.l.b16 %v1059
        %v1196 = vunpack.c.l.b16 %v1060
        %v1197 = vpack.c.b16 %v1182, %v1181
        %v1198 = vpack.c.b16 %v1184, %v1183
        %v1199 = vpack.c.b16 %v1186, %v1185
        %v1200 = vpack.c.b16 %v1188, %v1187
        %v1201 = vpack.c.b16 %v1190, %v1189
        %v1202 = vpack.c.b16 %v1192, %v1191
        %v1203 = vpack.c.b16 %v1194, %v1193
        %v1204 = vpack.c.b16 %v1196, %v1195
        %1213 = vmatpush.bf16.msra.mxu0 %v1068
        %1214 = vmatpush.bf16.msra.mxu0 %v1067
        %1215 = vmatpush.bf16.msra.mxu0 %v1066
        %1216 = vmatpush.bf16.msra.mxu0 %v1065
        %1217 = vmatpush.bf16.msra.mxu0 %v1064
        %1218 = vmatpush.bf16.msra.mxu0 %v1063
        %1219 = vmatpush.bf16.msra.mxu0 %v1062
        %1220 = vmatpush.bf16.msra.mxu0 %v1061
        %1221 = vmatmul.bf16.gmra.mxu0 %v1197
        %v1222 = vpop.f32.mrf.mxu0
        %v1223 = vadd.f32 %v1088, %v1222
        %v1224 = vpop.f32.mrf.mxu0
        %v1225 = vadd.f32 %v1093, %v1224
        %1226 = vmatmul.bf16.gmra.mxu0 %v1198
        %v1227 = vpop.f32.mrf.mxu0
        %v1228 = vadd.f32 %v1098, %v1227
        %v1229 = vpop.f32.mrf.mxu0
        %v1230 = vadd.f32 %v1103, %v1229
        %1231 = vmatmul.bf16.gmra.mxu0 %v1199
        %v1232 = vpop.f32.mrf.mxu0
        %v1233 = vadd.f32 %v1108, %v1232
        %v1234 = vpop.f32.mrf.mxu0
        %v1235 = vadd.f32 %v1113, %v1234
        %1236 = vmatmul.bf16.gmra.mxu0 %v1200
        %v1237 = vpop.f32.mrf.mxu0
        %v1238 = vadd.f32 %v1118, %v1237
        %v1239 = vpop.f32.mrf.mxu0
        %v1240 = vadd.f32 %v1123, %v1239
        %1241 = vmatmul.bf16.gmra.mxu0 %v1201
        %v1242 = vpop.f32.mrf.mxu0
        %v1243 = vadd.f32 %v1128, %v1242
        %v1244 = vpop.f32.mrf.mxu0
        %v1245 = vadd.f32 %v1133, %v1244
        %1246 = vmatmul.bf16.gmra.mxu0 %v1202
        %v1247 = vpop.f32.mrf.mxu0
        %v1248 = vadd.f32 %v1138, %v1247
        %v1249 = vpop.f32.mrf.mxu0
        %v1250 = vadd.f32 %v1143, %v1249
        %1251 = vmatmul.bf16.gmra.mxu0 %v1203
        %v1252 = vpop.f32.mrf.mxu0
        %v1253 = vadd.f32 %v1148, %v1252
        %v1254 = vpop.f32.mrf.mxu0
        %v1255 = vadd.f32 %v1153, %v1254
        %1256 = vmatmul.bf16.gmra.mxu0 %v1204
        %v1257 = vpop.f32.mrf.mxu0
        %v1258 = vadd.f32 %v1158, %v1257
        %v1259 = vpop.f32.mrf.mxu0
        %v1260 = vadd.f32 %v1163, %v1259
        %1261 = vdwg.mxu0
        %v1262 = vmul.f32 %v1223, 0.02
        %v1263 = vmul.f32 %v1225, 0.02
        %v1264 = vmul.f32 %v1228, 0.02
        %v1265 = vmul.f32 %v1230, 0.02
        %v1266 = vmul.f32 %v1233, 0.02
        %v1267 = vmul.f32 %v1235, 0.02
        %v1268 = vmul.f32 %v1238, 0.02
        %v1269 = vmul.f32 %v1240, 0.02
        %v1270 = vmul.f32 %v1243, 0.02
        %v1271 = vmul.f32 %v1245, 0.02
        %v1272 = vmul.f32 %v1248, 0.02
        %v1273 = vmul.f32 %v1250, 0.02
        %v1274 = vmul.f32 %v1253, 0.02
        %v1275 = vmul.f32 %v1255, 0.02
        %v1276 = vmul.f32 %v1258, 0.02
        %v1277 = vmul.f32 %v1260, 0.02
        %v1278 = vmax.f32 %v1223, %v1262
        %v1279 = vmax.f32 %v1225, %v1263
        %v1280 = vmax.f32 %v1228, %v1264
        %v1281 = vmax.f32 %v1230, %v1265
        %v1282 = vmax.f32 %v1233, %v1266
        %v1283 = vmax.f32 %v1235, %v1267
        %v1284 = vmax.f32 %v1238, %v1268
        %v1285 = vmax.f32 %v1240, %v1269
        %v1286 = vmax.f32 %v1243, %v1270
        %v1287 = vmax.f32 %v1245, %v1271
        %v1288 = vmax.f32 %v1248, %v1272
        %v1289 = vmax.f32 %v1250, %v1273
        %v1290 = vmax.f32 %v1253, %v1274
        %v1291 = vmax.f32 %v1255, %v1275
        %v1292 = vmax.f32 %v1258, %v1276
        %v1293 = vmax.f32 %v1260, %v1277
        %v1294 = vld [vmem:[%s5] sm:$0xf]
        %v1295 = vld [vmem:[%s5 + $0x4] sm:$0xf]
        %v1296 = vld [vmem:[%s5 + $0x8] sm:$0xf]
        %v1297 = vld [vmem:[%s5 + $0xc] sm:$0xf]
        %v1298 = vld [vmem:[%s5 + $0x10] sm:$0xf]
        %v1299 = vld [vmem:[%s5 + $0x14] sm:$0xf]
        %v1300 = vld [vmem:[%s5 + $0x18] sm:$0xf]
        %v1301 = vld [vmem:[%s5 + $0x1c] sm:$0xf]
        %v1302 = vpack.c.bf16 %v1279, %v1278
        %v1303 = vpack.c.bf16 %v1281, %v1280
        %v1304 = vpack.c.bf16 %v1283, %v1282
        %v1305 = vpack.c.bf16 %v1285, %v1284
        %v1306 = vpack.c.bf16 %v1287, %v1286
        %v1307 = vpack.c.bf16 %v1289, %v1288
        %v1308 = vpack.c.bf16 %v1291, %v1290
        %v1309 = vpack.c.bf16 %v1293, %v1292
        %v1310 = vld [vmem:[%s11] sm:$0xff]
        %v1311 = vld [vmem:[%s11 + $0x8] sm:$0xff]
        %v1312 = vld [vmem:[%s11 + $0x10] sm:$0xff]
        %v1313 = vld [vmem:[%s11 + $0x18] sm:$0xff]
        %v1314 = vld [vmem:[%s11 + $0x20] sm:$0xff]
        %v1315 = vld [vmem:[%s11 + $0x28] sm:$0xff]
        %v1316 = vld [vmem:[%s11 + $0x30] sm:$0xff]
        %v1317 = vld [vmem:[%s11 + $0x38] sm:$0xff]
        %1319 = vset.pattern.permute.xlu0 0
        %1320 = vperm.xlu0 %1319, %v1310
        %v1321 = vpop.permute.xlu0 %1320
        %1324 = vset.pattern.permute.xlu0 0
        %1325 = vperm.xlu0 %1324, %v1311
        %v1326 = vpop.permute.xlu0 %1325
        %1329 = vset.pattern.permute.xlu0 0
        %1330 = vperm.xlu0 %1329, %v1312
        %v1331 = vpop.permute.xlu0 %1330
        %1334 = vset.pattern.permute.xlu0 0
        %1335 = vperm.xlu0 %1334, %v1313
        %v1336 = vpop.permute.xlu0 %1335
        %1339 = vset.pattern.permute.xlu0 0
        %1340 = vperm.xlu0 %1339, %v1314
        %v1341 = vpop.permute.xlu0 %1340
        %1344 = vset.pattern.permute.xlu0 0
        %1345 = vperm.xlu0 %1344, %v1315
        %v1346 = vpop.permute.xlu0 %1345
        %1349 = vset.pattern.permute.xlu0 0
        %1350 = vperm.xlu0 %1349, %v1316
        %v1351 = vpop.permute.xlu0 %1350
        %1354 = vset.pattern.permute.xlu0 0
        %1355 = vperm.xlu0 %1354, %v1317
        %v1356 = vpop.permute.xlu0 %1355
        %v1366 = vunpack.c.l.b16 %v1294
        %v1367 = vunpack.c.l.b16 %v1295
        %v1368 = vunpack.c.l.b16 %v1296
        %v1369 = vunpack.c.l.b16 %v1297
        %v1370 = vunpack.c.l.b16 %v1298
        %v1371 = vunpack.c.l.b16 %v1299
        %v1372 = vunpack.c.l.b16 %v1300
        %v1373 = vunpack.c.l.b16 %v1301
        %v1374 = vpack.c.b16 %v1367, %v1366
        %v1375 = vpack.c.b16 %v1369, %v1368
        %v1376 = vpack.c.b16 %v1371, %v1370
        %v1377 = vpack.c.b16 %v1373, %v1372
        %1382 = vmatpush.bf16.msra.mxu0 %v1309
        %1383 = vmatpush.bf16.msra.mxu0 %v1308
        %1384 = vmatpush.bf16.msra.mxu0 %v1307
        %1385 = vmatpush.bf16.msra.mxu0 %v1306
        %1386 = vmatpush.bf16.msra.mxu0 %v1305
        %1387 = vmatpush.bf16.msra.mxu0 %v1304
        %1388 = vmatpush.bf16.msra.mxu0 %v1303
        %1389 = vmatpush.bf16.msra.mxu0 %v1302
        %1390 = vmatmul.bf16.gmra.mxu0 %v1374
        %v1391 = vpop.f32.mrf.mxu0
        %v1392 = vadd.f32 %v1321, %v1391
        %v1393 = vpop.f32.mrf.mxu0
        %v1394 = vadd.f32 %v1326, %v1393
        %1395 = vmatmul.bf16.gmra.mxu0 %v1375
        %v1396 = vpop.f32.mrf.mxu0
        %v1397 = vadd.f32 %v1331, %v1396
        %v1398 = vpop.f32.mrf.mxu0
        %v1399 = vadd.f32 %v1336, %v1398
        %1400 = vmatmul.bf16.gmra.mxu0 %v1376
        %v1401 = vpop.f32.mrf.mxu0
        %v1402 = vadd.f32 %v1341, %v1401
        %v1403 = vpop.f32.mrf.mxu0
        %v1404 = vadd.f32 %v1346, %v1403
        %1405 = vmatmul.bf16.gmra.mxu0 %v1377
        %v1406 = vpop.f32.mrf.mxu0
        %v1407 = vadd.f32 %v1351, %v1406
        %v1408 = vpop.f32.mrf.mxu0
        %v1409 = vadd.f32 %v1356, %v1408
        %1410 = vdwg.mxu0
        %v1411 = vmul.f32 %v1392, 0.02
        %v1412 = vmul.f32 %v1394, 0.02
        %v1413 = vmul.f32 %v1397, 0.02
        %v1414 = vmul.f32 %v1399, 0.02
        %v1415 = vmul.f32 %v1402, 0.02
        %v1416 = vmul.f32 %v1404, 0.02
        %v1417 = vmul.f32 %v1407, 0.02
        %v1418 = vmul.f32 %v1409, 0.02
        %v1419 = vmax.f32 %v1392, %v1411
        %v1420 = vmax.f32 %v1394, %v1412
        %v1421 = vmax.f32 %v1397, %v1413
        %v1422 = vmax.f32 %v1399, %v1414
        %v1423 = vmax.f32 %v1402, %v1415
        %v1424 = vmax.f32 %v1404, %v1416
        %v1425 = vmax.f32 %v1407, %v1417
        %v1426 = vmax.f32 %v1409, %v1418
        %v1427 = vld [vmem:[%s6] sm:$0xf]
        %v1428 = vld [vmem:[%s6 + $0x4] sm:$0xf]
        %v1429 = vld [vmem:[%s6 + $0x8] sm:$0xf]
        %v1430 = vld [vmem:[%s6 + $0xc] sm:$0xf]
        %v1431 = vpack.c.bf16 %v1420, %v1419
        %v1432 = vpack.c.bf16 %v1422, %v1421
        %v1433 = vpack.c.bf16 %v1424, %v1423
        %v1434 = vpack.c.bf16 %v1426, %v1425
        %v1435 = vld [vmem:[%s12] sm:$0xff]
        %v1436 = vld [vmem:[%s12 + $0x8] sm:$0xff]
        %v1437 = vld [vmem:[%s12 + $0x10] sm:$0xff]
        %v1438 = vld [vmem:[%s12 + $0x18] sm:$0xff]
        %1440 = vset.pattern.permute.xlu0 0
        %1441 = vperm.xlu0 %1440, %v1435
        %v1442 = vpop.permute.xlu0 %1441
        %1445 = vset.pattern.permute.xlu0 0
        %1446 = vperm.xlu0 %1445, %v1436
        %v1447 = vpop.permute.xlu0 %1446
        %1450 = vset.pattern.permute.xlu0 0
        %1451 = vperm.xlu0 %1450, %v1437
        %v1452 = vpop.permute.xlu0 %1451
        %1455 = vset.pattern.permute.xlu0 0
        %1456 = vperm.xlu0 %1455, %v1438
        %v1457 = vpop.permute.xlu0 %1456
        %v1463 = vunpack.c.l.b16 %v1427
        %v1464 = vunpack.c.l.b16 %v1428
        %v1465 = vunpack.c.l.b16 %v1429
        %v1466 = vunpack.c.l.b16 %v1430
        %v1467 = vpack.c.b16 %v1464, %v1463
        %v1468 = vpack.c.b16 %v1466, %v1465
        %vm1469 = vcmask 523264
        %v1471 = vsel %vm1469, %v1467, 0
        %v1474 = vsel %vm1469, %v1468, 0
        %1476 = vmatpush.bf16.msra.mxu0 0
        %1477 = vmatpush.bf16.msra.mxu0 0
        %1478 = vmatpush.bf16.msra.mxu0 0
        %1479 = vmatpush.bf16.msra.mxu0 0
        %1480 = vmatpush.bf16.msra.mxu0 %v1434
        %1481 = vmatpush.bf16.msra.mxu0 %v1433
        %1482 = vmatpush.bf16.msra.mxu0 %v1432
        %1483 = vmatpush.bf16.msra.mxu0 %v1431
        %1484 = vmatmul.bf16.gmra.mxu0 %v1471
        %v1485 = vpop.f32.mrf.mxu0
        %v1486 = vadd.f32 %v1442, %v1485
        %v1487 = vpop.f32.mrf.mxu0
        %v1488 = vadd.f32 %v1447, %v1487
        %1489 = vmatmul.bf16.gmra.mxu0 %v1474
        %v1490 = vpop.f32.mrf.mxu0
        %v1491 = vadd.f32 %v1452, %v1490
        %v1492 = vpop.f32.mrf.mxu0
        %v1493 = vadd.f32 %v1457, %v1492
        %1494 = vdwg.mxu0
        %v1495 = vmul.f32 %v1486, 0.02
        %v1496 = vmul.f32 %v1488, 0.02
        %v1497 = vmul.f32 %v1491, 0.02
        %v1498 = vmul.f32 %v1493, 0.02
        %v1499 = vmax.f32 %v1486, %v1495
        %v1500 = vmax.f32 %v1488, %v1496
        %v1501 = vmax.f32 %v1491, %v1497
        %v1502 = vmax.f32 %v1493, %v1498
        %v1503 = vld [vmem:[%s7] sm:$0xf]
        %v1504 = vld [vmem:[%s7 + $0x4] sm:$0xf]
        %v1505 = vpack.c.bf16 %v1500, %v1499
        %v1506 = vpack.c.bf16 %v1502, %v1501
        %v1507 = vld [vmem:[%s13] sm:$0xff]
        %v1508 = vld [vmem:[%s13 + $0x8] sm:$0xff]
        %1510 = vset.pattern.permute.xlu0 0
        %1511 = vperm.xlu0 %1510, %v1507
        %v1512 = vpop.permute.xlu0 %1511
        %1515 = vset.pattern.permute.xlu0 0
        %1516 = vperm.xlu0 %1515, %v1508
        %v1517 = vpop.permute.xlu0 %1516
        %v1521 = vunpack.c.l.b16 %v1503
        %v1522 = vunpack.c.l.b16 %v1504
        %v1523 = vpack.c.b16 %v1522, %v1521
        %vm1524 = vcmask 261120
        %v1526 = vsel %vm1524, %v1523, 0
        %1528 = vmatpush.bf16.msra.mxu0 0
        %1529 = vmatpush.bf16.msra.mxu0 0
        %1530 = vmatpush.bf16.msra.mxu0 0
        %1531 = vmatpush.bf16.msra.mxu0 0
        %1532 = vmatpush.bf16.msra.mxu0 0
        %1533 = vmatpush.bf16.msra.mxu0 0
        %1534 = vmatpush.bf16.msra.mxu0 %v1506
        %1535 = vmatpush.bf16.msra.mxu0 %v1505
        %1536 = vmatmul.bf16.gmra.mxu0 %v1526
        %v1537 = vpop.f32.mrf.mxu0
        %v1538 = vadd.f32 %v1512, %v1537
        %v1539 = vpop.f32.mrf.mxu0
        %v1540 = vadd.f32 %v1517, %v1539
        %1541 = vdwg.mxu0
        %v1542 = vmul.f32 %v1538, 0.02
        %v1543 = vmul.f32 %v1540, 0.02
        %v1544 = vmax.f32 %v1538, %v1542
        %v1545 = vmax.f32 %v1540, %v1543
        %v1546 = vld [vmem:[%s8] sm:$0xff]
        %v1547 = vld [vmem:[%s8 + $0x8] sm:$0xff]
        %1549 = vset.pattern.permute.xlu0 0
        %1550 = vperm.xlu0 %1549, %v1546
        %v1551 = vpop.permute.xlu0 %1550
        %1554 = vset.pattern.permute.xlu0 0
        %1555 = vperm.xlu0 %1554, %v1547
        %v1556 = vpop.permute.xlu0 %1555
        %v1558 = vmul.f32 %v1544, %v1551
        %v1559 = vmul.f32 %v1545, %v1556
        %v1560 = vadd.f32 %v1558, %v1559
        %v1561 = vrot.slane %v1560, 4
        %v1562 = vadd.f32 %v1560, %v1561
        %v1563 = vrot.slane %v1562, 2
        %v1564 = vadd.f32 %v1562, %v1563
        %v1565 = vrot.slane %v1564, 1
        %v1566 = vadd.f32 %v1564, %v1565
        %v1567 = vld [vmem:[#allocation2] sm:$0x1]
        %1569 = vset.pattern.permute.xlu0 0
        %1570 = vperm.xlu0 %1569, %v1567
        %v1571 = vpop.permute.xlu0 %1570
        %v1573 = vperm.slane %v1571, 0
        %v1574 = vadd.f32 %v1566, %v1573
        %v1575 = vmul.f32 %v1574, 0.01
        %v1576 = vadd.f32 %v1575, 0.99
        %v1577 = vmin.f32 %v1574, %v1576
        %v1578 = vmax.f32 %v1577, %v1575
        %1579 = vst [vmem:[%s523] sm:$0x1] %v1578
        %s1580 = sand.u32 %s380, 1
        %s1581 = scalar_lea.sflag [#allocation4], %s1580
        %s1582 = sand.u32 %s380, 1
        %s1583 = scalar_lea.vmem [#allocation3], %s1582
        // Predicated region
        $region81: #{tpu_custom_call.1} parent=79 // pred_check
          %p1584 = pneg %p390
        $region82: #{tpu_custom_call.1} parent=79 // pred_check_branch
          %1586 = sbr.rel (%p1584) target = $region84
        $region83: #{tpu_custom_call.1} parent=79 // pred_region
          %1588 = vsyncadd %s1581, 0
          %s1589 = sadd.s32 %s36, %s35
          %s1590 = scalar_lea.hbm %s15, %s1589
          %s1592 = sshll.u32 %s1583, 4
          %s1593 = int_to_ptr.vmem [resolvable:$true] %s1592
          %s1594 = sshll.u32 %s1590, 4
          %s1595 = int_to_ptr.hbm [resolvable:$true] %s1594
          %1597 = dma.vmem_to_hbm [thread:$0]  %s1593, 16, %s1595, %s1581
        $region84: #{tpu_custom_call.1} parent=79 // pred_fallthru
          _
      $region80: #{tpu_custom_call.1} parent=5 // pred_fallthru
        _
      %p1598 = scmp.le.s32.totalorder 2, %s26
      // Predicated region
      $region85: #{tpu_custom_call.1} parent=5 // pred_check
        %p1599 = pneg %p1598
      $region86: #{tpu_custom_call.1} parent=5 // pred_check_branch
        %1601 = sbr.rel (%p1599) target = $region88
      $region87: #{tpu_custom_call.1} parent=5 // pred_region
        %s1602 = ssub.s32 %s26, 2
        // Predicated region
        $region89: #{tpu_custom_call.1} parent=87 // pred_check
          %p1603 = pneg %p396
        $region90: #{tpu_custom_call.1} parent=87 // pred_check_branch
          %1605 = sbr.rel (%p1603) target = $region92
        $region91: #{tpu_custom_call.1} parent=87 // pred_region
          %s1606 = sand.u32 %s381, 1
          %s1607 = scalar_lea.sflag [#allocation4], %s1606
          %s1608 = sand.u32 %s381, 1
          %s1609 = scalar_lea.vmem [#allocation3], %s1608
          %1611 = dma.done %s1607, 16
        $region92: #{tpu_custom_call.1} parent=87 // pred_fallthru
          _
      $region88: #{tpu_custom_call.1} parent=5 // pred_fallthru
        _
    $region6: #{tpu_custom_call.1} parent=1 // loop_footer
      %s30 = sadd.s32 1, %s26
    $region7: #{tpu_custom_call.1} parent=1 // loop_footer_branch
      %25 = sbr.rel target = $region3
    $region8: #{tpu_custom_call.1} parent=1 // loop_exit
      _
    %1612 = vsyncpa [#allocation4], 1
    %s1613 = scalar_lea.sflag [#allocation4], 1
    %1614 = vsyncpa %s1613, 1

// kernel: tpu_custom_call.1
$region0: #{tpu_custom_call.1}
  #allocation0 [shape = 'u32[]', space=smem, size = 0x4, offset = 0x4, fixed_abs, tag = 'smem constant byte address 0x4 - core index']
  #allocation1 [shape = 'u32[72,128]{1,0:T(1,128)}', space=vmem, size = 0x9000, scoped, tag = 'internal scratch']
  #allocation2 [shape = 'f32[1,1]{1,0:T(1,128)S(1)}', space=vmem, size = 0x200, scoped, tag = 'scoped memory for tpu_custom_call.1']
  %s0 = inlined_call_operand.vmem [shape: f32[2,8,128], index: 0, kind: input, shape index: {}]
  %s1 = inlined_call_operand.vmem [shape: f32[2,128,1], index: 1, kind: input, shape index: {}]
  %s2 = inlined_call_operand.vmem [shape: f32[128,8], index: 2, kind: input, shape index: {}]
  %s3 = inlined_call_operand.vmem [shape: bf16[128,128], index: 3, kind: input, shape index: {}]
  %s4 = inlined_call_operand.vmem [shape: bf16[128,128], index: 4, kind: input, shape index: {}]
  %s5 = inlined_call_operand.vmem [shape: bf16[64,128], index: 5, kind: input, shape index: {}]
  %s6 = inlined_call_operand.vmem [shape: bf16[32,64], index: 6, kind: input, shape index: {}]
  %s7 = inlined_call_operand.vmem [shape: bf16[16,32], index: 7, kind: input, shape index: {}]
  %s8 = inlined_call_operand.vmem [shape: f32[16,1], index: 8, kind: input, shape index: {}]
  %s9 = inlined_call_operand.vmem [shape: f32[128,1], index: 9, kind: input, shape index: {}]
  %s10 = inlined_call_operand.vmem [shape: f32[128,1], index: 10, kind: input, shape index: {}]
  %s11 = inlined_call_operand.vmem [shape: f32[64,1], index: 11, kind: input, shape index: {}]
  %s12 = inlined_call_operand.vmem [shape: f32[32,1], index: 12, kind: input, shape index: {}]
  %s13 = inlined_call_operand.vmem [shape: f32[16,1], index: 13, kind: input, shape index: {}]
  %s14 = inlined_call_operand.<no memory space> [shape: f32[1,1], index: 14, kind: input, shape index: {}]
  %s15 = inlined_call_operand.hbm [shape: f32[2,1,1,128], index: 15, kind: output, shape index: {}]
  %s16 = sld [smem:[#allocation0]]
  $region93: #{tpu_custom_call.1} parent=0
    _
  %s18 = ssub.s32 1, %s16
  %s19 = scalar_select 0, %s18, %s16
  %v20 = vstv %s14
  %21 = vst [vmem:[#allocation2] sm:$0x1] %v20
  $region1: #{tpu_custom_call.1} parent=0
    #allocation3 [shape = 'u8[1024]{0}', space=vmem, size = 0x400, scoped, tag = 'output window, operand 0']
    #allocation4 [shape = 's32[2]{0}', space=sflag, size = 0x8, scoped, tag = 'scoped memory for tpu_custom_call.1']
    %22 = vsyncpa [#allocation4], 0
    %s23 = scalar_lea.sflag [#allocation4], 1
    %24 = vsyncpa %s23, 0
    loop: start=0, step=1, limit=4
    $region2: #{tpu_custom_call.1} parent=1 // loop_pre_header
      _
    $region3: #{tpu_custom_call.1} parent=1 // loop_header
      %s26 = sphi 0, %s30
      %p27 = scmp.ge.s32.totalorder %s26, 4
      %s33 = sphi 0, %s45
      %s34 = sphi 0, %s41
      %s35 = sphi 0, %s33
      %s36 = sphi 0, %s34
      %s37 = sphi 0, %s35
      %s38 = sphi 0, %s36
      %s50 = sphi 0, %s52
      %s53 = sphi 0, %s50
      %s54 = sphi 0, %s53
      %s70 = sphi 0, %s54
      %s76 = sphi 0, %s78
      %s79 = sphi 0, %s76
      %s80 = sphi 0, %s79
      %s96 = sphi 0, %s80
      %s100 = sphi 0, %s100
      %s102 = sphi 0, %s100
      %s103 = sphi 0, %s102
      %s117 = sphi 0, %s103
      %s121 = sphi 0, %s121
      %s123 = sphi 0, %s121
      %s124 = sphi 0, %s123
      %s138 = sphi 0, %s124
      %s142 = sphi 0, %s142
      %s144 = sphi 0, %s142
      %s145 = sphi 0, %s144
      %s159 = sphi 0, %s145
      %s163 = sphi 0, %s163
      %s165 = sphi 0, %s163
      %s166 = sphi 0, %s165
      %s180 = sphi 0, %s166
      %s184 = sphi 0, %s184
      %s186 = sphi 0, %s184
      %s187 = sphi 0, %s186
      %s201 = sphi 0, %s187
      %s205 = sphi 0, %s205
      %s207 = sphi 0, %s205
      %s208 = sphi 0, %s207
      %s222 = sphi 0, %s208
      %s226 = sphi 0, %s226
      %s228 = sphi 0, %s226
      %s229 = sphi 0, %s228
      %s243 = sphi 0, %s229
      %s247 = sphi 0, %s247
      %s249 = sphi 0, %s247
      %s250 = sphi 0, %s249
      %s264 = sphi 0, %s250
      %s268 = sphi 0, %s268
      %s270 = sphi 0, %s268
      %s271 = sphi 0, %s270
      %s285 = sphi 0, %s271
      %s289 = sphi 0, %s289
      %s291 = sphi 0, %s289
      %s292 = sphi 0, %s291
      %s306 = sphi 0, %s292
      %s310 = sphi 0, %s310
      %s312 = sphi 0, %s310
      %s313 = sphi 0, %s312
      %s327 = sphi 0, %s313
      %s331 = sphi 0, %s331
      %s333 = sphi 0, %s331
      %s334 = sphi 0, %s333
      %s348 = sphi 0, %s334
      %s352 = sphi 0, %s352
      %s354 = sphi 0, %s352
      %s355 = sphi 0, %s354
      %s369 = sphi 0, %s355
      %s377 = sphi 0, %s379
      %s380 = sphi 0, %s377
      %s381 = sphi 0, %s380
      %s397 = sphi 0, %s381
    $region4: #{tpu_custom_call.1} parent=1 // loop_header_branch
      %29 = sbr.rel (%p27) target = $region8
    $region5: #{tpu_custom_call.1} parent=1 // loop_body
      %s31 = ssub.s32 %s26, 1
      %s32 = ssub.s32 %s26, 2
      %s39 = sadd.s32 1, %s34
      %p40 = scmp.ge.s32.totalorder %s39, 1
      %s41 = scalar_select %p40, 0, %s39
      %s42 = sadd.s32 1, %s33
      %s43 = scalar_select %p40, %s42, %s33
      %p44 = scmp.ge.s32.totalorder %s43, 2
      %s45 = scalar_select %p44, 0, %s43
      %s46 = ssub.s32 %s33, %s45
      %s47 = ssub.s32 %s34, %s41
      %s48 = sor.u32 %s46, %s47
      %p49 = scmp.eq.s32.totalorder %s48, 0
      %s51 = sadd.s32 %s50, 1
      %s52 = scalar_select %p49, %s50, %s51
      %p55 = pneg %p49
      %p56 = scmp.eq.s32.totalorder %s26, 1
      %p57 = por %p55, %p56
      %p58 = scmp.ne.s32.totalorder %s50, %s53
      %p59 = scmp.eq.s32.totalorder %s26, 0
      %p60 = por %p58, %p59
      %p61 = scmp.ne.s32.totalorder %s50, %s53
      %p62 = scmp.eq.s32.totalorder %s31, 1
      %p63 = por %p61, %p62
      %p64 = scmp.ne.s32.totalorder %s53, %s54
      %p65 = scmp.eq.s32.totalorder %s31, 0
      %p66 = por %p64, %p65
      %p67 = scmp.ne.s32.totalorder %s53, %s54
      %p68 = scmp.eq.s32.totalorder %s32, 1
      %p69 = por %p67, %p68
      %p71 = scmp.ne.s32.totalorder %s54, %s70
      %p72 = scmp.eq.s32.totalorder %s32, 0
      %p73 = por %p71, %p72
      %s74 = ssub.s32 %s33, %s45
      %p75 = scmp.eq.s32.totalorder %s74, 0
      %s77 = sadd.s32 %s76, 1
      %s78 = scalar_select %p75, %s76, %s77
      %p81 = pneg %p75
      %p82 = scmp.eq.s32.totalorder %s26, 1
      %p83 = por %p81, %p82
      %p84 = scmp.ne.s32.totalorder %s76, %s79
      %p85 = scmp.eq.s32.totalorder %s26, 0
      %p86 = por %p84, %p85
      %p87 = scmp.ne.s32.totalorder %s76, %s79
      %p88 = scmp.eq.s32.totalorder %s31, 1
      %p89 = por %p87, %p88
      %p90 = scmp.ne.s32.totalorder %s79, %s80
      %p91 = scmp.eq.s32.totalorder %s31, 0
      %p92 = por %p90, %p91
      %p93 = scmp.ne.s32.totalorder %s79, %s80
      %p94 = scmp.eq.s32.totalorder %s32, 1
      %p95 = por %p93, %p94
      %p97 = scmp.ne.s32.totalorder %s80, %s96
      %p98 = scmp.eq.s32.totalorder %s32, 0
      %p99 = por %p97, %p98
      %s101 = sadd.s32 %s100, 1
      %p104 = scmp.eq.s32.totalorder %s26, 1
      %p105 = scmp.ne.s32.totalorder %s100, %s102
      %p106 = scmp.eq.s32.totalorder %s26, 0
      %p107 = por %p105, %p106
      %p108 = scmp.ne.s32.totalorder %s100, %s102
      %p109 = scmp.eq.s32.totalorder %s31, 1
      %p110 = por %p108, %p109
      %p111 = scmp.ne.s32.totalorder %s102, %s103
      %p112 = scmp.eq.s32.totalorder %s31, 0
      %p113 = por %p111, %p112
      %p114 = scmp.ne.s32.totalorder %s102, %s103
      %p115 = scmp.eq.s32.totalorder %s32, 1
      %p116 = por %p114, %p115
      %p118 = scmp.ne.s32.totalorder %s103, %s117
      %p119 = scmp.eq.s32.totalorder %s32, 0
      %p120 = por %p118, %p119
      %s122 = sadd.s32 %s121, 1
      %p125 = scmp.eq.s32.totalorder %s26, 1
      %p126 = scmp.ne.s32.totalorder %s121, %s123
      %p127 = scmp.eq.s32.totalorder %s26, 0
      %p128 = por %p126, %p127
      %p129 = scmp.ne.s32.totalorder %s121, %s123
      %p130 = scmp.eq.s32.totalorder %s31, 1
      %p131 = por %p129, %p130
      %p132 = scmp.ne.s32.totalorder %s123, %s124
      %p133 = scmp.eq.s32.totalorder %s31, 0
      %p134 = por %p132, %p133
      %p135 = scmp.ne.s32.totalorder %s123, %s124
      %p136 = scmp.eq.s32.totalorder %s32, 1
      %p137 = por %p135, %p136
      %p139 = scmp.ne.s32.totalorder %s124, %s138
      %p140 = scmp.eq.s32.totalorder %s32, 0
      %p141 = por %p139, %p140
      %s143 = sadd.s32 %s142, 1
      %p146 = scmp.eq.s32.totalorder %s26, 1
      %p147 = scmp.ne.s32.totalorder %s142, %s144
      %p148 = scmp.eq.s32.totalorder %s26, 0
      %p149 = por %p147, %p148
      %p150 = scmp.ne.s32.totalorder %s142, %s144
      %p151 = scmp.eq.s32.totalorder %s31, 1
      %p152 = por %p150, %p151
      %p153 = scmp.ne.s32.totalorder %s144, %s145
      %p154 = scmp.eq.s32.totalorder %s31, 0
      %p155 = por %p153, %p154
      %p156 = scmp.ne.s32.totalorder %s144, %s145
      %p157 = scmp.eq.s32.totalorder %s32, 1
      %p158 = por %p156, %p157
      %p160 = scmp.ne.s32.totalorder %s145, %s159
      %p161 = scmp.eq.s32.totalorder %s32, 0
      %p162 = por %p160, %p161
      %s164 = sadd.s32 %s163, 1
      %p167 = scmp.eq.s32.totalorder %s26, 1
      %p168 = scmp.ne.s32.totalorder %s163, %s165
      %p169 = scmp.eq.s32.totalorder %s26, 0
      %p170 = por %p168, %p169
      %p171 = scmp.ne.s32.totalorder %s163, %s165
      %p172 = scmp.eq.s32.totalorder %s31, 1
      %p173 = por %p171, %p172
      %p174 = scmp.ne.s32.totalorder %s165, %s166
      %p175 = scmp.eq.s32.totalorder %s31, 0
      %p176 = por %p174, %p175
      %p177 = scmp.ne.s32.totalorder %s165, %s166
      %p178 = scmp.eq.s32.totalorder %s32, 1
      %p179 = por %p177, %p178
      %p181 = scmp.ne.s32.totalorder %s166, %s180
      %p182 = scmp.eq.s32.totalorder %s32, 0
      %p183 = por %p181, %p182
      %s185 = sadd.s32 %s184, 1
      %p188 = scmp.eq.s32.totalorder %s26, 1
      %p189 = scmp.ne.s32.totalorder %s184, %s186
      %p190 = scmp.eq.s32.totalorder %s26, 0
      %p191 = por %p189, %p190
      %p192 = scmp.ne.s32.totalorder %s184, %s186
      %p193 = scmp.eq.s32.totalorder %s31, 1
      %p194 = por %p192, %p193
      %p195 = scmp.ne.s32.totalorder %s186, %s187
      %p196 = scmp.eq.s32.totalorder %s31, 0
      %p197 = por %p195, %p196
      %p198 = scmp.ne.s32.totalorder %s186, %s187
      %p199 = scmp.eq.s32.totalorder %s32, 1
      %p200 = por %p198, %p199
      %p202 = scmp.ne.s32.totalorder %s187, %s201
      %p203 = scmp.eq.s32.totalorder %s32, 0
      %p204 = por %p202, %p203
      %s206 = sadd.s32 %s205, 1
      %p209 = scmp.eq.s32.totalorder %s26, 1
      %p210 = scmp.ne.s32.totalorder %s205, %s207
      %p211 = scmp.eq.s32.totalorder %s26, 0
      %p212 = por %p210, %p211
      %p213 = scmp.ne.s32.totalorder %s205, %s207
      %p214 = scmp.eq.s32.totalorder %s31, 1
      %p215 = por %p213, %p214
      %p216 = scmp.ne.s32.totalorder %s207, %s208
      %p217 = scmp.eq.s32.totalorder %s31, 0
      %p218 = por %p216, %p217
      %p219 = scmp.ne.s32.totalorder %s207, %s208
      %p220 = scmp.eq.s32.totalorder %s32, 1
      %p221 = por %p219, %p220
      %p223 = scmp.ne.s32.totalorder %s208, %s222
      %p224 = scmp.eq.s32.totalorder %s32, 0
      %p225 = por %p223, %p224
      %s227 = sadd.s32 %s226, 1
      %p230 = scmp.eq.s32.totalorder %s26, 1
      %p231 = scmp.ne.s32.totalorder %s226, %s228
      %p232 = scmp.eq.s32.totalorder %s26, 0
      %p233 = por %p231, %p232
      %p234 = scmp.ne.s32.totalorder %s226, %s228
      %p235 = scmp.eq.s32.totalorder %s31, 1
      %p236 = por %p234, %p235
      %p237 = scmp.ne.s32.totalorder %s228, %s229
      %p238 = scmp.eq.s32.totalorder %s31, 0
      %p239 = por %p237, %p238
      %p240 = scmp.ne.s32.totalorder %s228, %s229
      %p241 = scmp.eq.s32.totalorder %s32, 1
      %p242 = por %p240, %p241
      %p244 = scmp.ne.s32.totalorder %s229, %s243
      %p245 = scmp.eq.s32.totalorder %s32, 0
      %p246 = por %p244, %p245
      %s248 = sadd.s32 %s247, 1
      %p251 = scmp.eq.s32.totalorder %s26, 1
      %p252 = scmp.ne.s32.totalorder %s247, %s249
      %p253 = scmp.eq.s32.totalorder %s26, 0
      %p254 = por %p252, %p253
      %p255 = scmp.ne.s32.totalorder %s247, %s249
      %p256 = scmp.eq.s32.totalorder %s31, 1
      %p257 = por %p255, %p256
      %p258 = scmp.ne.s32.totalorder %s249, %s250
      %p259 = scmp.eq.s32.totalorder %s31, 0
      %p260 = por %p258, %p259
      %p261 = scmp.ne.s32.totalorder %s249, %s250
      %p262 = scmp.eq.s32.totalorder %s32, 1
      %p263 = por %p261, %p262
      %p265 = scmp.ne.s32.totalorder %s250, %s264
      %p266 = scmp.eq.s32.totalorder %s32, 0
      %p267 = por %p265, %p266
      %s269 = sadd.s32 %s268, 1
      %p272 = scmp.eq.s32.totalorder %s26, 1
      %p273 = scmp.ne.s32.totalorder %s268, %s270
      %p274 = scmp.eq.s32.totalorder %s26, 0
      %p275 = por %p273, %p274
      %p276 = scmp.ne.s32.totalorder %s268, %s270
      %p277 = scmp.eq.s32.totalorder %s31, 1
      %p278 = por %p276, %p277
      %p279 = scmp.ne.s32.totalorder %s270, %s271
      %p280 = scmp.eq.s32.totalorder %s31, 0
      %p281 = por %p279, %p280
      %p282 = scmp.ne.s32.totalorder %s270, %s271
      %p283 = scmp.eq.s32.totalorder %s32, 1
      %p284 = por %p282, %p283
      %p286 = scmp.ne.s32.totalorder %s271, %s285
      %p287 = scmp.eq.s32.totalorder %s32, 0
      %p288 = por %p286, %p287
      %s290 = sadd.s32 %s289, 1
      %p293 = scmp.eq.s32.totalorder %s26, 1
      %p294 = scmp.ne.s32.totalorder %s289, %s291
      %p295 = scmp.eq.s32.totalorder %s26, 0
      %p296 = por %p294, %p295
      %p297 = scmp.ne.s32.totalorder %s289, %s291
      %p298 = scmp.eq.s32.totalorder %s31, 1
      %p299 = por %p297, %p298
      %p300 = scmp.ne.s32.totalorder %s291, %s292
      %p301 = scmp.eq.s32.totalorder %s31, 0
      %p302 = por %p300, %p301
      %p303 = scmp.ne.s32.totalorder %s291, %s292
      %p304 = scmp.eq.s32.totalorder %s32, 1
      %p305 = por %p303, %p304
      %p307 = scmp.ne.s32.totalorder %s292, %s306
      %p308 = scmp.eq.s32.totalorder %s32, 0
      %p309 = por %p307, %p308
      %s311 = sadd.s32 %s310, 1
      %p314 = scmp.eq.s32.totalorder %s26, 1
      %p315 = scmp.ne.s32.totalorder %s310, %s312
      %p316 = scmp.eq.s32.totalorder %s26, 0
      %p317 = por %p315, %p316
      %p318 = scmp.ne.s32.totalorder %s310, %s312
      %p319 = scmp.eq.s32.totalorder %s31, 1
      %p320 = por %p318, %p319
      %p321 = scmp.ne.s32.totalorder %s312, %s313
      %p322 = scmp.eq.s32.totalorder %s31, 0
      %p323 = por %p321, %p322
      %p324 = scmp.ne.s32.totalorder %s312, %s313
      %p325 = scmp.eq.s32.totalorder %s32, 1
      %p326 = por %p324, %p325
      %p328 = scmp.ne.s32.totalorder %s313, %s327
      %p329 = scmp.eq.s32.totalorder %s32, 0
      %p330 = por %p328, %p329
      %s332 = sadd.s32 %s331, 1
      %p335 = scmp.eq.s32.totalorder %s26, 1
      %p336 = scmp.ne.s32.totalorder %s331, %s333
      %p337 = scmp.eq.s32.totalorder %s26, 0
      %p338 = por %p336, %p337
      %p339 = scmp.ne.s32.totalorder %s331, %s333
      %p340 = scmp.eq.s32.totalorder %s31, 1
      %p341 = por %p339, %p340
      %p342 = scmp.ne.s32.totalorder %s333, %s334
      %p343 = scmp.eq.s32.totalorder %s31, 0
      %p344 = por %p342, %p343
      %p345 = scmp.ne.s32.totalorder %s333, %s334
      %p346 = scmp.eq.s32.totalorder %s32, 1
      %p347 = por %p345, %p346
      %p349 = scmp.ne.s32.totalorder %s334, %s348
      %p350 = scmp.eq.s32.totalorder %s32, 0
      %p351 = por %p349, %p350
      %s353 = sadd.s32 %s352, 1
      %p356 = scmp.eq.s32.totalorder %s26, 1
      %p357 = scmp.ne.s32.totalorder %s352, %s354
      %p358 = scmp.eq.s32.totalorder %s26, 0
      %p359 = por %p357, %p358
      %p360 = scmp.ne.s32.totalorder %s352, %s354
      %p361 = scmp.eq.s32.totalorder %s31, 1
      %p362 = por %p360, %p361
      %p363 = scmp.ne.s32.totalorder %s354, %s355
      %p364 = scmp.eq.s32.totalorder %s31, 0
      %p365 = por %p363, %p364
      %p366 = scmp.ne.s32.totalorder %s354, %s355
      %p367 = scmp.eq.s32.totalorder %s32, 1
      %p368 = por %p366, %p367
      %p370 = scmp.ne.s32.totalorder %s355, %s369
      %p371 = scmp.eq.s32.totalorder %s32, 0
      %p372 = por %p370, %p371
      %s373 = ssub.s32 %s33, %s45
      %s374 = ssub.s32 %s34, %s41
      %s375 = sor.u32 %s373, %s374
      %p376 = scmp.eq.s32.totalorder %s375, 0
      %s378 = sadd.s32 %s377, 1
      %s379 = scalar_select %p376, %s377, %s378
      %p382 = pneg %p376
      %p383 = scmp.eq.s32.totalorder %s26, 1
      %p384 = por %p382, %p383
      %p385 = scmp.ne.s32.totalorder %s377, %s380
      %p386 = scmp.eq.s32.totalorder %s26, 0
      %p387 = por %p385, %p386
      %p388 = scmp.ne.s32.totalorder %s377, %s380
      %p389 = scmp.eq.s32.totalorder %s31, 1
      %p390 = por %p388, %p389
      %p391 = scmp.ne.s32.totalorder %s380, %s381
      %p392 = scmp.eq.s32.totalorder %s31, 0
      %p393 = por %p391, %p392
      %p394 = scmp.ne.s32.totalorder %s380, %s381
      %p395 = scmp.eq.s32.totalorder %s32, 1
      %p396 = por %p394, %p395
      %p398 = scmp.ne.s32.totalorder %s381, %s397
      %p399 = scmp.eq.s32.totalorder %s32, 0
      %p400 = por %p398, %p399
      %p401 = scmp.le.s32.totalorder 1, %s26
      %p402 = scmp.lt.s32.totalorder %s26, 3
      %p403 = pnand %p401, %p402
      %p404 = pneg %p403
      // Predicated region
      $region9: #{tpu_custom_call.1} parent=5 // pred_check
        _
      $region10: #{tpu_custom_call.1} parent=5 // pred_check_branch
        %406 = sbr.rel (%p403) target = $region12
      $region11: #{tpu_custom_call.1} parent=5 // pred_region
        %s407 = ssub.s32 %s26, 1
        // Predicated region
        $region13: #{tpu_custom_call.1} parent=11 // pred_check
          %p408 = pneg %p113
        $region14: #{tpu_custom_call.1} parent=11 // pred_check_branch
          %410 = sbr.rel (%p408) target = $region16
        $region15: #{tpu_custom_call.1} parent=11 // pred_region
          _
        $region16: #{tpu_custom_call.1} parent=11 // pred_fallthru
          _
        // Predicated region
        $region17: #{tpu_custom_call.1} parent=11 // pred_check
          %p411 = pneg %p134
        $region18: #{tpu_custom_call.1} parent=11 // pred_check_branch
          %413 = sbr.rel (%p411) target = $region20
        $region19: #{tpu_custom_call.1} parent=11 // pred_region
          _
        $region20: #{tpu_custom_call.1} parent=11 // pred_fallthru
          _
        // Predicated region
        $region21: #{tpu_custom_call.1} parent=11 // pred_check
          %p414 = pneg %p155
        $region22: #{tpu_custom_call.1} parent=11 // pred_check_branch
          %416 = sbr.rel (%p414) target = $region24
        $region23: #{tpu_custom_call.1} parent=11 // pred_region
          _
        $region24: #{tpu_custom_call.1} parent=11 // pred_fallthru
          _
        // Predicated region
        $region25: #{tpu_custom_call.1} parent=11 // pred_check
          %p417 = pneg %p176
        $region26: #{tpu_custom_call.1} parent=11 // pred_check_branch
          %419 = sbr.rel (%p417) target = $region28
        $region27: #{tpu_custom_call.1} parent=11 // pred_region
          _
        $region28: #{tpu_custom_call.1} parent=11 // pred_fallthru
          _
        // Predicated region
        $region29: #{tpu_custom_call.1} parent=11 // pred_check
          %p420 = pneg %p197
        $region30: #{tpu_custom_call.1} parent=11 // pred_check_branch
          %422 = sbr.rel (%p420) target = $region32
        $region31: #{tpu_custom_call.1} parent=11 // pred_region
          _
        $region32: #{tpu_custom_call.1} parent=11 // pred_fallthru
          _
        // Predicated region
        $region33: #{tpu_custom_call.1} parent=11 // pred_check
          %p423 = pneg %p218
        $region34: #{tpu_custom_call.1} parent=11 // pred_check_branch
          %425 = sbr.rel (%p423) target = $region36
        $region35: #{tpu_custom_call.1} parent=11 // pred_region
          _
        $region36: #{tpu_custom_call.1} parent=11 // pred_fallthru
          _
        // Predicated region
        $region37: #{tpu_custom_call.1} parent=11 // pred_check
          %p426 = pneg %p239
        $region38: #{tpu_custom_call.1} parent=11 // pred_check_branch
          %428 = sbr.rel (%p426) target = $region40
        $region39: #{tpu_custom_call.1} parent=11 // pred_region
          _
        $region40: #{tpu_custom_call.1} parent=11 // pred_fallthru
          _
        // Predicated region
        $region41: #{tpu_custom_call.1} parent=11 // pred_check
          %p429 = pneg %p260
        $region42: #{tpu_custom_call.1} parent=11 // pred_check_branch
          %431 = sbr.rel (%p429) target = $region44
        $region43: #{tpu_custom_call.1} parent=11 // pred_region
          _
        $region44: #{tpu_custom_call.1} parent=11 // pred_fallthru
          _
        // Predicated region
        $region45: #{tpu_custom_call.1} parent=11 // pred_check
          %p432 = pneg %p281
        $region46: #{tpu_custom_call.1} parent=11 // pred_check_branch
          %434 = sbr.rel (%p432) target = $region48
        $region47: #{tpu_custom_call.1} parent=11 // pred_region
          _
        $region48: #{tpu_custom_call.1} parent=11 // pred_fallthru
          _
        // Predicated region
        $region49: #{tpu_custom_call.1} parent=11 // pred_check
          %p435 = pneg %p302
        $region50: #{tpu_custom_call.1} parent=11 // pred_check_branch
          %437 = sbr.rel (%p435) target = $region52
        $region51: #{tpu_custom_call.1} parent=11 // pred_region
          _
        $region52: #{tpu_custom_call.1} parent=11 // pred_fallthru
          _
        // Predicated region
        $region53: #{tpu_custom_call.1} parent=11 // pred_check
          %p438 = pneg %p323
        $region54: #{tpu_custom_call.1} parent=11 // pred_check_branch
          %440 = sbr.rel (%p438) target = $region56
        $region55: #{tpu_custom_call.1} parent=11 // pred_region
          _
        $region56: #{tpu_custom_call.1} parent=11 // pred_fallthru
          _
        // Predicated region
        $region57: #{tpu_custom_call.1} parent=11 // pred_check
          %p441 = pneg %p344
        $region58: #{tpu_custom_call.1} parent=11 // pred_check_branch
          %443 = sbr.rel (%p441) target = $region60
        $region59: #{tpu_custom_call.1} parent=11 // pred_region
          _
        $region60: #{tpu_custom_call.1} parent=11 // pred_fallthru
          _
        // Predicated region
        $region61: #{tpu_custom_call.1} parent=11 // pred_check
          %p444 = pneg %p365
        $region62: #{tpu_custom_call.1} parent=11 // pred_check_branch
          %446 = sbr.rel (%p444) target = $region64
        $region63: #{tpu_custom_call.1} parent=11 // pred_region
          _
        $region64: #{tpu_custom_call.1} parent=11 // pred_fallthru
          _
      $region12: #{tpu_custom_call.1} parent=5 // pred_fallthru
        _
      %p447 = scmp.lt.s32.totalorder %s26, 2
      // Predicated region
      $region65: #{tpu_custom_call.1} parent=5 // pred_check
        %p448 = pneg %p447
      $region66: #{tpu_custom_call.1} parent=5 // pred_check_branch
        %450 = sbr.rel (%p448) target = $region68
      $region67: #{tpu_custom_call.1} parent=5 // pred_region
        // Predicated region
        $region69: #{tpu_custom_call.1} parent=67 // pred_check
          %p451 = pneg %p60
        $region70: #{tpu_custom_call.1} parent=67 // pred_check_branch
          %453 = sbr.rel (%p451) target = $region72
        $region71: #{tpu_custom_call.1} parent=67 // pred_region
          %p454 = scmp.lt.s32.totalorder %s33, 1
          %s455 = scalar_select %p454, %s33, 1
          %p456 = scmp.lt.s32.totalorder %s34, 0
          %s457 = scalar_select %p456, %s34, 0
          %s458 = sadd.s32 %s457, %s455
          %s459 = smul.addr %s458, 8
          %s460 = scalar_lea.vmem %s0, %s459
        $region72: #{tpu_custom_call.1} parent=67 // pred_fallthru
          _
        // Predicated region
        $region73: #{tpu_custom_call.1} parent=67 // pred_check
          %p461 = pneg %p86
        $region74: #{tpu_custom_call.1} parent=67 // pred_check_branch
          %463 = sbr.rel (%p461) target = $region76
        $region75: #{tpu_custom_call.1} parent=67 // pred_region
          %p464 = scmp.lt.s32.totalorder %s33, 1
          %s465 = scalar_select %p464, %s33, 1
          %s466 = smul.addr %s465, 16
          %s467 = smul.addr %s466, 8
          %s468 = scalar_lea.vmem %s1, %s467
        $region76: #{tpu_custom_call.1} parent=67 // pred_fallthru
          _
      $region68: #{tpu_custom_call.1} parent=5 // pred_fallthru
        _
      %p469 = scmp.le.s32.totalorder 1, %s26
      %p470 = scmp.lt.s32.totalorder %s26, 3
      %p471 = pnand %p469, %p470
      %p472 = pneg %p471
      // Predicated region
      $region77: #{tpu_custom_call.1} parent=5 // pred_check
        _
      $region78: #{tpu_custom_call.1} parent=5 // pred_check_branch
        %474 = sbr.rel (%p471) target = $region80
      $region79: #{tpu_custom_call.1} parent=5 // pred_region
        %s475 = ssub.s32 %s26, 1
        %p476 = scmp.lt.s32.totalorder %s35, 1
        %s477 = scalar_select %p476, %s35, 1
        %p478 = scmp.lt.s32.totalorder %s36, 0
        %s479 = scalar_select %p478, %s36, 0
        %s480 = sadd.s32 %s479, %s477
        %s481 = smul.addr %s480, 8
        %s482 = scalar_lea.vmem %s0, %s481
        %p483 = pneg %p66
        %p484 = pneg %p63
        %p485 = scmp.lt.s32.totalorder %s35, 1
        %s486 = scalar_select %p485, %s35, 1
        %s487 = smul.addr %s486, 16
        %s488 = smul.addr %s487, 8
        %s489 = scalar_lea.vmem %s1, %s488
        %p490 = pneg %p92
        %p491 = pneg %p89
        %p492 = pneg %p113
        %p493 = pneg %p110
        %p494 = pneg %p134
        %p495 = pneg %p131
        %p496 = pneg %p155
        %p497 = pneg %p152
        %p498 = pneg %p176
        %p499 = pneg %p173
        %p500 = pneg %p197
        %p501 = pneg %p194
        %p502 = pneg %p218
        %p503 = pneg %p215
        %p504 = pneg %p239
        %p505 = pneg %p236
        %p506 = pneg %p260
        %p507 = pneg %p257
        %p508 = pneg %p281
        %p509 = pneg %p278
        %p510 = pneg %p302
        %p511 = pneg %p299
        %p512 = pneg %p323
        %p513 = pneg %p320
        %p514 = pneg %p344
        %p515 = pneg %p341
        %p516 = pneg %p365
        %p517 = pneg %p362
        %p518 = pneg %p393
        %p519 = pneg %p390
        %s520 = sand.u32 %s380, 1
        %s521 = scalar_lea.sflag [#allocation4], %s520
        %s522 = sand.u32 %s380, 1
        %s523 = scalar_lea.vmem [#allocation3], %s522
        %p524 = scmp.lt.s32.totalorder %s35, 1
        %s525 = scalar_select %p524, %s35, 1
        %p526 = scmp.lt.s32.totalorder %s36, 0
        %s527 = scalar_select %p526, %s36, 0
        %s528 = sadd.s32 %s527, %s525
        %s529 = smul.addr %s528, 8
        %s530 = scalar_lea.vmem %s0, %s529
        %p531 = scmp.lt.s32.totalorder %s35, 1
        %s532 = scalar_select %p531, %s35, 1
        %s533 = smul.addr %s532, 16
        %s534 = smul.addr %s533, 8
        %s535 = scalar_lea.vmem %s1, %s534
        %v537 = vld [vmem:[%s530] sm:$0xff]
        %v538 = vld [vmem:[%s2] sm:$0xff]
        %v539 = vld [vmem:[%s2 + $0x8] sm:$0xff]
        %v540 = vld [vmem:[%s2 + $0x10] sm:$0xff]
        %v541 = vld [vmem:[%s2 + $0x18] sm:$0xff]
        %v542 = vld [vmem:[%s2 + $0x20] sm:$0xff]
        %v543 = vld [vmem:[%s2 + $0x28] sm:$0xff]
        %v544 = vld [vmem:[%s2 + $0x30] sm:$0xff]
        %v545 = vld [vmem:[%s2 + $0x38] sm:$0xff]
        %v546 = vld [vmem:[%s2 + $0x40] sm:$0xff]
        %v547 = vld [vmem:[%s2 + $0x48] sm:$0xff]
        %v548 = vld [vmem:[%s2 + $0x50] sm:$0xff]
        %v549 = vld [vmem:[%s2 + $0x58] sm:$0xff]
        %v550 = vld [vmem:[%s2 + $0x60] sm:$0xff]
        %v551 = vld [vmem:[%s2 + $0x68] sm:$0xff]
        %v552 = vld [vmem:[%s2 + $0x70] sm:$0xff]
        %v553 = vld [vmem:[%s2 + $0x78] sm:$0xff]
        %v554 = vld [vmem:[%s535] sm:$0xff]
        %v555 = vld [vmem:[%s535 + $0x8] sm:$0xff]
        %v556 = vld [vmem:[%s535 + $0x10] sm:$0xff]
        %v557 = vld [vmem:[%s535 + $0x18] sm:$0xff]
        %v558 = vld [vmem:[%s535 + $0x20] sm:$0xff]
        %v559 = vld [vmem:[%s535 + $0x28] sm:$0xff]
        %v560 = vld [vmem:[%s535 + $0x30] sm:$0xff]
        %v561 = vld [vmem:[%s535 + $0x38] sm:$0xff]
        %v562 = vld [vmem:[%s535 + $0x40] sm:$0xff]
        %v563 = vld [vmem:[%s535 + $0x48] sm:$0xff]
        %v564 = vld [vmem:[%s535 + $0x50] sm:$0xff]
        %v565 = vld [vmem:[%s535 + $0x58] sm:$0xff]
        %v566 = vld [vmem:[%s535 + $0x60] sm:$0xff]
        %v567 = vld [vmem:[%s535 + $0x68] sm:$0xff]
        %v568 = vld [vmem:[%s535 + $0x70] sm:$0xff]
        %v569 = vld [vmem:[%s535 + $0x78] sm:$0xff]
        %571 = vset.pattern.permute.xlu0 0
        %572 = vperm.xlu0 %571, %v554
        %v573 = vpop.permute.xlu0 %572
        %576 = vset.pattern.permute.xlu0 0
        %577 = vperm.xlu0 %576, %v555
        %v578 = vpop.permute.xlu0 %577
        %581 = vset.pattern.permute.xlu0 0
        %582 = vperm.xlu0 %581, %v556
        %v583 = vpop.permute.xlu0 %582
        %586 = vset.pattern.permute.xlu0 0
        %587 = vperm.xlu0 %586, %v557
        %v588 = vpop.permute.xlu0 %587
        %591 = vset.pattern.permute.xlu0 0
        %592 = vperm.xlu0 %591, %v558
        %v593 = vpop.permute.xlu0 %592
        %596 = vset.pattern.permute.xlu0 0
        %597 = vperm.xlu0 %596, %v559
        %v598 = vpop.permute.xlu0 %597
        %601 = vset.pattern.permute.xlu0 0
        %602 = vperm.xlu0 %601, %v560
        %v603 = vpop.permute.xlu0 %602
        %606 = vset.pattern.permute.xlu0 0
        %607 = vperm.xlu0 %606, %v561
        %v608 = vpop.permute.xlu0 %607
        %611 = vset.pattern.permute.xlu0 0
        %612 = vperm.xlu0 %611, %v562
        %v613 = vpop.permute.xlu0 %612
        %616 = vset.pattern.permute.xlu0 0
        %617 = vperm.xlu0 %616, %v563
        %v618 = vpop.permute.xlu0 %617
        %621 = vset.pattern.permute.xlu0 0
        %622 = vperm.xlu0 %621, %v564
        %v623 = vpop.permute.xlu0 %622
        %626 = vset.pattern.permute.xlu0 0
        %627 = vperm.xlu0 %626, %v565
        %v628 = vpop.permute.xlu0 %627
        %631 = vset.pattern.permute.xlu0 0
        %632 = vperm.xlu0 %631, %v566
        %v633 = vpop.permute.xlu0 %632
        %636 = vset.pattern.permute.xlu0 0
        %637 = vperm.xlu0 %636, %v567
        %v638 = vpop.permute.xlu0 %637
        %641 = vset.pattern.permute.xlu0 0
        %642 = vperm.xlu0 %641, %v568
        %v643 = vpop.permute.xlu0 %642
        %646 = vset.pattern.permute.xlu0 0
        %647 = vperm.xlu0 %646, %v569
        %v648 = vpop.permute.xlu0 %647
        %vm650 = vcmask 64512
        %v652 = vsel %vm650, %v538, 0
        %v655 = vsel %vm650, %v539, 0
        %v658 = vsel %vm650, %v540, 0
        %v661 = vsel %vm650, %v541, 0
        %v664 = vsel %vm650, %v542, 0
        %v667 = vsel %vm650, %v543, 0
        %v670 = vsel %vm650, %v544, 0
        %v673 = vsel %vm650, %v545, 0
        %v676 = vsel %vm650, %v546, 0
        %v679 = vsel %vm650, %v547, 0
        %v682 = vsel %vm650, %v548, 0
        %v685 = vsel %vm650, %v549, 0
        %v688 = vsel %vm650, %v550, 0
        %v691 = vsel %vm650, %v551, 0
        %v694 = vsel %vm650, %v552, 0
        %v697 = vsel %vm650, %v553, 0
        %699 = vmatpush.msra.mxu0 0.0
        %700 = vmatpush.msra.mxu0 0.0
        %701 = vmatpush.msra.mxu0 0.0
        %702 = vmatpush.msra.mxu0 0.0
        %703 = vmatpush.msra.mxu0 0.0
        %704 = vmatpush.msra.mxu0 0.0
        %705 = vmatpush.msra.mxu0 0.0
        %706 = vmatpush.msra.mxu0 0.0
        %707 = vmatpush.msra.mxu0 0.0
        %708 = vmatpush.msra.mxu0 0.0
        %709 = vmatpush.msra.mxu0 0.0
        %710 = vmatpush.msra.mxu0 0.0
        %711 = vmatpush.msra.mxu0 0.0
        %712 = vmatpush.msra.mxu0 0.0
        %713 = vmatpush.msra.mxu0 0.0
        %714 = vmatpush.msra.mxu0 %v537
        %715 = vmatmul.f32.gmra.mxu0 %v652
        %v716 = vpop.f32.mrf.mxu0
        %v717 = vadd.f32 %v573, %v716
        %718 = vmatmul.f32.gmra.mxu0 %v655
        %v719 = vpop.f32.mrf.mxu0
        %v720 = vadd.f32 %v578, %v719
        %721 = vmatmul.f32.gmra.mxu0 %v658
        %v722 = vpop.f32.mrf.mxu0
        %v723 = vadd.f32 %v583, %v722
        %724 = vmatmul.f32.gmra.mxu0 %v661
        %v725 = vpop.f32.mrf.mxu0
        %v726 = vadd.f32 %v588, %v725
        %727 = vmatmul.f32.gmra.mxu0 %v664
        %v728 = vpop.f32.mrf.mxu0
        %v729 = vadd.f32 %v593, %v728
        %730 = vmatmul.f32.gmra.mxu0 %v667
        %v731 = vpop.f32.mrf.mxu0
        %v732 = vadd.f32 %v598, %v731
        %733 = vmatmul.f32.gmra.mxu0 %v670
        %v734 = vpop.f32.mrf.mxu0
        %v735 = vadd.f32 %v603, %v734
        %736 = vmatmul.f32.gmra.mxu0 %v673
        %v737 = vpop.f32.mrf.mxu0
        %v738 = vadd.f32 %v608, %v737
        %739 = vmatmul.f32.gmra.mxu0 %v676
        %v740 = vpop.f32.mrf.mxu0
        %v741 = vadd.f32 %v613, %v740
        %742 = vmatmul.f32.gmra.mxu0 %v679
        %v743 = vpop.f32.mrf.mxu0
        %v744 = vadd.f32 %v618, %v743
        %745 = vmatmul.f32.gmra.mxu0 %v682
        %v746 = vpop.f32.mrf.mxu0
        %v747 = vadd.f32 %v623, %v746
        %748 = vmatmul.f32.gmra.mxu0 %v685
        %v749 = vpop.f32.mrf.mxu0
        %v750 = vadd.f32 %v628, %v749
        %751 = vmatmul.f32.gmra.mxu0 %v688
        %v752 = vpop.f32.mrf.mxu0
        %v753 = vadd.f32 %v633, %v752
        %754 = vmatmul.f32.gmra.mxu0 %v691
        %v755 = vpop.f32.mrf.mxu0
        %v756 = vadd.f32 %v638, %v755
        %757 = vmatmul.f32.gmra.mxu0 %v694
        %v758 = vpop.f32.mrf.mxu0
        %v759 = vadd.f32 %v643, %v758
        %760 = vmatmul.f32.gmra.mxu0 %v697
        %v761 = vpop.f32.mrf.mxu0
        %v762 = vadd.f32 %v648, %v761
        %763 = vdwg.mxu0
        %v764 = vmul.f32 %v717, 0.02
        %v765 = vmul.f32 %v720, 0.02
        %v766 = vmul.f32 %v723, 0.02
        %v767 = vmul.f32 %v726, 0.02
        %v768 = vmul.f32 %v729, 0.02
        %v769 = vmul.f32 %v732, 0.02
        %v770 = vmul.f32 %v735, 0.02
        %v771 = vmul.f32 %v738, 0.02
        %v772 = vmul.f32 %v741, 0.02
        %v773 = vmul.f32 %v744, 0.02
        %v774 = vmul.f32 %v747, 0.02
        %v775 = vmul.f32 %v750, 0.02
        %v776 = vmul.f32 %v753, 0.02
        %v777 = vmul.f32 %v756, 0.02
        %v778 = vmul.f32 %v759, 0.02
        %v779 = vmul.f32 %v762, 0.02
        %v780 = vmax.f32 %v717, %v764
        %v781 = vmax.f32 %v720, %v765
        %v782 = vmax.f32 %v723, %v766
        %v783 = vmax.f32 %v726, %v767
        %v784 = vmax.f32 %v729, %v768
        %v785 = vmax.f32 %v732, %v769
        %v786 = vmax.f32 %v735, %v770
        %v787 = vmax.f32 %v738, %v771
        %v788 = vmax.f32 %v741, %v772
        %v789 = vmax.f32 %v744, %v773
        %v790 = vmax.f32 %v747, %v774
        %v791 = vmax.f32 %v750, %v775
        %v792 = vmax.f32 %v753, %v776
        %v793 = vmax.f32 %v756, %v777
        %v794 = vmax.f32 %v759, %v778
        %v795 = vmax.f32 %v762, %v779
        %v796 = vld [vmem:[%s3] sm:$0xf]
        %v797 = vld [vmem:[%s3 + $0x4] sm:$0xf]
        %v798 = vld [vmem:[%s3 + $0x8] sm:$0xf]
        %v799 = vld [vmem:[%s3 + $0xc] sm:$0xf]
        %v800 = vld [vmem:[%s3 + $0x10] sm:$0xf]
        %v801 = vld [vmem:[%s3 + $0x14] sm:$0xf]
        %v802 = vld [vmem:[%s3 + $0x18] sm:$0xf]
        %v803 = vld [vmem:[%s3 + $0x1c] sm:$0xf]
        %v804 = vld [vmem:[%s3 + $0x20] sm:$0xf]
        %v805 = vld [vmem:[%s3 + $0x24] sm:$0xf]
        %v806 = vld [vmem:[%s3 + $0x28] sm:$0xf]
        %v807 = vld [vmem:[%s3 + $0x2c] sm:$0xf]
        %v808 = vld [vmem:[%s3 + $0x30] sm:$0xf]
        %v809 = vld [vmem:[%s3 + $0x34] sm:$0xf]
        %v810 = vld [vmem:[%s3 + $0x38] sm:$0xf]
        %v811 = vld [vmem:[%s3 + $0x3c] sm:$0xf]
        %v812 = vpack.c.bf16 %v781, %v780
        %v813 = vpack.c.bf16 %v783, %v782
        %v814 = vpack.c.bf16 %v785, %v784
        %v815 = vpack.c.bf16 %v787, %v786
        %v816 = vpack.c.bf16 %v789, %v788
        %v817 = vpack.c.bf16 %v791, %v790
        %v818 = vpack.c.bf16 %v793, %v792
        %v819 = vpack.c.bf16 %v795, %v794
        %v820 = vld [vmem:[%s9] sm:$0xff]
        %v821 = vld [vmem:[%s9 + $0x8] sm:$0xff]
        %v822 = vld [vmem:[%s9 + $0x10] sm:$0xff]
        %v823 = vld [vmem:[%s9 + $0x18] sm:$0xff]
        %v824 = vld [vmem:[%s9 + $0x20] sm:$0xff]
        %v825 = vld [vmem:[%s9 + $0x28] sm:$0xff]
        %v826 = vld [vmem:[%s9 + $0x30] sm:$0xff]
        %v827 = vld [vmem:[%s9 + $0x38] sm:$0xff]
        %v828 = vld [vmem:[%s9 + $0x40] sm:$0xff]
        %v829 = vld [vmem:[%s9 + $0x48] sm:$0xff]
        %v830 = vld [vmem:[%s9 + $0x50] sm:$0xff]
        %v831 = vld [vmem:[%s9 + $0x58] sm:$0xff]
        %v832 = vld [vmem:[%s9 + $0x60] sm:$0xff]
        %v833 = vld [vmem:[%s9 + $0x68] sm:$0xff]
        %v834 = vld [vmem:[%s9 + $0x70] sm:$0xff]
        %v835 = vld [vmem:[%s9 + $0x78] sm:$0xff]
        %837 = vset.pattern.permute.xlu0 0
        %838 = vperm.xlu0 %837, %v820
        %v839 = vpop.permute.xlu0 %838
        %842 = vset.pattern.permute.xlu0 0
        %843 = vperm.xlu0 %842, %v821
        %v844 = vpop.permute.xlu0 %843
        %847 = vset.pattern.permute.xlu0 0
        %848 = vperm.xlu0 %847, %v822
        %v849 = vpop.permute.xlu0 %848
        %852 = vset.pattern.permute.xlu0 0
        %853 = vperm.xlu0 %852, %v823
        %v854 = vpop.permute.xlu0 %853
        %857 = vset.pattern.permute.xlu0 0
        %858 = vperm.xlu0 %857, %v824
        %v859 = vpop.permute.xlu0 %858
        %862 = vset.pattern.permute.xlu0 0
        %863 = vperm.xlu0 %862, %v825
        %v864 = vpop.permute.xlu0 %863
        %867 = vset.pattern.permute.xlu0 0
        %868 = vperm.xlu0 %867, %v826
        %v869 = vpop.permute.xlu0 %868
        %872 = vset.pattern.permute.xlu0 0
        %873 = vperm.xlu0 %872, %v827
        %v874 = vpop.permute.xlu0 %873
        %877 = vset.pattern.permute.xlu0 0
        %878 = vperm.xlu0 %877, %v828
        %v879 = vpop.permute.xlu0 %878
        %882 = vset.pattern.permute.xlu0 0
        %883 = vperm.xlu0 %882, %v829
        %v884 = vpop.permute.xlu0 %883
        %887 = vset.pattern.permute.xlu0 0
        %888 = vperm.xlu0 %887, %v830
        %v889 = vpop.permute.xlu0 %888
        %892 = vset.pattern.permute.xlu0 0
        %893 = vperm.xlu0 %892, %v831
        %v894 = vpop.permute.xlu0 %893
        %897 = vset.pattern.permute.xlu0 0
        %898 = vperm.xlu0 %897, %v832
        %v899 = vpop.permute.xlu0 %898
        %902 = vset.pattern.permute.xlu0 0
        %903 = vperm.xlu0 %902, %v833
        %v904 = vpop.permute.xlu0 %903
        %907 = vset.pattern.permute.xlu0 0
        %908 = vperm.xlu0 %907, %v834
        %v909 = vpop.permute.xlu0 %908
        %912 = vset.pattern.permute.xlu0 0
        %913 = vperm.xlu0 %912, %v835
        %v914 = vpop.permute.xlu0 %913
        %v932 = vunpack.c.l.b16 %v796
        %v933 = vunpack.c.l.b16 %v797
        %v934 = vunpack.c.l.b16 %v798
        %v935 = vunpack.c.l.b16 %v799
        %v936 = vunpack.c.l.b16 %v800
        %v937 = vunpack.c.l.b16 %v801
        %v938 = vunpack.c.l.b16 %v802
        %v939 = vunpack.c.l.b16 %v803
        %v940 = vunpack.c.l.b16 %v804
        %v941 = vunpack.c.l.b16 %v805
        %v942 = vunpack.c.l.b16 %v806
        %v943 = vunpack.c.l.b16 %v807
        %v944 = vunpack.c.l.b16 %v808
        %v945 = vunpack.c.l.b16 %v809
        %v946 = vunpack.c.l.b16 %v810
        %v947 = vunpack.c.l.b16 %v811
        %v948 = vpack.c.b16 %v933, %v932
        %v949 = vpack.c.b16 %v935, %v934
        %v950 = vpack.c.b16 %v937, %v936
        %v951 = vpack.c.b16 %v939, %v938
        %v952 = vpack.c.b16 %v941, %v940
        %v953 = vpack.c.b16 %v943, %v942
        %v954 = vpack.c.b16 %v945, %v944
        %v955 = vpack.c.b16 %v947, %v946
        %964 = vmatpush.bf16.msra.mxu0 %v819
        %965 = vmatpush.bf16.msra.mxu0 %v818
        %966 = vmatpush.bf16.msra.mxu0 %v817
        %967 = vmatpush.bf16.msra.mxu0 %v816
        %968 = vmatpush.bf16.msra.mxu0 %v815
        %969 = vmatpush.bf16.msra.mxu0 %v814
        %970 = vmatpush.bf16.msra.mxu0 %v813
        %971 = vmatpush.bf16.msra.mxu0 %v812
        %972 = vmatmul.bf16.gmra.mxu0 %v948
        %v973 = vpop.f32.mrf.mxu0
        %v974 = vadd.f32 %v839, %v973
        %v975 = vpop.f32.mrf.mxu0
        %v976 = vadd.f32 %v844, %v975
        %977 = vmatmul.bf16.gmra.mxu0 %v949
        %v978 = vpop.f32.mrf.mxu0
        %v979 = vadd.f32 %v849, %v978
        %v980 = vpop.f32.mrf.mxu0
        %v981 = vadd.f32 %v854, %v980
        %982 = vmatmul.bf16.gmra.mxu0 %v950
        %v983 = vpop.f32.mrf.mxu0
        %v984 = vadd.f32 %v859, %v983
        %v985 = vpop.f32.mrf.mxu0
        %v986 = vadd.f32 %v864, %v985
        %987 = vmatmul.bf16.gmra.mxu0 %v951
        %v988 = vpop.f32.mrf.mxu0
        %v989 = vadd.f32 %v869, %v988
        %v990 = vpop.f32.mrf.mxu0
        %v991 = vadd.f32 %v874, %v990
        %992 = vmatmul.bf16.gmra.mxu0 %v952
        %v993 = vpop.f32.mrf.mxu0
        %v994 = vadd.f32 %v879, %v993
        %v995 = vpop.f32.mrf.mxu0
        %v996 = vadd.f32 %v884, %v995
        %997 = vmatmul.bf16.gmra.mxu0 %v953
        %v998 = vpop.f32.mrf.mxu0
        %v999 = vadd.f32 %v889, %v998
        %v1000 = vpop.f32.mrf.mxu0
        %v1001 = vadd.f32 %v894, %v1000
        %1002 = vmatmul.bf16.gmra.mxu0 %v954
        %v1003 = vpop.f32.mrf.mxu0
        %v1004 = vadd.f32 %v899, %v1003
        %v1005 = vpop.f32.mrf.mxu0
        %v1006 = vadd.f32 %v904, %v1005
        %1007 = vmatmul.bf16.gmra.mxu0 %v955
        %v1008 = vpop.f32.mrf.mxu0
        %v1009 = vadd.f32 %v909, %v1008
        %v1010 = vpop.f32.mrf.mxu0
        %v1011 = vadd.f32 %v914, %v1010
        %1012 = vdwg.mxu0
        %v1013 = vmul.f32 %v974, 0.02
        %v1014 = vmul.f32 %v976, 0.02
        %v1015 = vmul.f32 %v979, 0.02
        %v1016 = vmul.f32 %v981, 0.02
        %v1017 = vmul.f32 %v984, 0.02
        %v1018 = vmul.f32 %v986, 0.02
        %v1019 = vmul.f32 %v989, 0.02
        %v1020 = vmul.f32 %v991, 0.02
        %v1021 = vmul.f32 %v994, 0.02
        %v1022 = vmul.f32 %v996, 0.02
        %v1023 = vmul.f32 %v999, 0.02
        %v1024 = vmul.f32 %v1001, 0.02
        %v1025 = vmul.f32 %v1004, 0.02
        %v1026 = vmul.f32 %v1006, 0.02
        %v1027 = vmul.f32 %v1009, 0.02
        %v1028 = vmul.f32 %v1011, 0.02
        %v1029 = vmax.f32 %v974, %v1013
        %v1030 = vmax.f32 %v976, %v1014
        %v1031 = vmax.f32 %v979, %v1015
        %v1032 = vmax.f32 %v981, %v1016
        %v1033 = vmax.f32 %v984, %v1017
        %v1034 = vmax.f32 %v986, %v1018
        %v1035 = vmax.f32 %v989, %v1019
        %v1036 = vmax.f32 %v991, %v1020
        %v1037 = vmax.f32 %v994, %v1021
        %v1038 = vmax.f32 %v996, %v1022
        %v1039 = vmax.f32 %v999, %v1023
        %v1040 = vmax.f32 %v1001, %v1024
        %v1041 = vmax.f32 %v1004, %v1025
        %v1042 = vmax.f32 %v1006, %v1026
        %v1043 = vmax.f32 %v1009, %v1027
        %v1044 = vmax.f32 %v1011, %v1028
        %v1045 = vld [vmem:[%s4] sm:$0xf]
        %v1046 = vld [vmem:[%s4 + $0x4] sm:$0xf]
        %v1047 = vld [vmem:[%s4 + $0x8] sm:$0xf]
        %v1048 = vld [vmem:[%s4 + $0xc] sm:$0xf]
        %v1049 = vld [vmem:[%s4 + $0x10] sm:$0xf]
        %v1050 = vld [vmem:[%s4 + $0x14] sm:$0xf]
        %v1051 = vld [vmem:[%s4 + $0x18] sm:$0xf]
        %v1052 = vld [vmem:[%s4 + $0x1c] sm:$0xf]
        %v1053 = vld [vmem:[%s4 + $0x20] sm:$0xf]
        %v1054 = vld [vmem:[%s4 + $0x24] sm:$0xf]
        %v1055 = vld [vmem:[%s4 + $0x28] sm:$0xf]
        %v1056 = vld [vmem:[%s4 + $0x2c] sm:$0xf]
        %v1057 = vld [vmem:[%s4 + $0x30] sm:$0xf]
        %v1058 = vld [vmem:[%s4 + $0x34] sm:$0xf]
        %v1059 = vld [vmem:[%s4 + $0x38] sm:$0xf]
        %v1060 = vld [vmem:[%s4 + $0x3c] sm:$0xf]
        %v1061 = vpack.c.bf16 %v1030, %v1029
        %v1062 = vpack.c.bf16 %v1032, %v1031
        %v1063 = vpack.c.bf16 %v1034, %v1033
        %v1064 = vpack.c.bf16 %v1036, %v1035
        %v1065 = vpack.c.bf16 %v1038, %v1037
        %v1066 = vpack.c.bf16 %v1040, %v1039
        %v1067 = vpack.c.bf16 %v1042, %v1041
        %v1068 = vpack.c.bf16 %v1044, %v1043
        %v1069 = vld [vmem:[%s10] sm:$0xff]
        %v1070 = vld [vmem:[%s10 + $0x8] sm:$0xff]
        %v1071 = vld [vmem:[%s10 + $0x10] sm:$0xff]
        %v1072 = vld [vmem:[%s10 + $0x18] sm:$0xff]
        %v1073 = vld [vmem:[%s10 + $0x20] sm:$0xff]
        %v1074 = vld [vmem:[%s10 + $0x28] sm:$0xff]
        %v1075 = vld [vmem:[%s10 + $0x30] sm:$0xff]
        %v1076 = vld [vmem:[%s10 + $0x38] sm:$0xff]
        %v1077 = vld [vmem:[%s10 + $0x40] sm:$0xff]
        %v1078 = vld [vmem:[%s10 + $0x48] sm:$0xff]
        %v1079 = vld [vmem:[%s10 + $0x50] sm:$0xff]
        %v1080 = vld [vmem:[%s10 + $0x58] sm:$0xff]
        %v1081 = vld [vmem:[%s10 + $0x60] sm:$0xff]
        %v1082 = vld [vmem:[%s10 + $0x68] sm:$0xff]
        %v1083 = vld [vmem:[%s10 + $0x70] sm:$0xff]
        %v1084 = vld [vmem:[%s10 + $0x78] sm:$0xff]
        %1086 = vset.pattern.permute.xlu0 0
        %1087 = vperm.xlu0 %1086, %v1069
        %v1088 = vpop.permute.xlu0 %1087
        %1091 = vset.pattern.permute.xlu0 0
        %1092 = vperm.xlu0 %1091, %v1070
        %v1093 = vpop.permute.xlu0 %1092
        %1096 = vset.pattern.permute.xlu0 0
        %1097 = vperm.xlu0 %1096, %v1071
        %v1098 = vpop.permute.xlu0 %1097
        %1101 = vset.pattern.permute.xlu0 0
        %1102 = vperm.xlu0 %1101, %v1072
        %v1103 = vpop.permute.xlu0 %1102
        %1106 = vset.pattern.permute.xlu0 0
        %1107 = vperm.xlu0 %1106, %v1073
        %v1108 = vpop.permute.xlu0 %1107
        %1111 = vset.pattern.permute.xlu0 0
        %1112 = vperm.xlu0 %1111, %v1074
        %v1113 = vpop.permute.xlu0 %1112
        %1116 = vset.pattern.permute.xlu0 0
        %1117 = vperm.xlu0 %1116, %v1075
        %v1118 = vpop.permute.xlu0 %1117
        %1121 = vset.pattern.permute.xlu0 0
        %1122 = vperm.xlu0 %1121, %v1076
        %v1123 = vpop.permute.xlu0 %1122
        %1126 = vset.pattern.permute.xlu0 0
        %1127 = vperm.xlu0 %1126, %v1077
        %v1128 = vpop.permute.xlu0 %1127
        %1131 = vset.pattern.permute.xlu0 0
        %1132 = vperm.xlu0 %1131, %v1078
        %v1133 = vpop.permute.xlu0 %1132
        %1136 = vset.pattern.permute.xlu0 0
        %1137 = vperm.xlu0 %1136, %v1079
        %v1138 = vpop.permute.xlu0 %1137
        %1141 = vset.pattern.permute.xlu0 0
        %1142 = vperm.xlu0 %1141, %v1080
        %v1143 = vpop.permute.xlu0 %1142
        %1146 = vset.pattern.permute.xlu0 0
        %1147 = vperm.xlu0 %1146, %v1081
        %v1148 = vpop.permute.xlu0 %1147
        %1151 = vset.pattern.permute.xlu0 0
        %1152 = vperm.xlu0 %1151, %v1082
        %v1153 = vpop.permute.xlu0 %1152
        %1156 = vset.pattern.permute.xlu0 0
        %1157 = vperm.xlu0 %1156, %v1083
        %v1158 = vpop.permute.xlu0 %1157
        %1161 = vset.pattern.permute.xlu0 0
        %1162 = vperm.xlu0 %1161, %v1084
        %v1163 = vpop.permute.xlu0 %1162
        %v1181 = vunpack.c.l.b16 %v1045
        %v1182 = vunpack.c.l.b16 %v1046
        %v1183 = vunpack.c.l.b16 %v1047
        %v1184 = vunpack.c.l.b16 %v1048
        %v1185 = vunpack.c.l.b16 %v1049
        %v1186 = vunpack.c.l.b16 %v1050
        %v1187 = vunpack.c.l.b16 %v1051
        %v1188 = vunpack.c.l.b16 %v1052
        %v1189 = vunpack.c.l.b16 %v1053
        %v1190 = vunpack.c.l.b16 %v1054
        %v1191 = vunpack.c.l.b16 %v1055
        %v1192 = vunpack.c.l.b16 %v1056
        %v1193 = vunpack.c.l.b16 %v1057
        %v1194 = vunpack.c.l.b16 %v1058
        %v1195 = vunpack.c.l.b16 %v1059
        %v1196 = vunpack.c.l.b16 %v1060
        %v1197 = vpack.c.b16 %v1182, %v1181
        %v1198 = vpack.c.b16 %v1184, %v1183
        %v1199 = vpack.c.b16 %v1186, %v1185
        %v1200 = vpack.c.b16 %v1188, %v1187
        %v1201 = vpack.c.b16 %v1190, %v1189
        %v1202 = vpack.c.b16 %v1192, %v1191
        %v1203 = vpack.c.b16 %v1194, %v1193
        %v1204 = vpack.c.b16 %v1196, %v1195
        %1213 = vmatpush.bf16.msra.mxu0 %v1068
        %1214 = vmatpush.bf16.msra.mxu0 %v1067
        %1215 = vmatpush.bf16.msra.mxu0 %v1066
        %1216 = vmatpush.bf16.msra.mxu0 %v1065
        %1217 = vmatpush.bf16.msra.mxu0 %v1064
        %1218 = vmatpush.bf16.msra.mxu0 %v1063
        %1219 = vmatpush.bf16.msra.mxu0 %v1062
        %1220 = vmatpush.bf16.msra.mxu0 %v1061
        %1221 = vmatmul.bf16.gmra.mxu0 %v1197
        %v1222 = vpop.f32.mrf.mxu0
        %v1223 = vadd.f32 %v1088, %v1222
        %v1224 = vpop.f32.mrf.mxu0
        %v1225 = vadd.f32 %v1093, %v1224
        %1226 = vmatmul.bf16.gmra.mxu0 %v1198
        %v1227 = vpop.f32.mrf.mxu0
        %v1228 = vadd.f32 %v1098, %v1227
        %v1229 = vpop.f32.mrf.mxu0
        %v1230 = vadd.f32 %v1103, %v1229
        %1231 = vmatmul.bf16.gmra.mxu0 %v1199
        %v1232 = vpop.f32.mrf.mxu0
        %v1233 = vadd.f32 %v1108, %v1232
        %v1234 = vpop.f32.mrf.mxu0
        %v1235 = vadd.f32 %v1113, %v1234
        %1236 = vmatmul.bf16.gmra.mxu0 %v1200
        %v1237 = vpop.f32.mrf.mxu0
        %v1238 = vadd.f32 %v1118, %v1237
        %v1239 = vpop.f32.mrf.mxu0
        %v1240 = vadd.f32 %v1123, %v1239
        %1241 = vmatmul.bf16.gmra.mxu0 %v1201
        %v1242 = vpop.f32.mrf.mxu0
        %v1243 = vadd.f32 %v1128, %v1242
        %v1244 = vpop.f32.mrf.mxu0
        %v1245 = vadd.f32 %v1133, %v1244
        %1246 = vmatmul.bf16.gmra.mxu0 %v1202
        %v1247 = vpop.f32.mrf.mxu0
        %v1248 = vadd.f32 %v1138, %v1247
        %v1249 = vpop.f32.mrf.mxu0
        %v1250 = vadd.f32 %v1143, %v1249
        %1251 = vmatmul.bf16.gmra.mxu0 %v1203
        %v1252 = vpop.f32.mrf.mxu0
        %v1253 = vadd.f32 %v1148, %v1252
        %v1254 = vpop.f32.mrf.mxu0
        %v1255 = vadd.f32 %v1153, %v1254
        %1256 = vmatmul.bf16.gmra.mxu0 %v1204
        %v1257 = vpop.f32.mrf.mxu0
        %v1258 = vadd.f32 %v1158, %v1257
        %v1259 = vpop.f32.mrf.mxu0
        %v1260 = vadd.f32 %v1163, %v1259
        %1261 = vdwg.mxu0
        %v1262 = vmul.f32 %v1223, 0.02
        %v1263 = vmul.f32 %v1225, 0.02
        %v1264 = vmul.f32 %v1228, 0.02
        %v1265 = vmul.f32 %v1230, 0.02
        %v1266 = vmul.f32 %v1233, 0.02
        %v1267 = vmul.f32 %v1235, 0.02
        %v1268 = vmul.f32 %v1238, 0.02
        %v1269 = vmul.f32 %v1240, 0.02
        %v1270 = vmul.f32 %v1243, 0.02
        %v1271 = vmul.f32 %v1245, 0.02
        %v1272 = vmul.f32 %v1248, 0.02
        %v1273 = vmul.f32 %v1250, 0.02
        %v1274 = vmul.f32 %v1253, 0.02
        %v1275 = vmul.f32 %v1255, 0.02
        %v1276 = vmul.f32 %v1258, 0.02
        %v1277 = vmul.f32 %v1260, 0.02
        %v1278 = vmax.f32 %v1223, %v1262
        %v1279 = vmax.f32 %v1225, %v1263
        %v1280 = vmax.f32 %v1228, %v1264
        %v1281 = vmax.f32 %v1230, %v1265
        %v1282 = vmax.f32 %v1233, %v1266
        %v1283 = vmax.f32 %v1235, %v1267
        %v1284 = vmax.f32 %v1238, %v1268
        %v1285 = vmax.f32 %v1240, %v1269
        %v1286 = vmax.f32 %v1243, %v1270
        %v1287 = vmax.f32 %v1245, %v1271
        %v1288 = vmax.f32 %v1248, %v1272
        %v1289 = vmax.f32 %v1250, %v1273
        %v1290 = vmax.f32 %v1253, %v1274
        %v1291 = vmax.f32 %v1255, %v1275
        %v1292 = vmax.f32 %v1258, %v1276
        %v1293 = vmax.f32 %v1260, %v1277
        %v1294 = vld [vmem:[%s5] sm:$0xf]
        %v1295 = vld [vmem:[%s5 + $0x4] sm:$0xf]
        %v1296 = vld [vmem:[%s5 + $0x8] sm:$0xf]
        %v1297 = vld [vmem:[%s5 + $0xc] sm:$0xf]
        %v1298 = vld [vmem:[%s5 + $0x10] sm:$0xf]
        %v1299 = vld [vmem:[%s5 + $0x14] sm:$0xf]
        %v1300 = vld [vmem:[%s5 + $0x18] sm:$0xf]
        %v1301 = vld [vmem:[%s5 + $0x1c] sm:$0xf]
        %v1302 = vpack.c.bf16 %v1279, %v1278
        %v1303 = vpack.c.bf16 %v1281, %v1280
        %v1304 = vpack.c.bf16 %v1283, %v1282
        %v1305 = vpack.c.bf16 %v1285, %v1284
        %v1306 = vpack.c.bf16 %v1287, %v1286
        %v1307 = vpack.c.bf16 %v1289, %v1288
        %v1308 = vpack.c.bf16 %v1291, %v1290
        %v1309 = vpack.c.bf16 %v1293, %v1292
        %v1310 = vld [vmem:[%s11] sm:$0xff]
        %v1311 = vld [vmem:[%s11 + $0x8] sm:$0xff]
        %v1312 = vld [vmem:[%s11 + $0x10] sm:$0xff]
        %v1313 = vld [vmem:[%s11 + $0x18] sm:$0xff]
        %v1314 = vld [vmem:[%s11 + $0x20] sm:$0xff]
        %v1315 = vld [vmem:[%s11 + $0x28] sm:$0xff]
        %v1316 = vld [vmem:[%s11 + $0x30] sm:$0xff]
        %v1317 = vld [vmem:[%s11 + $0x38] sm:$0xff]
        %1319 = vset.pattern.permute.xlu0 0
        %1320 = vperm.xlu0 %1319, %v1310
        %v1321 = vpop.permute.xlu0 %1320
        %1324 = vset.pattern.permute.xlu0 0
        %1325 = vperm.xlu0 %1324, %v1311
        %v1326 = vpop.permute.xlu0 %1325
        %1329 = vset.pattern.permute.xlu0 0
        %1330 = vperm.xlu0 %1329, %v1312
        %v1331 = vpop.permute.xlu0 %1330
        %1334 = vset.pattern.permute.xlu0 0
        %1335 = vperm.xlu0 %1334, %v1313
        %v1336 = vpop.permute.xlu0 %1335
        %1339 = vset.pattern.permute.xlu0 0
        %1340 = vperm.xlu0 %1339, %v1314
        %v1341 = vpop.permute.xlu0 %1340
        %1344 = vset.pattern.permute.xlu0 0
        %1345 = vperm.xlu0 %1344, %v1315
        %v1346 = vpop.permute.xlu0 %1345
        %1349 = vset.pattern.permute.xlu0 0
        %1350 = vperm.xlu0 %1349, %v1316
        %v1351 = vpop.permute.xlu0 %1350
        %1354 = vset.pattern.permute.xlu0 0
        %1355 = vperm.xlu0 %1354, %v1317
        %v1356 = vpop.permute.xlu0 %1355
        %v1366 = vunpack.c.l.b16 %v1294
        %v1367 = vunpack.c.l.b16 %v1295
        %v1368 = vunpack.c.l.b16 %v1296
        %v1369 = vunpack.c.l.b16 %v1297
        %v1370 = vunpack.c.l.b16 %v1298
        %v1371 = vunpack.c.l.b16 %v1299
        %v1372 = vunpack.c.l.b16 %v1300
        %v1373 = vunpack.c.l.b16 %v1301
        %v1374 = vpack.c.b16 %v1367, %v1366
        %v1375 = vpack.c.b16 %v1369, %v1368
        %v1376 = vpack.c.b16 %v1371, %v1370
        %v1377 = vpack.c.b16 %v1373, %v1372
        %1382 = vmatpush.bf16.msra.mxu0 %v1309
        %1383 = vmatpush.bf16.msra.mxu0 %v1308
        %1384 = vmatpush.bf16.msra.mxu0 %v1307
        %1385 = vmatpush.bf16.msra.mxu0 %v1306
        %1386 = vmatpush.bf16.msra.mxu0 %v1305
        %1387 = vmatpush.bf16.msra.mxu0 %v1304
        %1388 = vmatpush.bf16.msra.mxu0 %v1303
        %1389 = vmatpush.bf16.msra.mxu0 %v1302
        %1390 = vmatmul.bf16.gmra.mxu0 %v1374
        %v1391 = vpop.f32.mrf.mxu0
        %v1392 = vadd.f32 %v1321, %v1391
        %v1393 = vpop.f32.mrf.mxu0
        %v1394 = vadd.f32 %v1326, %v1393
        %1395 = vmatmul.bf16.gmra.mxu0 %v1375
        %v1396 = vpop.f32.mrf.mxu0
        %v1397 = vadd.f32 %v1331, %v1396
        %v1398 = vpop.f32.mrf.mxu0
        %v1399 = vadd.f32 %v1336, %v1398
        %1400 = vmatmul.bf16.gmra.mxu0 %v1376
        %v1401 = vpop.f32.mrf.mxu0
        %v1402 = vadd.f32 %v1341, %v1401
        %v1403 = vpop.f32.mrf.mxu0
        %v1404 = vadd.f32 %v1346, %v1403
        %1405 = vmatmul.bf16.gmra.mxu0 %v1377
        %v1406 = vpop.f32.mrf.mxu0
        %v1407 = vadd.f32 %v1351, %v1406
        %v1408 = vpop.f32.mrf.mxu0
        %v1409 = vadd.f32 %v1356, %v1408
        %1410 = vdwg.mxu0
        %v1411 = vmul.f32 %v1392, 0.02
        %v1412 = vmul.f32 %v1394, 0.02
        %v1413 = vmul.f32 %v1397, 0.02
        %v1414 = vmul.f32 %v1399, 0.02
        %v1415 = vmul.f32 %v1402, 0.02
        %v1416 = vmul.f32 %v1404, 0.02
        %v1417 = vmul.f32 %v1407, 0.02
        %v1418 = vmul.f32 %v1409, 0.02
        %v1419 = vmax.f32 %v1392, %v1411
        %v1420 = vmax.f32 %v1394, %v1412
        %v1421 = vmax.f32 %v1397, %v1413
        %v1422 = vmax.f32 %v1399, %v1414
        %v1423 = vmax.f32 %v1402, %v1415
        %v1424 = vmax.f32 %v1404, %v1416
        %v1425 = vmax.f32 %v1407, %v1417
        %v1426 = vmax.f32 %v1409, %v1418
        %v1427 = vld [vmem:[%s6] sm:$0xf]
        %v1428 = vld [vmem:[%s6 + $0x4] sm:$0xf]
        %v1429 = vld [vmem:[%s6 + $0x8] sm:$0xf]
        %v1430 = vld [vmem:[%s6 + $0xc] sm:$0xf]
        %v1431 = vpack.c.bf16 %v1420, %v1419
        %v1432 = vpack.c.bf16 %v1422, %v1421
        %v1433 = vpack.c.bf16 %v1424, %v1423
        %v1434 = vpack.c.bf16 %v1426, %v1425
        %v1435 = vld [vmem:[%s12] sm:$0xff]
        %v1436 = vld [vmem:[%s12 + $0x8] sm:$0xff]
        %v1437 = vld [vmem:[%s12 + $0x10] sm:$0xff]
        %v1438 = vld [vmem:[%s12 + $0x18] sm:$0xff]
        %1440 = vset.pattern.permute.xlu0 0
        %1441 = vperm.xlu0 %1440, %v1435
        %v1442 = vpop.permute.xlu0 %1441
        %1445 = vset.pattern.permute.xlu0 0
        %1446 = vperm.xlu0 %1445, %v1436
        %v1447 = vpop.permute.xlu0 %1446
        %1450 = vset.pattern.permute.xlu0 0
        %1451 = vperm.xlu0 %1450, %v1437
        %v1452 = vpop.permute.xlu0 %1451
        %1455 = vset.pattern.permute.xlu0 0
        %1456 = vperm.xlu0 %1455, %v1438
        %v1457 = vpop.permute.xlu0 %1456
        %v1463 = vunpack.c.l.b16 %v1427
        %v1464 = vunpack.c.l.b16 %v1428
        %v1465 = vunpack.c.l.b16 %v1429
        %v1466 = vunpack.c.l.b16 %v1430
        %v1467 = vpack.c.b16 %v1464, %v1463
        %v1468 = vpack.c.b16 %v1466, %v1465
        %vm1469 = vcmask 523264
        %v1471 = vsel %vm1469, %v1467, 0
        %v1474 = vsel %vm1469, %v1468, 0
        %1476 = vmatpush.bf16.msra.mxu0 0
        %1477 = vmatpush.bf16.msra.mxu0 0
        %1478 = vmatpush.bf16.msra.mxu0 0
        %1479 = vmatpush.bf16.msra.mxu0 0
        %1480 = vmatpush.bf16.msra.mxu0 %v1434
        %1481 = vmatpush.bf16.msra.mxu0 %v1433
        %1482 = vmatpush.bf16.msra.mxu0 %v1432
        %1483 = vmatpush.bf16.msra.mxu0 %v1431
        %1484 = vmatmul.bf16.gmra.mxu0 %v1471
        %v1485 = vpop.f32.mrf.mxu0
        %v1486 = vadd.f32 %v1442, %v1485
        %v1487 = vpop.f32.mrf.mxu0
        %v1488 = vadd.f32 %v1447, %v1487
        %1489 = vmatmul.bf16.gmra.mxu0 %v1474
        %v1490 = vpop.f32.mrf.mxu0
        %v1491 = vadd.f32 %v1452, %v1490
        %v1492 = vpop.f32.mrf.mxu0
        %v1493 = vadd.f32 %v1457, %v1492
        %1494 = vdwg.mxu0
        %v1495 = vmul.f32 %v1486, 0.02
        %v1496 = vmul.f32 %v1488, 0.02
        %v1497 = vmul.f32 %v1491, 0.02
        %v1498 = vmul.f32 %v1493, 0.02
        %v1499 = vmax.f32 %v1486, %v1495
        %v1500 = vmax.f32 %v1488, %v1496
        %v1501 = vmax.f32 %v1491, %v1497
        %v1502 = vmax.f32 %v1493, %v1498
        %v1503 = vld [vmem:[%s7] sm:$0xf]
        %v1504 = vld [vmem:[%s7 + $0x4] sm:$0xf]
        %v1505 = vpack.c.bf16 %v1500, %v1499
        %v1506 = vpack.c.bf16 %v1502, %v1501
        %v1507 = vld [vmem:[%s13] sm:$0xff]
        %v1508 = vld [vmem:[%s13 + $0x8] sm:$0xff]
        %1510 = vset.pattern.permute.xlu0 0
        %1511 = vperm.xlu0 %1510, %v1507
        %v1512 = vpop.permute.xlu0 %1511
        %1515 = vset.pattern.permute.xlu0 0
        %1516 = vperm.xlu0 %1515, %v1508
        %v1517 = vpop.permute.xlu0 %1516
        %v1521 = vunpack.c.l.b16 %v1503
        %v1522 = vunpack.c.l.b16 %v1504
        %v1523 = vpack.c.b16 %v1522, %v1521
        %vm1524 = vcmask 261120
        %v1526 = vsel %vm1524, %v1523, 0
        %1528 = vmatpush.bf16.msra.mxu0 0
        %1529 = vmatpush.bf16.msra.mxu0 0
        %1530 = vmatpush.bf16.msra.mxu0 0
        %1531 = vmatpush.bf16.msra.mxu0 0
        %1532 = vmatpush.bf16.msra.mxu0 0
        %1533 = vmatpush.bf16.msra.mxu0 0
        %1534 = vmatpush.bf16.msra.mxu0 %v1506
        %1535 = vmatpush.bf16.msra.mxu0 %v1505
        %1536 = vmatmul.bf16.gmra.mxu0 %v1526
        %v1537 = vpop.f32.mrf.mxu0
        %v1538 = vadd.f32 %v1512, %v1537
        %v1539 = vpop.f32.mrf.mxu0
        %v1540 = vadd.f32 %v1517, %v1539
        %1541 = vdwg.mxu0
        %v1542 = vmul.f32 %v1538, 0.02
        %v1543 = vmul.f32 %v1540, 0.02
        %v1544 = vmax.f32 %v1538, %v1542
        %v1545 = vmax.f32 %v1540, %v1543
        %v1546 = vld [vmem:[%s8] sm:$0xff]
        %v1547 = vld [vmem:[%s8 + $0x8] sm:$0xff]
        %1549 = vset.pattern.permute.xlu0 0
        %1550 = vperm.xlu0 %1549, %v1546
        %v1551 = vpop.permute.xlu0 %1550
        %1554 = vset.pattern.permute.xlu0 0
        %1555 = vperm.xlu0 %1554, %v1547
        %v1556 = vpop.permute.xlu0 %1555
        %v1558 = vmul.f32 %v1544, %v1551
        %v1559 = vmul.f32 %v1545, %v1556
        %v1560 = vadd.f32 %v1558, %v1559
        %v1561 = vrot.slane %v1560, 4
        %v1562 = vadd.f32 %v1560, %v1561
        %v1563 = vrot.slane %v1562, 2
        %v1564 = vadd.f32 %v1562, %v1563
        %v1565 = vrot.slane %v1564, 1
        %v1566 = vadd.f32 %v1564, %v1565
        %v1567 = vld [vmem:[#allocation2] sm:$0x1]
        %1569 = vset.pattern.permute.xlu0 0
        %1570 = vperm.xlu0 %1569, %v1567
        %v1571 = vpop.permute.xlu0 %1570
        %v1573 = vperm.slane %v1571, 0
        %v1574 = vadd.f32 %v1566, %v1573
        %v1575 = vmul.f32 %v1574, 0.01
        %v1576 = vadd.f32 %v1575, 0.99
        %v1577 = vmin.f32 %v1574, %v1576
        %v1578 = vmax.f32 %v1577, %v1575
        %1579 = vst [vmem:[%s523] sm:$0x1] %v1578
        %s1580 = sand.u32 %s380, 1
        %s1581 = scalar_lea.sflag [#allocation4], %s1580
        %s1582 = sand.u32 %s380, 1
        %s1583 = scalar_lea.vmem [#allocation3], %s1582
        // Predicated region
        $region81: #{tpu_custom_call.1} parent=79 // pred_check
          %p1584 = pneg %p390
        $region82: #{tpu_custom_call.1} parent=79 // pred_check_branch
          %1586 = sbr.rel (%p1584) target = $region84
        $region83: #{tpu_custom_call.1} parent=79 // pred_region
          %1588 = vsyncadd %s1581, 0
          %s1589 = sadd.s32 %s36, %s35
          %s1590 = scalar_lea.hbm %s15, %s1589
          %s1592 = sshll.u32 %s1583, 4
          %s1593 = int_to_ptr.vmem [resolvable:$true] %s1592
          %s1594 = sshll.u32 %s1590, 4
          %s1595 = int_to_ptr.hbm [resolvable:$true] %s1594
          %1597 = dma.vmem_to_hbm [thread:$0]  %s1593, 16, %s1595, %s1581
        $region84: #{tpu_custom_call.1} parent=79 // pred_fallthru
          _
      $region80: #{tpu_custom_call.1} parent=5 // pred_fallthru
        _
      %p1598 = scmp.le.s32.totalorder 2, %s26
      // Predicated region
      $region85: #{tpu_custom_call.1} parent=5 // pred_check
        %p1599 = pneg %p1598
      $region86: #{tpu_custom_call.1} parent=5 // pred_check_branch
        %1601 = sbr.rel (%p1599) target = $region88
      $region87: #{tpu_custom_call.1} parent=5 // pred_region
        %s1602 = ssub.s32 %s26, 2
        // Predicated region
        $region89: #{tpu_custom_call.1} parent=87 // pred_check
          %p1603 = pneg %p396
        $region90: #{tpu_custom_call.1} parent=87 // pred_check_branch
          %1605 = sbr.rel (%p1603) target = $region92
        $region91: #{tpu_custom_call.1} parent=87 // pred_region
          %s1606 = sand.u32 %s381, 1
          %s1607 = scalar_lea.sflag [#allocation4], %s1606
          %s1608 = sand.u32 %s381, 1
          %s1609 = scalar_lea.vmem [#allocation3], %s1608
          %1611 = dma.done %s1607, 16
        $region92: #{tpu_custom_call.1} parent=87 // pred_fallthru
          _
      $region88: #{tpu_custom_call.1} parent=5 // pred_fallthru
        _
    $region6: #{tpu_custom_call.1} parent=1 // loop_footer
      %s30 = sadd.s32 1, %s26
    $region7: #{tpu_custom_call.1} parent=1 // loop_footer_branch
      %25 = sbr.rel target = $region3
    $region8: #{tpu_custom_call.1} parent=1 // loop_exit
      _
    %1612 = vsyncpa [#allocation4], 1
    %s1613 = scalar_lea.sflag [#allocation4], 1
    %1614 = vsyncpa %s1613, 1

</llo_original>
